<compile_context>
chip_gen: v6e
topology: v6e:2x2x1
jax: 0.10.0
libtpu: 0.0.40
codegen_flags: <defaults>
</compile_context>

<pallas_src>
import jax
import jax.numpy as jnp
from jax.experimental import pallas as pl
from jax.experimental.pallas import tpu as pltpu


# ---------------------------------------------------------------------------
# Kernel: full CNN forward for ONE image per grid step.
#
#   x_ref    : (1, 32, 32)  bf16  zero-padded 28x28 image; row (s*8 + a) holds
#                                 padded-image row (4a + s)  (mod-4 H s2d)
#   w1t_ref  : (3, 32, 448) bf16  conv1 Toeplitz weights, one slice per dy tap
#   b1t_ref  : (1, 224)     f32   conv1 bias tiled over pooled W (lane=ow*16+c)
#   w2t_ref  : (3, 256, 448)bf16  conv2 Toeplitz weights
#   b2t_ref  : (1, 224)     f32   conv2 bias tiled (lane = ow2*32 + c2)
#   wfc1_ref : (1568, 128)  bf16  fc1, rows in HWC feature order
#   bfc1_ref : (1, 128)     f32
#   wfc2_ref : (128, 10)    bf16
#   bfc2_ref : (1, 10)      f32
#   o_ref    : (1, 1, 10)   f32
#   scr      : (16, 256)    bf16  VMEM scratch: conv1 pooled output, zero-
#                                 padded + H-space-to-depth'd for conv2.
#                                 row (r*8 + a) = padded row (2a + r);
#                                 lane (v*16 + c) = (padded col v, channel c)
# ---------------------------------------------------------------------------
def _cnn_kernel(x_ref, w1t_ref, b1t_ref, w2t_ref, b2t_ref,
                wfc1_ref, bfc1_ref, wfc2_ref, bfc2_ref, o_ref, scr):
    x = x_ref[0]                                     # (32, 32) bf16
    w1t = [w1t_ref[d] for d in range(3)]             # 3 x (32, 448)
    w2t = [w2t_ref[d] for d in range(3)]             # 3 x (256, 448)

    # ---------------- conv1 (1->16) + bias + ReLU + 2x2 max-pool -------------
    scr[...] = jnp.zeros_like(scr)                   # border zeros for conv2 pad
    for rho in range(2):                             # parity of pooled row i
        acc = []
        for py in range(2):                          # pool tap along H
            a = jnp.zeros((7, 448), jnp.float32)
            for dy in range(3):                      # conv tap along H
                t = 2 * rho + py + dy                # padded row = 4*g + t
                s, k = t % 4, t // 4
                strip = x[s * 8 + k: s * 8 + k + 7, :]            # (7, 32)
                a = a + jnp.dot(strip, w1t[dy],
                                preferred_element_type=jnp.float32)
            acc.append(a)
        z = jnp.maximum(acc[0], acc[1])              # max-pool along H
        z = jnp.maximum(z[:, :224], z[:, 224:])      # max-pool along W (px halves)
        z = jnp.maximum(z + b1t_ref[...], 0.0)       # shared bias + ReLU
        z = z.astype(jnp.bfloat16)                   # (7, 224): lane = ow*16 + c
        # pooled row i = 2g + rho -> padded row u = i + 1 -> scratch row
        # (u % 2) * 8 + u // 2; data columns live at lanes [16:240].
        r0 = (rho + 1) % 2
        a0 = (rho + 1) // 2
        scr[r0 * 8 + a0: r0 * 8 + a0 + 7, 16:240] = z

    # ---------------- conv2 (16->32) + bias + ReLU + 2x2 max-pool ------------
    acc2 = []
    for py in range(2):
        a = jnp.zeros((7, 448), jnp.float32)
        for dy in range(3):
            t = py + dy                              # padded row = 2*i2 + t
            r, k = t % 2, t // 2
            strip = scr[r * 8 + k: r * 8 + k + 7, :]              # (7, 256)
            a = a + jnp.dot(strip, w2t[dy],
                            preferred_element_type=jnp.float32)
        acc2.append(a)
    z2 = jnp.maximum(acc2[0], acc2[1])
    z2 = jnp.maximum(z2[:, :224], z2[:, 224:])
    z2 = jnp.maximum(z2 + b2t_ref[...], 0.0)
    z2 = z2.astype(jnp.bfloat16)                     # (7, 224): lane = ow2*32 + c2

    # ---------------- flatten (HWC order) + fc1 + ReLU + fc2 -----------------
    h = jnp.zeros((1, 128), jnp.float32)
    for i2 in range(7):                              # sum over pooled rows
        h = h + jnp.dot(z2[i2:i2 + 1, :],
                        wfc1_ref[i2 * 224:(i2 + 1) * 224, :],
                        preferred_element_type=jnp.float32)
    h = jnp.maximum(h + bfc1_ref[...], 0.0).astype(jnp.bfloat16)
    logits = jnp.dot(h, wfc2_ref[...],
                     preferred_element_type=jnp.float32) + bfc2_ref[...]
    o_ref[0] = logits


# ---------------------------------------------------------------------------
# Forward pass wrapper
# ---------------------------------------------------------------------------
def cnn_forward(x_nchw, params):
    """Equivalent of CNN.forward on NCHW input (N, 1, 28, 28) -> (N, 10)."""
    n = x_nchw.shape[0]
    x = x_nchw.reshape(n, 28, 28).astype(jnp.bfloat16)
    # single zero-pad of the small input (conv pad=1; rounded 30 -> 32)
    xp = jnp.pad(x, ((0, 0), (1, 3), (1, 3)))                     # (n, 32, 32)
    # mod-4 space-to-depth along rows: new row (s*8 + a) = padded row (4a + s)
    xs = xp.reshape(n, 8, 4, 32).transpose(0, 2, 1, 3).reshape(n, 32, 32)

    out = pl.pallas_call(
        _cnn_kernel,
        out_shape=jax.ShapeDtypeStruct((n, 1, 10), jnp.float32),
        grid=(n,),
        in_specs=[
            pl.BlockSpec((1, 32, 32), lambda i: (i, 0, 0)),
            pl.BlockSpec((3, 32, 448), lambda i: (0, 0, 0)),
            pl.BlockSpec((1, 224), lambda i: (0, 0)),
            pl.BlockSpec((3, 256, 448), lambda i: (0, 0, 0)),
            pl.BlockSpec((1, 224), lambda i: (0, 0)),
            pl.BlockSpec((1568, 128), lambda i: (0, 0)),
            pl.BlockSpec((1, 128), lambda i: (0, 0)),
            pl.BlockSpec((128, 10), lambda i: (0, 0)),
            pl.BlockSpec((1, 10), lambda i: (0, 0)),
        ],
        out_specs=pl.BlockSpec((1, 1, 10), lambda i: (i, 0, 0)),
        scratch_shapes=[pltpu.VMEM((16, 256), jnp.bfloat16)],
        compiler_params=pltpu.CompilerParams(
            dimension_semantics=("parallel",)),
    )(xs, params["w1t"], params["b1t"], params["w2t"], params["b2t"],
      params["wfc1"], params["bfc1"], params["wfc2"], params["bfc2"])
    return out.reshape(n, 10)


# ---------------------------------------------------------------------------
# Parameter plumbing: all layout folding / Toeplitz expansion done ONCE here.
# ---------------------------------------------------------------------------
def prepare_params(raw):
    f32, bf16 = jnp.float32, jnp.bfloat16

    # conv1 -> Toeplitz (3, 32, 448): rows = padded col v, lanes = px*224+ow*16+c
    w1 = raw["conv1_w"]                               # (16, 1, 3, 3)
    v = jnp.arange(32)[:, None, None, None]
    px = jnp.arange(2)[None, :, None, None]
    ow = jnp.arange(14)[None, None, :, None]
    c = jnp.arange(16)[None, None, None, :]
    dx = v - (2 * ow + px)
    valid = (dx >= 0) & (dx <= 2)
    dxc = jnp.clip(dx, 0, 2)
    w1t = jnp.stack(
        [jnp.where(valid, w1[c, 0, dy, dxc], 0.0).reshape(32, 448)
         for dy in range(3)], axis=0).astype(bf16)
    b1t = jnp.tile(raw["conv1_b"], 14).reshape(1, 224).astype(f32)

    # conv2 -> Toeplitz (3, 256, 448): rows = v2*16+ci, lanes = px2*224+ow2*32+c2
    w2 = raw["conv2_w"]                               # (32, 16, 3, 3)
    v2 = jnp.arange(16)[:, None, None, None, None]
    ci = jnp.arange(16)[None, :, None, None, None]
    px2 = jnp.arange(2)[None, None, :, None, None]
    ow2 = jnp.arange(7)[None, None, None, :, None]
    c2 = jnp.arange(32)[None, None, None, None, :]
    dx2 = v2 - (2 * ow2 + px2)
    valid2 = (dx2 >= 0) & (dx2 <= 2)
    dx2c = jnp.clip(dx2, 0, 2)
    w2t = jnp.stack(
        [jnp.where(valid2, w2[c2, ci, dy, dx2c], 0.0).reshape(256, 448)
         for dy in range(3)], axis=0).astype(bf16)
    b2t = jnp.tile(raw["conv2_b"], 7).reshape(1, 224).astype(f32)

    # fc1: permute columns from PyTorch NCHW-flatten (c*49 + i*7 + w) to the
    # kernel's HWC order (i*224 + w*32 + c), then transpose to (in, out).
    wfc1 = (raw["fc1_w"].reshape(128, 32, 7, 7)
            .transpose(0, 2, 3, 1).reshape(128, 1568).T.astype(bf16))
    return {
        "w1t": w1t, "b1t": b1t, "w2t": w2t, "b2t": b2t,
        "wfc1": wfc1,
        "bfc1": raw["fc1_b"].reshape(1, 128).astype(f32),
        "wfc2": raw["fc2_w"].T.astype(bf16),          # (128, 10)
        "bfc2": raw["fc2_b"].reshape(1, 10).astype(f32),
    }


def init_params(key):
    """Deterministic synthetic parameters with PyTorch-convention shapes."""
    ks = jax.random.split(key, 8)
    s = 0.1
    return {
        "conv1_w": s * jax.random.normal(ks[0], (16, 1, 3, 3), jnp.float32),
        "conv1_b": s * jax.random.normal(ks[1], (16,), jnp.float32),
        "conv2_w": s * jax.random.normal(ks[2], (32, 16, 3, 3), jnp.float32),
        "conv2_b": s * jax.random.normal(ks[3], (32,), jnp.float32),
        "fc1_w": s * jax.random.normal(ks[4], (128, 32 * 7 * 7), jnp.float32),
        "fc1_b": s * jax.random.normal(ks[5], (128,), jnp.float32),
        "fc2_w": s * jax.random.normal(ks[6], (10, 128), jnp.float32),
        "fc2_b": s * jax.random.normal(ks[7], (10,), jnp.float32),
    }


def _reference_forward(x, raw):
    """Pure-JAX f32 reference of CNN.forward (self-test only)."""
    dn = ("NCHW", "OIHW", "NCHW")
    y = jax.lax.conv_general_dilated(x, raw["conv1_w"], (1, 1),
                                     [(1, 1), (1, 1)], dimension_numbers=dn)
    y = jax.nn.relu(y + raw["conv1_b"].reshape(1, -1, 1, 1))
    y = jax.lax.reduce_window(y, -jnp.inf, jax.lax.max,
                              (1, 1, 2, 2), (1, 1, 2, 2), "VALID")
    y = jax.lax.conv_general_dilated(y, raw["conv2_w"], (1, 1),
                                     [(1, 1), (1, 1)], dimension_numbers=dn)
    y = jax.nn.relu(y + raw["conv2_b"].reshape(1, -1, 1, 1))
    y = jax.lax.reduce_window(y, -jnp.inf, jax.lax.max,
                              (1, 1, 2, 2), (1, 1, 2, 2), "VALID")
    f = y.reshape(y.shape[0], -1)
    h = jax.nn.relu(f @ raw["fc1_w"].T + raw["fc1_b"])
    return h @ raw["fc2_w"].T + raw["fc2_b"]


if __name__ == "__main__":
    key = jax.random.PRNGKey(0)
    pkey, xkey = jax.random.split(key)
    raw = init_params(pkey)
    params = prepare_params(raw)          # layout/Toeplitz folding done once
    # fc1 expects 32*7*7 features => 28x28 spatial, 1 channel (MNIST-like).
    x = jax.random.normal(xkey, (2, 1, 28, 28), jnp.float32)

    logits = jax.block_until_ready(jax.jit(cnn_forward)(x, params))
    assert logits.shape == (2, 10), logits.shape
    assert bool(jnp.all(jnp.isfinite(logits)))

    # bf16 operands (f32 accumulation) => small drift vs. the f32 reference.
    ref = _reference_forward(x, raw)
    assert bool(jnp.allclose(logits, ref, atol=0.15, rtol=0.05)), (
        float(jnp.max(jnp.abs(logits - ref))))
    print("KERNEL_OK")
</pallas_src>

<mosaic_0001>
module attributes {stable_mosaic.version = 11 : i64} {
  func.func @_cnn_kernel(%arg0: i32, %arg1: memref<1x32x32xbf16, #tpu.memory_space<vmem>>, %arg2: memref<3x32x448xbf16, #tpu.memory_space<vmem>>, %arg3: memref<1x224xf32, #tpu.memory_space<vmem>>, %arg4: memref<3x256x448xbf16, #tpu.memory_space<vmem>>, %arg5: memref<1x224xf32, #tpu.memory_space<vmem>>, %arg6: memref<1568x128xbf16, #tpu.memory_space<vmem>>, %arg7: memref<1x128xf32, #tpu.memory_space<vmem>>, %arg8: memref<128x10xbf16, #tpu.memory_space<vmem>>, %arg9: memref<1x10xf32, #tpu.memory_space<vmem>>, %arg10: memref<1x1x10xf32, #tpu.memory_space<vmem>>, %arg11: memref<16x256xbf16, #tpu.memory_space<vmem>>) attributes {dimension_semantics = [#tpu.dimension_semantics<parallel>], iteration_bounds = array<i64: 2>, scalar_prefetch = 0 : i64, scratch_operands = 1 : i64, tpu.core_type = #tpu.core_type<tc>, window_params = [{transform_indices = @transform_0, window_bounds = array<i64: 1, 32, 32>}, {pipeline_mode = #tpu.pipeline_mode<synchronous>, transform_indices = @transform_1, window_bounds = array<i64: 3, 32, 448>}, {pipeline_mode = #tpu.pipeline_mode<synchronous>, transform_indices = @transform_2, window_bounds = array<i64: 1, 224>}, {pipeline_mode = #tpu.pipeline_mode<synchronous>, transform_indices = @transform_3, window_bounds = array<i64: 3, 256, 448>}, {pipeline_mode = #tpu.pipeline_mode<synchronous>, transform_indices = @transform_4, window_bounds = array<i64: 1, 224>}, {pipeline_mode = #tpu.pipeline_mode<synchronous>, transform_indices = @transform_5, window_bounds = array<i64: 1568, 128>}, {pipeline_mode = #tpu.pipeline_mode<synchronous>, transform_indices = @transform_6, window_bounds = array<i64: 1, 128>}, {pipeline_mode = #tpu.pipeline_mode<synchronous>, transform_indices = @transform_7, window_bounds = array<i64: 128, 10>}, {pipeline_mode = #tpu.pipeline_mode<synchronous>, transform_indices = @transform_8, window_bounds = array<i64: 1, 10>}, {transform_indices = @transform_9, window_bounds = array<i64: 1, 1, 10>}]} {
    %c0 = arith.constant 0 : index
    %c0_0 = arith.constant 0 : index
    %c0_1 = arith.constant 0 : index
    %0 = vector.load %arg1[%c0, %c0_0, %c0_1] : memref<1x32x32xbf16, #tpu.memory_space<vmem>>, vector<1x32x32xbf16>
    %1 = vector.shape_cast %0 : vector<1x32x32xbf16> to vector<32x32xbf16>
    %c0_2 = arith.constant 0 : index
    %c0_3 = arith.constant 0 : index
    %c0_4 = arith.constant 0 : index
    %2 = vector.load %arg2[%c0_2, %c0_3, %c0_4] : memref<3x32x448xbf16, #tpu.memory_space<vmem>>, vector<1x32x448xbf16>
    %3 = vector.shape_cast %2 : vector<1x32x448xbf16> to vector<32x448xbf16>
    %c1 = arith.constant 1 : index
    %c0_5 = arith.constant 0 : index
    %c0_6 = arith.constant 0 : index
    %4 = vector.load %arg2[%c1, %c0_5, %c0_6] : memref<3x32x448xbf16, #tpu.memory_space<vmem>>, vector<1x32x448xbf16>
    %5 = vector.shape_cast %4 : vector<1x32x448xbf16> to vector<32x448xbf16>
    %c2 = arith.constant 2 : index
    %c0_7 = arith.constant 0 : index
    %c0_8 = arith.constant 0 : index
    %6 = vector.load %arg2[%c2, %c0_7, %c0_8] : memref<3x32x448xbf16, #tpu.memory_space<vmem>>, vector<1x32x448xbf16>
    %7 = vector.shape_cast %6 : vector<1x32x448xbf16> to vector<32x448xbf16>
    %c0_9 = arith.constant 0 : index
    %c0_10 = arith.constant 0 : index
    %c0_11 = arith.constant 0 : index
    %8 = vector.load %arg4[%c0_9, %c0_10, %c0_11] : memref<3x256x448xbf16, #tpu.memory_space<vmem>>, vector<1x256x448xbf16>
    %9 = vector.shape_cast %8 : vector<1x256x448xbf16> to vector<256x448xbf16>
    %c1_12 = arith.constant 1 : index
    %c0_13 = arith.constant 0 : index
    %c0_14 = arith.constant 0 : index
    %10 = vector.load %arg4[%c1_12, %c0_13, %c0_14] : memref<3x256x448xbf16, #tpu.memory_space<vmem>>, vector<1x256x448xbf16>
    %11 = vector.shape_cast %10 : vector<1x256x448xbf16> to vector<256x448xbf16>
    %c2_15 = arith.constant 2 : index
    %c0_16 = arith.constant 0 : index
    %c0_17 = arith.constant 0 : index
    %12 = vector.load %arg4[%c2_15, %c0_16, %c0_17] : memref<3x256x448xbf16, #tpu.memory_space<vmem>>, vector<1x256x448xbf16>
    %13 = vector.shape_cast %12 : vector<1x256x448xbf16> to vector<256x448xbf16>
    %cst = arith.constant 0.000000e+00 : bf16
    %14 = vector.broadcast %cst : bf16 to vector<16x256xbf16>
    %c0_18 = arith.constant 0 : index
    %c0_19 = arith.constant 0 : index
    %15 = vector.load %arg11[%c0_18, %c0_19] : memref<16x256xbf16, #tpu.memory_space<vmem>>, vector<16x256xbf16>
    tpu.vector_store %arg11[%c0_18, %c0_19], %14 {strides = array<i32>} : memref<16x256xbf16, #tpu.memory_space<vmem>>, vector<16x256xbf16>,
    %cst_20 = arith.constant 0.000000e+00 : f32
    %16 = vector.broadcast %cst_20 : f32 to vector<7x448xf32>
    %17 = vector.extract_strided_slice %1 {offsets = [0, 0], sizes = [7, 32], strides = [1, 1]} : vector<32x32xbf16> to vector<7x32xbf16>
    %cst_21 = arith.constant dense<0.000000e+00> : vector<7x448xf32>
    %18 = tpu.matmul %17, %3, %cst_21 {dimension_numbers = #tpu.dot_dimension_numbers<[1], [0], [0], [1], [0, 0, 1, 1], [], []>} : vector<7x32xbf16>, vector<32x448xbf16>, vector<7x448xf32> -> vector<7x448xf32>
    %19 = arith.addf %16, %18 : vector<7x448xf32>
    %20 = vector.extract_strided_slice %1 {offsets = [8, 0], sizes = [7, 32], strides = [1, 1]} : vector<32x32xbf16> to vector<7x32xbf16>
    %cst_22 = arith.constant dense<0.000000e+00> : vector<7x448xf32>
    %21 = tpu.matmul %20, %5, %cst_22 {dimension_numbers = #tpu.dot_dimension_numbers<[1], [0], [0], [1], [0, 0, 1, 1], [], []>} : vector<7x32xbf16>, vector<32x448xbf16>, vector<7x448xf32> -> vector<7x448xf32>
    %22 = arith.addf %19, %21 : vector<7x448xf32>
    %23 = vector.extract_strided_slice %1 {offsets = [16, 0], sizes = [7, 32], strides = [1, 1]} : vector<32x32xbf16> to vector<7x32xbf16>
    %cst_23 = arith.constant dense<0.000000e+00> : vector<7x448xf32>
    %24 = tpu.matmul %23, %7, %cst_23 {dimension_numbers = #tpu.dot_dimension_numbers<[1], [0], [0], [1], [0, 0, 1, 1], [], []>} : vector<7x32xbf16>, vector<32x448xbf16>, vector<7x448xf32> -> vector<7x448xf32>
    %25 = arith.addf %22, %24 : vector<7x448xf32>
    %cst_24 = arith.constant 0.000000e+00 : f32
    %26 = vector.broadcast %cst_24 : f32 to vector<7x448xf32>
    %27 = vector.extract_strided_slice %1 {offsets = [8, 0], sizes = [7, 32], strides = [1, 1]} : vector<32x32xbf16> to vector<7x32xbf16>
    %cst_25 = arith.constant dense<0.000000e+00> : vector<7x448xf32>
    %28 = tpu.matmul %27, %3, %cst_25 {dimension_numbers = #tpu.dot_dimension_numbers<[1], [0], [0], [1], [0, 0, 1, 1], [], []>} : vector<7x32xbf16>, vector<32x448xbf16>, vector<7x448xf32> -> vector<7x448xf32>
    %29 = arith.addf %26, %28 : vector<7x448xf32>
    %30 = vector.extract_strided_slice %1 {offsets = [16, 0], sizes = [7, 32], strides = [1, 1]} : vector<32x32xbf16> to vector<7x32xbf16>
    %cst_26 = arith.constant dense<0.000000e+00> : vector<7x448xf32>
    %31 = tpu.matmul %30, %5, %cst_26 {dimension_numbers = #tpu.dot_dimension_numbers<[1], [0], [0], [1], [0, 0, 1, 1], [], []>} : vector<7x32xbf16>, vector<32x448xbf16>, vector<7x448xf32> -> vector<7x448xf32>
    %32 = arith.addf %29, %31 : vector<7x448xf32>
    %33 = vector.extract_strided_slice %1 {offsets = [24, 0], sizes = [7, 32], strides = [1, 1]} : vector<32x32xbf16> to vector<7x32xbf16>
    %cst_27 = arith.constant dense<0.000000e+00> : vector<7x448xf32>
    %34 = tpu.matmul %33, %7, %cst_27 {dimension_numbers = #tpu.dot_dimension_numbers<[1], [0], [0], [1], [0, 0, 1, 1], [], []>} : vector<7x32xbf16>, vector<32x448xbf16>, vector<7x448xf32> -> vector<7x448xf32>
    %35 = arith.addf %32, %34 : vector<7x448xf32>
    %36 = arith.maximumf %25, %35 : vector<7x448xf32>
    %37 = vector.extract_strided_slice %36 {offsets = [0, 0], sizes = [7, 224], strides = [1, 1]} : vector<7x448xf32> to vector<7x224xf32>
    %38 = vector.extract_strided_slice %36 {offsets = [0, 224], sizes = [7, 224], strides = [1, 1]} : vector<7x448xf32> to vector<7x224xf32>
    %39 = arith.maximumf %37, %38 : vector<7x224xf32>
    %c0_28 = arith.constant 0 : index
    %c0_29 = arith.constant 0 : index
    %40 = vector.load %arg3[%c0_28, %c0_29] : memref<1x224xf32, #tpu.memory_space<vmem>>, vector<1x224xf32>
    %41 = vector.broadcast %40 : vector<1x224xf32> to vector<7x224xf32>
    %42 = arith.addf %39, %41 : vector<7x224xf32>
    %cst_30 = arith.constant 0.000000e+00 : f32
    %43 = vector.broadcast %cst_30 : f32 to vector<7x224xf32>
    %44 = arith.maximumf %42, %43 : vector<7x224xf32>
    %45 = arith.truncf %44 : vector<7x224xf32> to vector<7x224xbf16>
    %c8 = arith.constant 8 : index
    %c16 = arith.constant 16 : index
    %46 = vector.load %arg11[%c8, %c16] : memref<16x256xbf16, #tpu.memory_space<vmem>>, vector<7x224xbf16>
    tpu.vector_store %arg11[%c8, %c16], %45 {strides = array<i32>} : memref<16x256xbf16, #tpu.memory_space<vmem>>, vector<7x224xbf16>,
    %cst_31 = arith.constant 0.000000e+00 : f32
    %47 = vector.broadcast %cst_31 : f32 to vector<7x448xf32>
    %48 = vector.extract_strided_slice %1 {offsets = [16, 0], sizes = [7, 32], strides = [1, 1]} : vector<32x32xbf16> to vector<7x32xbf16>
    %cst_32 = arith.constant dense<0.000000e+00> : vector<7x448xf32>
    %49 = tpu.matmul %48, %3, %cst_32 {dimension_numbers = #tpu.dot_dimension_numbers<[1], [0], [0], [1], [0, 0, 1, 1], [], []>} : vector<7x32xbf16>, vector<32x448xbf16>, vector<7x448xf32> -> vector<7x448xf32>
    %50 = arith.addf %47, %49 : vector<7x448xf32>
    %51 = vector.extract_strided_slice %1 {offsets = [24, 0], sizes = [7, 32], strides = [1, 1]} : vector<32x32xbf16> to vector<7x32xbf16>
    %cst_33 = arith.constant dense<0.000000e+00> : vector<7x448xf32>
    %52 = tpu.matmul %51, %5, %cst_33 {dimension_numbers = #tpu.dot_dimension_numbers<[1], [0], [0], [1], [0, 0, 1, 1], [], []>} : vector<7x32xbf16>, vector<32x448xbf16>, vector<7x448xf32> -> vector<7x448xf32>
    %53 = arith.addf %50, %52 : vector<7x448xf32>
    %54 = vector.extract_strided_slice %1 {offsets = [1, 0], sizes = [7, 32], strides = [1, 1]} : vector<32x32xbf16> to vector<7x32xbf16>
    %cst_34 = arith.constant dense<0.000000e+00> : vector<7x448xf32>
    %55 = tpu.matmul %54, %7, %cst_34 {dimension_numbers = #tpu.dot_dimension_numbers<[1], [0], [0], [1], [0, 0, 1, 1], [], []>} : vector<7x32xbf16>, vector<32x448xbf16>, vector<7x448xf32> -> vector<7x448xf32>
    %56 = arith.addf %53, %55 : vector<7x448xf32>
    %cst_35 = arith.constant 0.000000e+00 : f32
    %57 = vector.broadcast %cst_35 : f32 to vector<7x448xf32>
    %58 = vector.extract_strided_slice %1 {offsets = [24, 0], sizes = [7, 32], strides = [1, 1]} : vector<32x32xbf16> to vector<7x32xbf16>
    %cst_36 = arith.constant dense<0.000000e+00> : vector<7x448xf32>
    %59 = tpu.matmul %58, %3, %cst_36 {dimension_numbers = #tpu.dot_dimension_numbers<[1], [0], [0], [1], [0, 0, 1, 1], [], []>} : vector<7x32xbf16>, vector<32x448xbf16>, vector<7x448xf32> -> vector<7x448xf32>
    %60 = arith.addf %57, %59 : vector<7x448xf32>
    %61 = vector.extract_strided_slice %1 {offsets = [1, 0], sizes = [7, 32], strides = [1, 1]} : vector<32x32xbf16> to vector<7x32xbf16>
    %cst_37 = arith.constant dense<0.000000e+00> : vector<7x448xf32>
    %62 = tpu.matmul %61, %5, %cst_37 {dimension_numbers = #tpu.dot_dimension_numbers<[1], [0], [0], [1], [0, 0, 1, 1], [], []>} : vector<7x32xbf16>, vector<32x448xbf16>, vector<7x448xf32> -> vector<7x448xf32>
    %63 = arith.addf %60, %62 : vector<7x448xf32>
    %64 = vector.extract_strided_slice %1 {offsets = [9, 0], sizes = [7, 32], strides = [1, 1]} : vector<32x32xbf16> to vector<7x32xbf16>
    %cst_38 = arith.constant dense<0.000000e+00> : vector<7x448xf32>
    %65 = tpu.matmul %64, %7, %cst_38 {dimension_numbers = #tpu.dot_dimension_numbers<[1], [0], [0], [1], [0, 0, 1, 1], [], []>} : vector<7x32xbf16>, vector<32x448xbf16>, vector<7x448xf32> -> vector<7x448xf32>
    %66 = arith.addf %63, %65 : vector<7x448xf32>
    %67 = arith.maximumf %56, %66 : vector<7x448xf32>
    %68 = vector.extract_strided_slice %67 {offsets = [0, 0], sizes = [7, 224], strides = [1, 1]} : vector<7x448xf32> to vector<7x224xf32>
    %69 = vector.extract_strided_slice %67 {offsets = [0, 224], sizes = [7, 224], strides = [1, 1]} : vector<7x448xf32> to vector<7x224xf32>
    %70 = arith.maximumf %68, %69 : vector<7x224xf32>
    %c0_39 = arith.constant 0 : index
    %c0_40 = arith.constant 0 : index
    %71 = vector.load %arg3[%c0_39, %c0_40] : memref<1x224xf32, #tpu.memory_space<vmem>>, vector<1x224xf32>
    %72 = vector.broadcast %71 : vector<1x224xf32> to vector<7x224xf32>
    %73 = arith.addf %70, %72 : vector<7x224xf32>
    %cst_41 = arith.constant 0.000000e+00 : f32
    %74 = vector.broadcast %cst_41 : f32 to vector<7x224xf32>
    %75 = arith.maximumf %73, %74 : vector<7x224xf32>
    %76 = arith.truncf %75 : vector<7x224xf32> to vector<7x224xbf16>
    %c1_42 = arith.constant 1 : index
    %c16_43 = arith.constant 16 : index
    %77 = vector.load %arg11[%c1_42, %c16_43] : memref<16x256xbf16, #tpu.memory_space<vmem>>, vector<7x224xbf16>
    tpu.vector_store %arg11[%c1_42, %c16_43], %76 {strides = array<i32>} : memref<16x256xbf16, #tpu.memory_space<vmem>>, vector<7x224xbf16>,
    %cst_44 = arith.constant 0.000000e+00 : f32
    %78 = vector.broadcast %cst_44 : f32 to vector<7x448xf32>
    %c0_45 = arith.constant 0 : index
    %c0_46 = arith.constant 0 : index
    %79 = vector.load %arg11[%c0_45, %c0_46] : memref<16x256xbf16, #tpu.memory_space<vmem>>, vector<7x256xbf16>
    %cst_47 = arith.constant dense<0.000000e+00> : vector<7x448xf32>
    %80 = tpu.matmul %79, %9, %cst_47 {dimension_numbers = #tpu.dot_dimension_numbers<[1], [0], [0], [1], [0, 0, 1, 1], [], []>} : vector<7x256xbf16>, vector<256x448xbf16>, vector<7x448xf32> -> vector<7x448xf32>
    %81 = arith.addf %78, %80 : vector<7x448xf32>
    %c8_48 = arith.constant 8 : index
    %c0_49 = arith.constant 0 : index
    %82 = vector.load %arg11[%c8_48, %c0_49] : memref<16x256xbf16, #tpu.memory_space<vmem>>, vector<7x256xbf16>
    %cst_50 = arith.constant dense<0.000000e+00> : vector<7x448xf32>
    %83 = tpu.matmul %82, %11, %cst_50 {dimension_numbers = #tpu.dot_dimension_numbers<[1], [0], [0], [1], [0, 0, 1, 1], [], []>} : vector<7x256xbf16>, vector<256x448xbf16>, vector<7x448xf32> -> vector<7x448xf32>
    %84 = arith.addf %81, %83 : vector<7x448xf32>
    %c1_51 = arith.constant 1 : index
    %c0_52 = arith.constant 0 : index
    %85 = vector.load %arg11[%c1_51, %c0_52] : memref<16x256xbf16, #tpu.memory_space<vmem>>, vector<7x256xbf16>
    %cst_53 = arith.constant dense<0.000000e+00> : vector<7x448xf32>
    %86 = tpu.matmul %85, %13, %cst_53 {dimension_numbers = #tpu.dot_dimension_numbers<[1], [0], [0], [1], [0, 0, 1, 1], [], []>} : vector<7x256xbf16>, vector<256x448xbf16>, vector<7x448xf32> -> vector<7x448xf32>
    %87 = arith.addf %84, %86 : vector<7x448xf32>
    %cst_54 = arith.constant 0.000000e+00 : f32
    %88 = vector.broadcast %cst_54 : f32 to vector<7x448xf32>
    %c8_55 = arith.constant 8 : index
    %c0_56 = arith.constant 0 : index
    %89 = vector.load %arg11[%c8_55, %c0_56] : memref<16x256xbf16, #tpu.memory_space<vmem>>, vector<7x256xbf16>
    %cst_57 = arith.constant dense<0.000000e+00> : vector<7x448xf32>
    %90 = tpu.matmul %89, %9, %cst_57 {dimension_numbers = #tpu.dot_dimension_numbers<[1], [0], [0], [1], [0, 0, 1, 1], [], []>} : vector<7x256xbf16>, vector<256x448xbf16>, vector<7x448xf32> -> vector<7x448xf32>
    %91 = arith.addf %88, %90 : vector<7x448xf32>
    %c1_58 = arith.constant 1 : index
    %c0_59 = arith.constant 0 : index
    %92 = vector.load %arg11[%c1_58, %c0_59] : memref<16x256xbf16, #tpu.memory_space<vmem>>, vector<7x256xbf16>
    %cst_60 = arith.constant dense<0.000000e+00> : vector<7x448xf32>
    %93 = tpu.matmul %92, %11, %cst_60 {dimension_numbers = #tpu.dot_dimension_numbers<[1], [0], [0], [1], [0, 0, 1, 1], [], []>} : vector<7x256xbf16>, vector<256x448xbf16>, vector<7x448xf32> -> vector<7x448xf32>
    %94 = arith.addf %91, %93 : vector<7x448xf32>
    %c9 = arith.constant 9 : index
    %c0_61 = arith.constant 0 : index
    %95 = vector.load %arg11[%c9, %c0_61] : memref<16x256xbf16, #tpu.memory_space<vmem>>, vector<7x256xbf16>
    %cst_62 = arith.constant dense<0.000000e+00> : vector<7x448xf32>
    %96 = tpu.matmul %95, %13, %cst_62 {dimension_numbers = #tpu.dot_dimension_numbers<[1], [0], [0], [1], [0, 0, 1, 1], [], []>} : vector<7x256xbf16>, vector<256x448xbf16>, vector<7x448xf32> -> vector<7x448xf32>
    %97 = arith.addf %94, %96 : vector<7x448xf32>
    %98 = arith.maximumf %87, %97 : vector<7x448xf32>
    %99 = vector.extract_strided_slice %98 {offsets = [0, 0], sizes = [7, 224], strides = [1, 1]} : vector<7x448xf32> to vector<7x224xf32>
    %100 = vector.extract_strided_slice %98 {offsets = [0, 224], sizes = [7, 224], strides = [1, 1]} : vector<7x448xf32> to vector<7x224xf32>
    %101 = arith.maximumf %99, %100 : vector<7x224xf32>
    %c0_63 = arith.constant 0 : index
    %c0_64 = arith.constant 0 : index
    %102 = vector.load %arg5[%c0_63, %c0_64] : memref<1x224xf32, #tpu.memory_space<vmem>>, vector<1x224xf32>
    %103 = vector.broadcast %102 : vector<1x224xf32> to vector<7x224xf32>
    %104 = arith.addf %101, %103 : vector<7x224xf32>
    %cst_65 = arith.constant 0.000000e+00 : f32
    %105 = vector.broadcast %cst_65 : f32 to vector<7x224xf32>
    %106 = arith.maximumf %104, %105 : vector<7x224xf32>
    %107 = arith.truncf %106 : vector<7x224xf32> to vector<7x224xbf16>
    %cst_66 = arith.constant 0.000000e+00 : f32
    %108 = vector.broadcast %cst_66 : f32 to vector<1x128xf32>
    %109 = vector.extract_strided_slice %107 {offsets = [0, 0], sizes = [1, 224], strides = [1, 1]} : vector<7x224xbf16> to vector<1x224xbf16>
    %c0_67 = arith.constant 0 : index
    %c0_68 = arith.constant 0 : index
    %110 = vector.load %arg6[%c0_67, %c0_68] : memref<1568x128xbf16, #tpu.memory_space<vmem>>, vector<224x128xbf16>
    %cst_69 = arith.constant dense<0.000000e+00> : vector<1x128xf32>
    %111 = tpu.matmul %109, %110, %cst_69 {dimension_numbers = #tpu.dot_dimension_numbers<[1], [0], [0], [1], [0, 0, 1, 1], [], []>} : vector<1x224xbf16>, vector<224x128xbf16>, vector<1x128xf32> -> vector<1x128xf32>
    %112 = arith.addf %108, %111 : vector<1x128xf32>
    %113 = vector.extract_strided_slice %107 {offsets = [1, 0], sizes = [1, 224], strides = [1, 1]} : vector<7x224xbf16> to vector<1x224xbf16>
    %c224 = arith.constant 224 : index
    %c0_70 = arith.constant 0 : index
    %114 = vector.load %arg6[%c224, %c0_70] : memref<1568x128xbf16, #tpu.memory_space<vmem>>, vector<224x128xbf16>
    %cst_71 = arith.constant dense<0.000000e+00> : vector<1x128xf32>
    %115 = tpu.matmul %113, %114, %cst_71 {dimension_numbers = #tpu.dot_dimension_numbers<[1], [0], [0], [1], [0, 0, 1, 1], [], []>} : vector<1x224xbf16>, vector<224x128xbf16>, vector<1x128xf32> -> vector<1x128xf32>
    %116 = arith.addf %112, %115 : vector<1x128xf32>
    %117 = vector.extract_strided_slice %107 {offsets = [2, 0], sizes = [1, 224], strides = [1, 1]} : vector<7x224xbf16> to vector<1x224xbf16>
    %c448 = arith.constant 448 : index
    %c0_72 = arith.constant 0 : index
    %118 = vector.load %arg6[%c448, %c0_72] : memref<1568x128xbf16, #tpu.memory_space<vmem>>, vector<224x128xbf16>
    %cst_73 = arith.constant dense<0.000000e+00> : vector<1x128xf32>
    %119 = tpu.matmul %117, %118, %cst_73 {dimension_numbers = #tpu.dot_dimension_numbers<[1], [0], [0], [1], [0, 0, 1, 1], [], []>} : vector<1x224xbf16>, vector<224x128xbf16>, vector<1x128xf32> -> vector<1x128xf32>
    %120 = arith.addf %116, %119 : vector<1x128xf32>
    %121 = vector.extract_strided_slice %107 {offsets = [3, 0], sizes = [1, 224], strides = [1, 1]} : vector<7x224xbf16> to vector<1x224xbf16>
    %c672 = arith.constant 672 : index
    %c0_74 = arith.constant 0 : index
    %122 = vector.load %arg6[%c672, %c0_74] : memref<1568x128xbf16, #tpu.memory_space<vmem>>, vector<224x128xbf16>
    %cst_75 = arith.constant dense<0.000000e+00> : vector<1x128xf32>
    %123 = tpu.matmul %121, %122, %cst_75 {dimension_numbers = #tpu.dot_dimension_numbers<[1], [0], [0], [1], [0, 0, 1, 1], [], []>} : vector<1x224xbf16>, vector<224x128xbf16>, vector<1x128xf32> -> vector<1x128xf32>
    %124 = arith.addf %120, %123 : vector<1x128xf32>
    %125 = vector.extract_strided_slice %107 {offsets = [4, 0], sizes = [1, 224], strides = [1, 1]} : vector<7x224xbf16> to vector<1x224xbf16>
    %c896 = arith.constant 896 : index
    %c0_76 = arith.constant 0 : index
    %126 = vector.load %arg6[%c896, %c0_76] : memref<1568x128xbf16, #tpu.memory_space<vmem>>, vector<224x128xbf16>
    %cst_77 = arith.constant dense<0.000000e+00> : vector<1x128xf32>
    %127 = tpu.matmul %125, %126, %cst_77 {dimension_numbers = #tpu.dot_dimension_numbers<[1], [0], [0], [1], [0, 0, 1, 1], [], []>} : vector<1x224xbf16>, vector<224x128xbf16>, vector<1x128xf32> -> vector<1x128xf32>
    %128 = arith.addf %124, %127 : vector<1x128xf32>
    %129 = vector.extract_strided_slice %107 {offsets = [5, 0], sizes = [1, 224], strides = [1, 1]} : vector<7x224xbf16> to vector<1x224xbf16>
    %c1120 = arith.constant 1120 : index
    %c0_78 = arith.constant 0 : index
    %130 = vector.load %arg6[%c1120, %c0_78] : memref<1568x128xbf16, #tpu.memory_space<vmem>>, vector<224x128xbf16>
    %cst_79 = arith.constant dense<0.000000e+00> : vector<1x128xf32>
    %131 = tpu.matmul %129, %130, %cst_79 {dimension_numbers = #tpu.dot_dimension_numbers<[1], [0], [0], [1], [0, 0, 1, 1], [], []>} : vector<1x224xbf16>, vector<224x128xbf16>, vector<1x128xf32> -> vector<1x128xf32>
    %132 = arith.addf %128, %131 : vector<1x128xf32>
    %133 = vector.extract_strided_slice %107 {offsets = [6, 0], sizes = [1, 224], strides = [1, 1]} : vector<7x224xbf16> to vector<1x224xbf16>
    %c1344 = arith.constant 1344 : index
    %c0_80 = arith.constant 0 : index
    %134 = vector.load %arg6[%c1344, %c0_80] : memref<1568x128xbf16, #tpu.memory_space<vmem>>, vector<224x128xbf16>
    %cst_81 = arith.constant dense<0.000000e+00> : vector<1x128xf32>
    %135 = tpu.matmul %133, %134, %cst_81 {dimension_numbers = #tpu.dot_dimension_numbers<[1], [0], [0], [1], [0, 0, 1, 1], [], []>} : vector<1x224xbf16>, vector<224x128xbf16>, vector<1x128xf32> -> vector<1x128xf32>
    %136 = arith.addf %132, %135 : vector<1x128xf32>
    %c0_82 = arith.constant 0 : index
    %c0_83 = arith.constant 0 : index
    %137 = vector.load %arg7[%c0_82, %c0_83] : memref<1x128xf32, #tpu.memory_space<vmem>>, vector<1x128xf32>
    %138 = arith.addf %136, %137 : vector<1x128xf32>
    %cst_84 = arith.constant 0.000000e+00 : f32
    %139 = vector.broadcast %cst_84 : f32 to vector<1x128xf32>
    %140 = arith.maximumf %138, %139 : vector<1x128xf32>
    %141 = arith.truncf %140 : vector<1x128xf32> to vector<1x128xbf16>
    %c0_85 = arith.constant 0 : index
    %c0_86 = arith.constant 0 : index
    %142 = vector.load %arg8[%c0_85, %c0_86] : memref<128x10xbf16, #tpu.memory_space<vmem>>, vector<128x10xbf16>
    %cst_87 = arith.constant dense<0.000000e+00> : vector<1x10xf32>
    %143 = tpu.matmul %141, %142, %cst_87 {dimension_numbers = #tpu.dot_dimension_numbers<[1], [0], [0], [1], [0, 0, 1, 1], [], []>} : vector<1x128xbf16>, vector<128x10xbf16>, vector<1x10xf32> -> vector<1x10xf32>
    %c0_88 = arith.constant 0 : index
    %c0_89 = arith.constant 0 : index
    %144 = vector.load %arg9[%c0_88, %c0_89] : memref<1x10xf32, #tpu.memory_space<vmem>>, vector<1x10xf32>
    %145 = arith.addf %143, %144 : vector<1x10xf32>
    %c0_90 = arith.constant 0 : index
    %c0_91 = arith.constant 0 : index
    %c0_92 = arith.constant 0 : index
    %146 = vector.load %arg10[%c0_90, %c0_91, %c0_92] : memref<1x1x10xf32, #tpu.memory_space<vmem>>, vector<1x1x10xf32>
    %147 = vector.shape_cast %146 : vector<1x1x10xf32> to vector<1x10xf32>
    %148 = vector.shape_cast %145 : vector<1x10xf32> to vector<1x1x10xf32>
    tpu.vector_store %arg10[%c0_90, %c0_91, %c0_92], %148 {strides = array<i32>} : memref<1x1x10xf32, #tpu.memory_space<vmem>>, vector<1x1x10xf32>,
    return
  }
  func.func @transform_0(%arg0: i32) -> (i32, i32, i32) {
    %c0_i32 = arith.constant 0 : i32
    %c0_i32_0 = arith.constant 0 : i32
    %c0_i32_1 = arith.constant 0 : i32
    return %arg0, %c0_i32, %c0_i32_0 : i32, i32, i32
  }
  func.func @transform_1(%arg0: i32) -> (i32, i32, i32) {
    %c0_i32 = arith.constant 0 : i32
    %c0_i32_0 = arith.constant 0 : i32
    %c0_i32_1 = arith.constant 0 : i32
    %c0_i32_2 = arith.constant 0 : i32
    return %c0_i32, %c0_i32_0, %c0_i32_1 : i32, i32, i32
  }
  func.func @transform_2(%arg0: i32) -> (i32, i32) {
    %c0_i32 = arith.constant 0 : i32
    %c0_i32_0 = arith.constant 0 : i32
    %c0_i32_1 = arith.constant 0 : i32
    return %c0_i32, %c0_i32_0 : i32, i32
  }
  func.func @transform_3(%arg0: i32) -> (i32, i32, i32) {
    %c0_i32 = arith.constant 0 : i32
    %c0_i32_0 = arith.constant 0 : i32
    %c0_i32_1 = arith.constant 0 : i32
    %c0_i32_2 = arith.constant 0 : i32
    return %c0_i32, %c0_i32_0, %c0_i32_1 : i32, i32, i32
  }
  func.func @transform_4(%arg0: i32) -> (i32, i32) {
    %c0_i32 = arith.constant 0 : i32
    %c0_i32_0 = arith.constant 0 : i32
    %c0_i32_1 = arith.constant 0 : i32
    return %c0_i32, %c0_i32_0 : i32, i32
  }
  func.func @transform_5(%arg0: i32) -> (i32, i32) {
    %c0_i32 = arith.constant 0 : i32
    %c0_i32_0 = arith.constant 0 : i32
    %c0_i32_1 = arith.constant 0 : i32
    return %c0_i32, %c0_i32_0 : i32, i32
  }
  func.func @transform_6(%arg0: i32) -> (i32, i32) {
    %c0_i32 = arith.constant 0 : i32
    %c0_i32_0 = arith.constant 0 : i32
    %c0_i32_1 = arith.constant 0 : i32
    return %c0_i32, %c0_i32_0 : i32, i32
  }
  func.func @transform_7(%arg0: i32) -> (i32, i32) {
    %c0_i32 = arith.constant 0 : i32
    %c0_i32_0 = arith.constant 0 : i32
    %c0_i32_1 = arith.constant 0 : i32
    return %c0_i32, %c0_i32_0 : i32, i32
  }
  func.func @transform_8(%arg0: i32) -> (i32, i32) {
    %c0_i32 = arith.constant 0 : i32
    %c0_i32_0 = arith.constant 0 : i32
    %c0_i32_1 = arith.constant 0 : i32
    return %c0_i32, %c0_i32_0 : i32, i32
  }
  func.func @transform_9(%arg0: i32) -> (i32, i32, i32) {
    %c0_i32 = arith.constant 0 : i32
    %c0_i32_0 = arith.constant 0 : i32
    %c0_i32_1 = arith.constant 0 : i32
    return %arg0, %c0_i32, %c0_i32_0 : i32, i32, i32
  }
}

</mosaic_0001>

<llo_original>
// kernel: cnn_forward.1
$region0: #{cnn_forward.1}
  #allocation0 [shape = 'u32[]', space=smem, size = 0x4, offset = 0x4, fixed_abs, tag = 'smem constant byte address 0x4 - core index']
  #allocation1 [shape = 'u32[144,128]{1,0:T(1,128)}', space=vmem, size = 0x12000, scoped, tag = 'internal scratch']
  #allocation2 [shape = 'bf16[16,256]{1,0:T(8,128)(2,1)}', space=vmem, size = 0x2000, scoped, tag = 'scratch operand']
  %s0 = inlined_call_operand.vmem [shape: bf16[2,32,32], index: 0, kind: input, shape index: {}]
  %s1 = inlined_call_operand.vmem [shape: bf16[3,32,448], index: 1, kind: input, shape index: {}]
  %s2 = inlined_call_operand.vmem [shape: f32[1,224], index: 2, kind: input, shape index: {}]
  %s3 = inlined_call_operand.vmem [shape: bf16[3,256,448], index: 3, kind: input, shape index: {}]
  %s4 = inlined_call_operand.vmem [shape: f32[1,224], index: 4, kind: input, shape index: {}]
  %s5 = inlined_call_operand.vmem [shape: bf16[1568,128], index: 5, kind: input, shape index: {}]
  %s6 = inlined_call_operand.vmem [shape: f32[1,128], index: 6, kind: input, shape index: {}]
  %s7 = inlined_call_operand.vmem [shape: bf16[128,10], index: 7, kind: input, shape index: {}]
  %s8 = inlined_call_operand.vmem [shape: f32[1,10], index: 8, kind: input, shape index: {}]
  %s9 = inlined_call_operand.hbm [shape: f32[2,1,10], index: 9, kind: output, shape index: {}]
  %s10 = sld [smem:[#allocation0]]
  $region69: #{cnn_forward.1} parent=0
    _
  %s12 = ssub.s32 1, %s10
  %s13 = scalar_select 0, %s12, %s10
  $region1: #{cnn_forward.1} parent=0
    #allocation3 [shape = 'u8[1024]{0}', space=vmem, size = 0x400, scoped, tag = 'output window, operand 0']
    #allocation4 [shape = 's32[2]{0}', space=sflag, size = 0x8, scoped, tag = 'scoped memory for cnn_forward.1']
    %14 = vsyncpa [#allocation4], 0
    %s15 = scalar_lea.sflag [#allocation4], 1
    %16 = vsyncpa %s15, 0
    loop: start=0, step=1, limit=4
    $region2: #{cnn_forward.1} parent=1 // loop_pre_header
      _
    $region3: #{cnn_forward.1} parent=1 // loop_header
      %s18 = sphi 0, %s22
      %p19 = scmp.ge.s32.totalorder %s18, 4
      %s28 = sphi 0, %s30
      %s31 = sphi 0, %s28
      %s32 = sphi 0, %s31
      %s48 = sphi 0, %s32
      %s52 = sphi 0, %s52
      %s54 = sphi 0, %s52
      %s55 = sphi 0, %s54
      %s69 = sphi 0, %s55
      %s73 = sphi 0, %s73
      %s75 = sphi 0, %s73
      %s76 = sphi 0, %s75
      %s90 = sphi 0, %s76
      %s94 = sphi 0, %s94
      %s96 = sphi 0, %s94
      %s97 = sphi 0, %s96
      %s111 = sphi 0, %s97
      %s115 = sphi 0, %s115
      %s117 = sphi 0, %s115
      %s118 = sphi 0, %s117
      %s132 = sphi 0, %s118
      %s136 = sphi 0, %s136
      %s138 = sphi 0, %s136
      %s139 = sphi 0, %s138
      %s153 = sphi 0, %s139
      %s157 = sphi 0, %s157
      %s159 = sphi 0, %s157
      %s160 = sphi 0, %s159
      %s174 = sphi 0, %s160
      %s178 = sphi 0, %s178
      %s180 = sphi 0, %s178
      %s181 = sphi 0, %s180
      %s195 = sphi 0, %s181
      %s199 = sphi 0, %s199
      %s201 = sphi 0, %s199
      %s202 = sphi 0, %s201
      %s216 = sphi 0, %s202
      %s222 = sphi 0, %s224
      %s225 = sphi 0, %s222
      %s226 = sphi 0, %s225
      %s242 = sphi 0, %s226
    $region4: #{cnn_forward.1} parent=1 // loop_header_branch
      %21 = sbr.rel (%p19) target = $region8
    $region5: #{cnn_forward.1} parent=1 // loop_body
      %s23 = ssub.s32 %s18, 1
      %s24 = ssub.s32 %s18, 2
      %s25 = sadd.s32 %s18, 1
      %s26 = ssub.s32 %s18, %s25
      %p27 = scmp.eq.s32.totalorder %s26, 0
      %s29 = sadd.s32 %s28, 1
      %s30 = scalar_select %p27, %s28, %s29
      %p33 = pneg %p27
      %p34 = scmp.eq.s32.totalorder %s18, 1
      %p35 = por %p33, %p34
      %p36 = scmp.ne.s32.totalorder %s28, %s31
      %p37 = scmp.eq.s32.totalorder %s18, 0
      %p38 = por %p36, %p37
      %p39 = scmp.ne.s32.totalorder %s28, %s31
      %p40 = scmp.eq.s32.totalorder %s23, 1
      %p41 = por %p39, %p40
      %p42 = scmp.ne.s32.totalorder %s31, %s32
      %p43 = scmp.eq.s32.totalorder %s23, 0
      %p44 = por %p42, %p43
      %p45 = scmp.ne.s32.totalorder %s31, %s32
      %p46 = scmp.eq.s32.totalorder %s24, 1
      %p47 = por %p45, %p46
      %p49 = scmp.ne.s32.totalorder %s32, %s48
      %p50 = scmp.eq.s32.totalorder %s24, 0
      %p51 = por %p49, %p50
      %s53 = sadd.s32 %s52, 1
      %p56 = scmp.eq.s32.totalorder %s18, 1
      %p57 = scmp.ne.s32.totalorder %s52, %s54
      %p58 = scmp.eq.s32.totalorder %s18, 0
      %p59 = por %p57, %p58
      %p60 = scmp.ne.s32.totalorder %s52, %s54
      %p61 = scmp.eq.s32.totalorder %s23, 1
      %p62 = por %p60, %p61
      %p63 = scmp.ne.s32.totalorder %s54, %s55
      %p64 = scmp.eq.s32.totalorder %s23, 0
      %p65 = por %p63, %p64
      %p66 = scmp.ne.s32.totalorder %s54, %s55
      %p67 = scmp.eq.s32.totalorder %s24, 1
      %p68 = por %p66, %p67
      %p70 = scmp.ne.s32.totalorder %s55, %s69
      %p71 = scmp.eq.s32.totalorder %s24, 0
      %p72 = por %p70, %p71
      %s74 = sadd.s32 %s73, 1
      %p77 = scmp.eq.s32.totalorder %s18, 1
      %p78 = scmp.ne.s32.totalorder %s73, %s75
      %p79 = scmp.eq.s32.totalorder %s18, 0
      %p80 = por %p78, %p79
      %p81 = scmp.ne.s32.totalorder %s73, %s75
      %p82 = scmp.eq.s32.totalorder %s23, 1
      %p83 = por %p81, %p82
      %p84 = scmp.ne.s32.totalorder %s75, %s76
      %p85 = scmp.eq.s32.totalorder %s23, 0
      %p86 = por %p84, %p85
      %p87 = scmp.ne.s32.totalorder %s75, %s76
      %p88 = scmp.eq.s32.totalorder %s24, 1
      %p89 = por %p87, %p88
      %p91 = scmp.ne.s32.totalorder %s76, %s90
      %p92 = scmp.eq.s32.totalorder %s24, 0
      %p93 = por %p91, %p92
      %s95 = sadd.s32 %s94, 1
      %p98 = scmp.eq.s32.totalorder %s18, 1
      %p99 = scmp.ne.s32.totalorder %s94, %s96
      %p100 = scmp.eq.s32.totalorder %s18, 0
      %p101 = por %p99, %p100
      %p102 = scmp.ne.s32.totalorder %s94, %s96
      %p103 = scmp.eq.s32.totalorder %s23, 1
      %p104 = por %p102, %p103
      %p105 = scmp.ne.s32.totalorder %s96, %s97
      %p106 = scmp.eq.s32.totalorder %s23, 0
      %p107 = por %p105, %p106
      %p108 = scmp.ne.s32.totalorder %s96, %s97
      %p109 = scmp.eq.s32.totalorder %s24, 1
      %p110 = por %p108, %p109
      %p112 = scmp.ne.s32.totalorder %s97, %s111
      %p113 = scmp.eq.s32.totalorder %s24, 0
      %p114 = por %p112, %p113
      %s116 = sadd.s32 %s115, 1
      %p119 = scmp.eq.s32.totalorder %s18, 1
      %p120 = scmp.ne.s32.totalorder %s115, %s117
      %p121 = scmp.eq.s32.totalorder %s18, 0
      %p122 = por %p120, %p121
      %p123 = scmp.ne.s32.totalorder %s115, %s117
      %p124 = scmp.eq.s32.totalorder %s23, 1
      %p125 = por %p123, %p124
      %p126 = scmp.ne.s32.totalorder %s117, %s118
      %p127 = scmp.eq.s32.totalorder %s23, 0
      %p128 = por %p126, %p127
      %p129 = scmp.ne.s32.totalorder %s117, %s118
      %p130 = scmp.eq.s32.totalorder %s24, 1
      %p131 = por %p129, %p130
      %p133 = scmp.ne.s32.totalorder %s118, %s132
      %p134 = scmp.eq.s32.totalorder %s24, 0
      %p135 = por %p133, %p134
      %s137 = sadd.s32 %s136, 1
      %p140 = scmp.eq.s32.totalorder %s18, 1
      %p141 = scmp.ne.s32.totalorder %s136, %s138
      %p142 = scmp.eq.s32.totalorder %s18, 0
      %p143 = por %p141, %p142
      %p144 = scmp.ne.s32.totalorder %s136, %s138
      %p145 = scmp.eq.s32.totalorder %s23, 1
      %p146 = por %p144, %p145
      %p147 = scmp.ne.s32.totalorder %s138, %s139
      %p148 = scmp.eq.s32.totalorder %s23, 0
      %p149 = por %p147, %p148
      %p150 = scmp.ne.s32.totalorder %s138, %s139
      %p151 = scmp.eq.s32.totalorder %s24, 1
      %p152 = por %p150, %p151
      %p154 = scmp.ne.s32.totalorder %s139, %s153
      %p155 = scmp.eq.s32.totalorder %s24, 0
      %p156 = por %p154, %p155
      %s158 = sadd.s32 %s157, 1
      %p161 = scmp.eq.s32.totalorder %s18, 1
      %p162 = scmp.ne.s32.totalorder %s157, %s159
      %p163 = scmp.eq.s32.totalorder %s18, 0
      %p164 = por %p162, %p163
      %p165 = scmp.ne.s32.totalorder %s157, %s159
      %p166 = scmp.eq.s32.totalorder %s23, 1
      %p167 = por %p165, %p166
      %p168 = scmp.ne.s32.totalorder %s159, %s160
      %p169 = scmp.eq.s32.totalorder %s23, 0
      %p170 = por %p168, %p169
      %p171 = scmp.ne.s32.totalorder %s159, %s160
      %p172 = scmp.eq.s32.totalorder %s24, 1
      %p173 = por %p171, %p172
      %p175 = scmp.ne.s32.totalorder %s160, %s174
      %p176 = scmp.eq.s32.totalorder %s24, 0
      %p177 = por %p175, %p176
      %s179 = sadd.s32 %s178, 1
      %p182 = scmp.eq.s32.totalorder %s18, 1
      %p183 = scmp.ne.s32.totalorder %s178, %s180
      %p184 = scmp.eq.s32.totalorder %s18, 0
      %p185 = por %p183, %p184
      %p186 = scmp.ne.s32.totalorder %s178, %s180
      %p187 = scmp.eq.s32.totalorder %s23, 1
      %p188 = por %p186, %p187
      %p189 = scmp.ne.s32.totalorder %s180, %s181
      %p190 = scmp.eq.s32.totalorder %s23, 0
      %p191 = por %p189, %p190
      %p192 = scmp.ne.s32.totalorder %s180, %s181
      %p193 = scmp.eq.s32.totalorder %s24, 1
      %p194 = por %p192, %p193
      %p196 = scmp.ne.s32.totalorder %s181, %s195
      %p197 = scmp.eq.s32.totalorder %s24, 0
      %p198 = por %p196, %p197
      %s200 = sadd.s32 %s199, 1
      %p203 = scmp.eq.s32.totalorder %s18, 1
      %p204 = scmp.ne.s32.totalorder %s199, %s201
      %p205 = scmp.eq.s32.totalorder %s18, 0
      %p206 = por %p204, %p205
      %p207 = scmp.ne.s32.totalorder %s199, %s201
      %p208 = scmp.eq.s32.totalorder %s23, 1
      %p209 = por %p207, %p208
      %p210 = scmp.ne.s32.totalorder %s201, %s202
      %p211 = scmp.eq.s32.totalorder %s23, 0
      %p212 = por %p210, %p211
      %p213 = scmp.ne.s32.totalorder %s201, %s202
      %p214 = scmp.eq.s32.totalorder %s24, 1
      %p215 = por %p213, %p214
      %p217 = scmp.ne.s32.totalorder %s202, %s216
      %p218 = scmp.eq.s32.totalorder %s24, 0
      %p219 = por %p217, %p218
      %s220 = ssub.s32 %s18, %s25
      %p221 = scmp.eq.s32.totalorder %s220, 0
      %s223 = sadd.s32 %s222, 1
      %s224 = scalar_select %p221, %s222, %s223
      %p227 = pneg %p221
      %p228 = scmp.eq.s32.totalorder %s18, 1
      %p229 = por %p227, %p228
      %p230 = scmp.ne.s32.totalorder %s222, %s225
      %p231 = scmp.eq.s32.totalorder %s18, 0
      %p232 = por %p230, %p231
      %p233 = scmp.ne.s32.totalorder %s222, %s225
      %p234 = scmp.eq.s32.totalorder %s23, 1
      %p235 = por %p233, %p234
      %p236 = scmp.ne.s32.totalorder %s225, %s226
      %p237 = scmp.eq.s32.totalorder %s23, 0
      %p238 = por %p236, %p237
      %p239 = scmp.ne.s32.totalorder %s225, %s226
      %p240 = scmp.eq.s32.totalorder %s24, 1
      %p241 = por %p239, %p240
      %p243 = scmp.ne.s32.totalorder %s226, %s242
      %p244 = scmp.eq.s32.totalorder %s24, 0
      %p245 = por %p243, %p244
      %p246 = scmp.le.s32.totalorder 1, %s18
      %p247 = scmp.lt.s32.totalorder %s18, 3
      %p248 = pnand %p246, %p247
      %p249 = pneg %p248
      // Predicated region
      $region9: #{cnn_forward.1} parent=5 // pred_check
        _
      $region10: #{cnn_forward.1} parent=5 // pred_check_branch
        %251 = sbr.rel (%p248) target = $region12
      $region11: #{cnn_forward.1} parent=5 // pred_region
        %s252 = ssub.s32 %s18, 1
        // Predicated region
        $region13: #{cnn_forward.1} parent=11 // pred_check
          %p253 = pneg %p65
        $region14: #{cnn_forward.1} parent=11 // pred_check_branch
          %255 = sbr.rel (%p253) target = $region16
        $region15: #{cnn_forward.1} parent=11 // pred_region
          _
        $region16: #{cnn_forward.1} parent=11 // pred_fallthru
          _
        // Predicated region
        $region17: #{cnn_forward.1} parent=11 // pred_check
          %p256 = pneg %p86
        $region18: #{cnn_forward.1} parent=11 // pred_check_branch
          %258 = sbr.rel (%p256) target = $region20
        $region19: #{cnn_forward.1} parent=11 // pred_region
          _
        $region20: #{cnn_forward.1} parent=11 // pred_fallthru
          _
        // Predicated region
        $region21: #{cnn_forward.1} parent=11 // pred_check
          %p259 = pneg %p107
        $region22: #{cnn_forward.1} parent=11 // pred_check_branch
          %261 = sbr.rel (%p259) target = $region24
        $region23: #{cnn_forward.1} parent=11 // pred_region
          _
        $region24: #{cnn_forward.1} parent=11 // pred_fallthru
          _
        // Predicated region
        $region25: #{cnn_forward.1} parent=11 // pred_check
          %p262 = pneg %p128
        $region26: #{cnn_forward.1} parent=11 // pred_check_branch
          %264 = sbr.rel (%p262) target = $region28
        $region27: #{cnn_forward.1} parent=11 // pred_region
          _
        $region28: #{cnn_forward.1} parent=11 // pred_fallthru
          _
        // Predicated region
        $region29: #{cnn_forward.1} parent=11 // pred_check
          %p265 = pneg %p149
        $region30: #{cnn_forward.1} parent=11 // pred_check_branch
          %267 = sbr.rel (%p265) target = $region32
        $region31: #{cnn_forward.1} parent=11 // pred_region
          _
        $region32: #{cnn_forward.1} parent=11 // pred_fallthru
          _
        // Predicated region
        $region33: #{cnn_forward.1} parent=11 // pred_check
          %p268 = pneg %p170
        $region34: #{cnn_forward.1} parent=11 // pred_check_branch
          %270 = sbr.rel (%p268) target = $region36
        $region35: #{cnn_forward.1} parent=11 // pred_region
          _
        $region36: #{cnn_forward.1} parent=11 // pred_fallthru
          _
        // Predicated region
        $region37: #{cnn_forward.1} parent=11 // pred_check
          %p271 = pneg %p191
        $region38: #{cnn_forward.1} parent=11 // pred_check_branch
          %273 = sbr.rel (%p271) target = $region40
        $region39: #{cnn_forward.1} parent=11 // pred_region
          _
        $region40: #{cnn_forward.1} parent=11 // pred_fallthru
          _
        // Predicated region
        $region41: #{cnn_forward.1} parent=11 // pred_check
          %p274 = pneg %p212
        $region42: #{cnn_forward.1} parent=11 // pred_check_branch
          %276 = sbr.rel (%p274) target = $region44
        $region43: #{cnn_forward.1} parent=11 // pred_region
          _
        $region44: #{cnn_forward.1} parent=11 // pred_fallthru
          _
      $region12: #{cnn_forward.1} parent=5 // pred_fallthru
        _
      %p277 = scmp.lt.s32.totalorder %s18, 2
      // Predicated region
      $region45: #{cnn_forward.1} parent=5 // pred_check
        %p278 = pneg %p277
      $region46: #{cnn_forward.1} parent=5 // pred_check_branch
        %280 = sbr.rel (%p278) target = $region48
      $region47: #{cnn_forward.1} parent=5 // pred_region
        // Predicated region
        $region49: #{cnn_forward.1} parent=47 // pred_check
          %p281 = pneg %p38
        $region50: #{cnn_forward.1} parent=47 // pred_check_branch
          %283 = sbr.rel (%p281) target = $region52
        $region51: #{cnn_forward.1} parent=47 // pred_region
          %p284 = scmp.lt.s32.totalorder %s18, 1
          %s285 = scalar_select %p284, %s18, 1
          %s286 = smul.addr %s285, 4
          %s287 = smul.addr %s286, 4
          %s288 = scalar_lea.vmem %s0, %s287
        $region52: #{cnn_forward.1} parent=47 // pred_fallthru
          _
      $region48: #{cnn_forward.1} parent=5 // pred_fallthru
        _
      %p289 = scmp.le.s32.totalorder 1, %s18
      %p290 = scmp.lt.s32.totalorder %s18, 3
      %p291 = pnand %p289, %p290
      %p292 = pneg %p291
      // Predicated region
      $region53: #{cnn_forward.1} parent=5 // pred_check
        _
      $region54: #{cnn_forward.1} parent=5 // pred_check_branch
        %294 = sbr.rel (%p291) target = $region56
      $region55: #{cnn_forward.1} parent=5 // pred_region
        %s295 = ssub.s32 %s18, 1
        %p296 = scmp.lt.s32.totalorder %s23, 1
        %s297 = scalar_select %p296, %s23, 1
        %s298 = smul.addr %s297, 4
        %s299 = smul.addr %s298, 4
        %s300 = scalar_lea.vmem %s0, %s299
        %p301 = pneg %p44
        %p302 = pneg %p41
        %p303 = pneg %p65
        %p304 = pneg %p62
        %p305 = pneg %p86
        %p306 = pneg %p83
        %p307 = pneg %p107
        %p308 = pneg %p104
        %p309 = pneg %p128
        %p310 = pneg %p125
        %p311 = pneg %p149
        %p312 = pneg %p146
        %p313 = pneg %p170
        %p314 = pneg %p167
        %p315 = pneg %p191
        %p316 = pneg %p188
        %p317 = pneg %p212
        %p318 = pneg %p209
        %p319 = pneg %p238
        %p320 = pneg %p235
        %s321 = sand.u32 %s225, 1
        %s322 = scalar_lea.sflag [#allocation4], %s321
        %s323 = sand.u32 %s225, 1
        %s324 = scalar_lea.vmem [#allocation3], %s323
        %p325 = scmp.lt.s32.totalorder %s23, 1
        %s326 = scalar_select %p325, %s23, 1
        %s327 = smul.addr %s326, 4
        %s328 = smul.addr %s327, 4
        %s329 = scalar_lea.vmem %s0, %s328
        %v331 = vld [vmem:[%s329] sm:$0xf]
        %v332 = vld [vmem:[%s329 + $0x4] sm:$0xf]
        %v333 = vld [vmem:[%s329 + $0x8] sm:$0xf]
        %v334 = vld [vmem:[%s329 + $0xc] sm:$0xf]
        %v335 = vld [vmem:[%s1] sm:$0xff]
        %v336 = vld [vmem:[%s1 + $0x8] sm:$0xff]
        %v337 = vld [vmem:[%s1 + $0x10] sm:$0xff]
        %v338 = vld [vmem:[%s1 + $0x18] sm:$0xff]
        %v339 = vld [vmem:[%s1 + $0x20] sm:$0xff]
        %v340 = vld [vmem:[%s1 + $0x28] sm:$0xff]
        %v341 = vld [vmem:[%s1 + $0x30] sm:$0xff]
        %v342 = vld [vmem:[%s1 + $0x38] sm:$0xff]
        %s343 = scalar_lea.vmem %s1, 64
        %v344 = vld [vmem:[%s343] sm:$0xff]
        %v345 = vld [vmem:[%s343 + $0x8] sm:$0xff]
        %v346 = vld [vmem:[%s343 + $0x10] sm:$0xff]
        %v347 = vld [vmem:[%s343 + $0x18] sm:$0xff]
        %v348 = vld [vmem:[%s343 + $0x20] sm:$0xff]
        %v349 = vld [vmem:[%s343 + $0x28] sm:$0xff]
        %v350 = vld [vmem:[%s343 + $0x30] sm:$0xff]
        %v351 = vld [vmem:[%s343 + $0x38] sm:$0xff]
        %s352 = scalar_lea.vmem %s1, 128
        %v353 = vld [vmem:[%s352] sm:$0xff]
        %v354 = vld [vmem:[%s352 + $0x8] sm:$0xff]
        %v355 = vld [vmem:[%s352 + $0x10] sm:$0xff]
        %v356 = vld [vmem:[%s352 + $0x18] sm:$0xff]
        %v357 = vld [vmem:[%s352 + $0x20] sm:$0xff]
        %v358 = vld [vmem:[%s352 + $0x28] sm:$0xff]
        %v359 = vld [vmem:[%s352 + $0x30] sm:$0xff]
        %v360 = vld [vmem:[%s352 + $0x38] sm:$0xff]
        %v361 = vld [vmem:[%s3] sm:$0xff]
        %v362 = vld [vmem:[%s3 + $0x8] sm:$0xff]
        %v363 = vld [vmem:[%s3 + $0x10] sm:$0xff]
        %v364 = vld [vmem:[%s3 + $0x18] sm:$0xff]
        %v365 = vld [vmem:[%s3 + $0x20] sm:$0xff]
        %v366 = vld [vmem:[%s3 + $0x28] sm:$0xff]
        %v367 = vld [vmem:[%s3 + $0x30] sm:$0xff]
        %v368 = vld [vmem:[%s3 + $0x38] sm:$0xff]
        %v369 = vld [vmem:[%s3 + $0x40] sm:$0xff]
        %v370 = vld [vmem:[%s3 + $0x48] sm:$0xff]
        %v371 = vld [vmem:[%s3 + $0x50] sm:$0xff]
        %v372 = vld [vmem:[%s3 + $0x58] sm:$0xff]
        %v373 = vld [vmem:[%s3 + $0x60] sm:$0xff]
        %v374 = vld [vmem:[%s3 + $0x68] sm:$0xff]
        %v375 = vld [vmem:[%s3 + $0x70] sm:$0xff]
        %v376 = vld [vmem:[%s3 + $0x78] sm:$0xff]
        %v377 = vld [vmem:[%s3 + $0x80] sm:$0xff]
        %v378 = vld [vmem:[%s3 + $0x88] sm:$0xff]
        %v379 = vld [vmem:[%s3 + $0x90] sm:$0xff]
        %v380 = vld [vmem:[%s3 + $0x98] sm:$0xff]
        %v381 = vld [vmem:[%s3 + $0xa0] sm:$0xff]
        %v382 = vld [vmem:[%s3 + $0xa8] sm:$0xff]
        %v383 = vld [vmem:[%s3 + $0xb0] sm:$0xff]
        %v384 = vld [vmem:[%s3 + $0xb8] sm:$0xff]
        %v385 = vld [vmem:[%s3 + $0xc0] sm:$0xff]
        %v386 = vld [vmem:[%s3 + $0xc8] sm:$0xff]
        %v387 = vld [vmem:[%s3 + $0xd0] sm:$0xff]
        %v388 = vld [vmem:[%s3 + $0xd8] sm:$0xff]
        %v389 = vld [vmem:[%s3 + $0xe0] sm:$0xff]
        %v390 = vld [vmem:[%s3 + $0xe8] sm:$0xff]
        %v391 = vld [vmem:[%s3 + $0xf0] sm:$0xff]
        %v392 = vld [vmem:[%s3 + $0xf8] sm:$0xff]
        %v393 = vld [vmem:[%s3 + $0x100] sm:$0xff]
        %v394 = vld [vmem:[%s3 + $0x108] sm:$0xff]
        %v395 = vld [vmem:[%s3 + $0x110] sm:$0xff]
        %v396 = vld [vmem:[%s3 + $0x118] sm:$0xff]
        %v397 = vld [vmem:[%s3 + $0x120] sm:$0xff]
        %v398 = vld [vmem:[%s3 + $0x128] sm:$0xff]
        %v399 = vld [vmem:[%s3 + $0x130] sm:$0xff]
        %v400 = vld [vmem:[%s3 + $0x138] sm:$0xff]
        %v401 = vld [vmem:[%s3 + $0x140] sm:$0xff]
        %v402 = vld [vmem:[%s3 + $0x148] sm:$0xff]
        %v403 = vld [vmem:[%s3 + $0x150] sm:$0xff]
        %v404 = vld [vmem:[%s3 + $0x158] sm:$0xff]
        %v405 = vld [vmem:[%s3 + $0x160] sm:$0xff]
        %v406 = vld [vmem:[%s3 + $0x168] sm:$0xff]
        %v407 = vld [vmem:[%s3 + $0x170] sm:$0xff]
        %v408 = vld [vmem:[%s3 + $0x178] sm:$0xff]
        %v409 = vld [vmem:[%s3 + $0x180] sm:$0xff]
        %v410 = vld [vmem:[%s3 + $0x188] sm:$0xff]
        %v411 = vld [vmem:[%s3 + $0x190] sm:$0xff]
        %v412 = vld [vmem:[%s3 + $0x198] sm:$0xff]
        %v413 = vld [vmem:[%s3 + $0x1a0] sm:$0xff]
        %v414 = vld [vmem:[%s3 + $0x1a8] sm:$0xff]
        %v415 = vld [vmem:[%s3 + $0x1b0] sm:$0xff]
        %v416 = vld [vmem:[%s3 + $0x1b8] sm:$0xff]
        %v417 = vld [vmem:[%s3 + $0x1c0] sm:$0xff]
        %v418 = vld [vmem:[%s3 + $0x1c8] sm:$0xff]
        %v419 = vld [vmem:[%s3 + $0x1d0] sm:$0xff]
        %v420 = vld [vmem:[%s3 + $0x1d8] sm:$0xff]
        %v421 = vld [vmem:[%s3 + $0x1e0] sm:$0xff]
        %v422 = vld [vmem:[%s3 + $0x1e8] sm:$0xff]
        %v423 = vld [vmem:[%s3 + $0x1f0] sm:$0xff]
        %v424 = vld [vmem:[%s3 + $0x1f8] sm:$0xff]
        %s425 = scalar_lea.vmem %s3, 512
        %v426 = vld [vmem:[%s425] sm:$0xff]
        %v427 = vld [vmem:[%s425 + $0x8] sm:$0xff]
        %v428 = vld [vmem:[%s425 + $0x10] sm:$0xff]
        %v429 = vld [vmem:[%s425 + $0x18] sm:$0xff]
        %v430 = vld [vmem:[%s425 + $0x20] sm:$0xff]
        %v431 = vld [vmem:[%s425 + $0x28] sm:$0xff]
        %v432 = vld [vmem:[%s425 + $0x30] sm:$0xff]
        %v433 = vld [vmem:[%s425 + $0x38] sm:$0xff]
        %v434 = vld [vmem:[%s425 + $0x40] sm:$0xff]
        %v435 = vld [vmem:[%s425 + $0x48] sm:$0xff]
        %v436 = vld [vmem:[%s425 + $0x50] sm:$0xff]
        %v437 = vld [vmem:[%s425 + $0x58] sm:$0xff]
        %v438 = vld [vmem:[%s425 + $0x60] sm:$0xff]
        %v439 = vld [vmem:[%s425 + $0x68] sm:$0xff]
        %v440 = vld [vmem:[%s425 + $0x70] sm:$0xff]
        %v441 = vld [vmem:[%s425 + $0x78] sm:$0xff]
        %v442 = vld [vmem:[%s425 + $0x80] sm:$0xff]
        %v443 = vld [vmem:[%s425 + $0x88] sm:$0xff]
        %v444 = vld [vmem:[%s425 + $0x90] sm:$0xff]
        %v445 = vld [vmem:[%s425 + $0x98] sm:$0xff]
        %v446 = vld [vmem:[%s425 + $0xa0] sm:$0xff]
        %v447 = vld [vmem:[%s425 + $0xa8] sm:$0xff]
        %v448 = vld [vmem:[%s425 + $0xb0] sm:$0xff]
        %v449 = vld [vmem:[%s425 + $0xb8] sm:$0xff]
        %v450 = vld [vmem:[%s425 + $0xc0] sm:$0xff]
        %v451 = vld [vmem:[%s425 + $0xc8] sm:$0xff]
        %v452 = vld [vmem:[%s425 + $0xd0] sm:$0xff]
        %v453 = vld [vmem:[%s425 + $0xd8] sm:$0xff]
        %v454 = vld [vmem:[%s425 + $0xe0] sm:$0xff]
        %v455 = vld [vmem:[%s425 + $0xe8] sm:$0xff]
        %v456 = vld [vmem:[%s425 + $0xf0] sm:$0xff]
        %v457 = vld [vmem:[%s425 + $0xf8] sm:$0xff]
        %v458 = vld [vmem:[%s425 + $0x100] sm:$0xff]
        %v459 = vld [vmem:[%s425 + $0x108] sm:$0xff]
        %v460 = vld [vmem:[%s425 + $0x110] sm:$0xff]
        %v461 = vld [vmem:[%s425 + $0x118] sm:$0xff]
        %v462 = vld [vmem:[%s425 + $0x120] sm:$0xff]
        %v463 = vld [vmem:[%s425 + $0x128] sm:$0xff]
        %v464 = vld [vmem:[%s425 + $0x130] sm:$0xff]
        %v465 = vld [vmem:[%s425 + $0x138] sm:$0xff]
        %v466 = vld [vmem:[%s425 + $0x140] sm:$0xff]
        %v467 = vld [vmem:[%s425 + $0x148] sm:$0xff]
        %v468 = vld [vmem:[%s425 + $0x150] sm:$0xff]
        %v469 = vld [vmem:[%s425 + $0x158] sm:$0xff]
        %v470 = vld [vmem:[%s425 + $0x160] sm:$0xff]
        %v471 = vld [vmem:[%s425 + $0x168] sm:$0xff]
        %v472 = vld [vmem:[%s425 + $0x170] sm:$0xff]
        %v473 = vld [vmem:[%s425 + $0x178] sm:$0xff]
        %v474 = vld [vmem:[%s425 + $0x180] sm:$0xff]
        %v475 = vld [vmem:[%s425 + $0x188] sm:$0xff]
        %v476 = vld [vmem:[%s425 + $0x190] sm:$0xff]
        %v477 = vld [vmem:[%s425 + $0x198] sm:$0xff]
        %v478 = vld [vmem:[%s425 + $0x1a0] sm:$0xff]
        %v479 = vld [vmem:[%s425 + $0x1a8] sm:$0xff]
        %v480 = vld [vmem:[%s425 + $0x1b0] sm:$0xff]
        %v481 = vld [vmem:[%s425 + $0x1b8] sm:$0xff]
        %v482 = vld [vmem:[%s425 + $0x1c0] sm:$0xff]
        %v483 = vld [vmem:[%s425 + $0x1c8] sm:$0xff]
        %v484 = vld [vmem:[%s425 + $0x1d0] sm:$0xff]
        %v485 = vld [vmem:[%s425 + $0x1d8] sm:$0xff]
        %v486 = vld [vmem:[%s425 + $0x1e0] sm:$0xff]
        %v487 = vld [vmem:[%s425 + $0x1e8] sm:$0xff]
        %v488 = vld [vmem:[%s425 + $0x1f0] sm:$0xff]
        %v489 = vld [vmem:[%s425 + $0x1f8] sm:$0xff]
        %s490 = scalar_lea.vmem %s3, 1024
        %v491 = vld [vmem:[%s490] sm:$0xff]
        %v492 = vld [vmem:[%s490 + $0x8] sm:$0xff]
        %v493 = vld [vmem:[%s490 + $0x10] sm:$0xff]
        %v494 = vld [vmem:[%s490 + $0x18] sm:$0xff]
        %v495 = vld [vmem:[%s490 + $0x20] sm:$0xff]
        %v496 = vld [vmem:[%s490 + $0x28] sm:$0xff]
        %v497 = vld [vmem:[%s490 + $0x30] sm:$0xff]
        %v498 = vld [vmem:[%s490 + $0x38] sm:$0xff]
        %v499 = vld [vmem:[%s490 + $0x40] sm:$0xff]
        %v500 = vld [vmem:[%s490 + $0x48] sm:$0xff]
        %v501 = vld [vmem:[%s490 + $0x50] sm:$0xff]
        %v502 = vld [vmem:[%s490 + $0x58] sm:$0xff]
        %v503 = vld [vmem:[%s490 + $0x60] sm:$0xff]
        %v504 = vld [vmem:[%s490 + $0x68] sm:$0xff]
        %v505 = vld [vmem:[%s490 + $0x70] sm:$0xff]
        %v506 = vld [vmem:[%s490 + $0x78] sm:$0xff]
        %v507 = vld [vmem:[%s490 + $0x80] sm:$0xff]
        %v508 = vld [vmem:[%s490 + $0x88] sm:$0xff]
        %v509 = vld [vmem:[%s490 + $0x90] sm:$0xff]
        %v510 = vld [vmem:[%s490 + $0x98] sm:$0xff]
        %v511 = vld [vmem:[%s490 + $0xa0] sm:$0xff]
        %v512 = vld [vmem:[%s490 + $0xa8] sm:$0xff]
        %v513 = vld [vmem:[%s490 + $0xb0] sm:$0xff]
        %v514 = vld [vmem:[%s490 + $0xb8] sm:$0xff]
        %v515 = vld [vmem:[%s490 + $0xc0] sm:$0xff]
        %v516 = vld [vmem:[%s490 + $0xc8] sm:$0xff]
        %v517 = vld [vmem:[%s490 + $0xd0] sm:$0xff]
        %v518 = vld [vmem:[%s490 + $0xd8] sm:$0xff]
        %v519 = vld [vmem:[%s490 + $0xe0] sm:$0xff]
        %v520 = vld [vmem:[%s490 + $0xe8] sm:$0xff]
        %v521 = vld [vmem:[%s490 + $0xf0] sm:$0xff]
        %v522 = vld [vmem:[%s490 + $0xf8] sm:$0xff]
        %v523 = vld [vmem:[%s490 + $0x100] sm:$0xff]
        %v524 = vld [vmem:[%s490 + $0x108] sm:$0xff]
        %v525 = vld [vmem:[%s490 + $0x110] sm:$0xff]
        %v526 = vld [vmem:[%s490 + $0x118] sm:$0xff]
        %v527 = vld [vmem:[%s490 + $0x120] sm:$0xff]
        %v528 = vld [vmem:[%s490 + $0x128] sm:$0xff]
        %v529 = vld [vmem:[%s490 + $0x130] sm:$0xff]
        %v530 = vld [vmem:[%s490 + $0x138] sm:$0xff]
        %v531 = vld [vmem:[%s490 + $0x140] sm:$0xff]
        %v532 = vld [vmem:[%s490 + $0x148] sm:$0xff]
        %v533 = vld [vmem:[%s490 + $0x150] sm:$0xff]
        %v534 = vld [vmem:[%s490 + $0x158] sm:$0xff]
        %v535 = vld [vmem:[%s490 + $0x160] sm:$0xff]
        %v536 = vld [vmem:[%s490 + $0x168] sm:$0xff]
        %v537 = vld [vmem:[%s490 + $0x170] sm:$0xff]
        %v538 = vld [vmem:[%s490 + $0x178] sm:$0xff]
        %v539 = vld [vmem:[%s490 + $0x180] sm:$0xff]
        %v540 = vld [vmem:[%s490 + $0x188] sm:$0xff]
        %v541 = vld [vmem:[%s490 + $0x190] sm:$0xff]
        %v542 = vld [vmem:[%s490 + $0x198] sm:$0xff]
        %v543 = vld [vmem:[%s490 + $0x1a0] sm:$0xff]
        %v544 = vld [vmem:[%s490 + $0x1a8] sm:$0xff]
        %v545 = vld [vmem:[%s490 + $0x1b0] sm:$0xff]
        %v546 = vld [vmem:[%s490 + $0x1b8] sm:$0xff]
        %v547 = vld [vmem:[%s490 + $0x1c0] sm:$0xff]
        %v548 = vld [vmem:[%s490 + $0x1c8] sm:$0xff]
        %v549 = vld [vmem:[%s490 + $0x1d0] sm:$0xff]
        %v550 = vld [vmem:[%s490 + $0x1d8] sm:$0xff]
        %v551 = vld [vmem:[%s490 + $0x1e0] sm:$0xff]
        %v552 = vld [vmem:[%s490 + $0x1e8] sm:$0xff]
        %v553 = vld [vmem:[%s490 + $0x1f0] sm:$0xff]
        %v554 = vld [vmem:[%s490 + $0x1f8] sm:$0xff]
        %555 = vst [vmem:[#allocation2] sm:$0xff] 0
        %556 = vst [vmem:[#allocation2 + $0x8] sm:$0xff] 0
        %v565 = vunpack.c.l.b16 %v344
        %v566 = vunpack.c.h.b16 %v344
        %v567 = vunpack.c.l.b16 %v345
        %v568 = vunpack.c.h.b16 %v345
        %v569 = vunpack.c.l.b16 %v346
        %v570 = vunpack.c.h.b16 %v346
        %v571 = vunpack.c.l.b16 %v347
        %v572 = vunpack.c.h.b16 %v347
        %v573 = vunpack.c.l.b16 %v348
        %v574 = vunpack.c.h.b16 %v348
        %v575 = vunpack.c.l.b16 %v349
        %v576 = vunpack.c.h.b16 %v349
        %v577 = vunpack.c.l.b16 %v350
        %v578 = vunpack.c.h.b16 %v350
        %v579 = vunpack.c.l.b16 %v351
        %v580 = vunpack.c.h.b16 %v351
        %v581 = vpack.c.b16 %v569, %v565
        %v582 = vpack.c.b16 %v570, %v566
        %v583 = vpack.c.b16 %v571, %v567
        %v584 = vpack.c.b16 %v572, %v568
        %v585 = vpack.c.b16 %v577, %v573
        %v586 = vpack.c.b16 %v578, %v574
        %v587 = vpack.c.b16 %v579, %v575
        %v588 = vpack.c.b16 %v580, %v576
        %vm597 = vcmask 261120
        %v599 = vsel %vm597, %v332, 0
        %601 = vmatprep.subr.bf16.mxu0 0
        %602 = vmatpush1.bf16.msra.mxu0 0
        %603 = vmatprep.subr.bf16.mxu0 0
        %604 = vmatpush1.bf16.msra.mxu0 0
        %605 = vmatprep.subr.bf16.mxu0 0
        %606 = vmatpush1.bf16.msra.mxu0 0
        %607 = vmatprep.subr.bf16.mxu0 0
        %608 = vmatpush1.bf16.msra.mxu0 0
        %609 = vmatprep.subr.bf16.mxu0 0
        %610 = vmatpush1.bf16.msra.mxu0 0
        %611 = vmatprep.subr.bf16.mxu0 0
        %612 = vmatpush1.bf16.msra.mxu0 0
        %613 = vmatprep.subr.bf16.mxu0 %v586
        %614 = vmatpush1.bf16.msra.mxu0 %v585
        %615 = vmatprep.subr.bf16.mxu0 %v582
        %616 = vmatpush1.bf16.msra.mxu0 %v581
        %617 = vmatprep.subr.bf16.mxu0 0
        %618 = vmatpush2.bf16.msra.mxu0 0
        %619 = vmatprep.subr.bf16.mxu0 0
        %620 = vmatpush2.bf16.msra.mxu0 0
        %621 = vmatprep.subr.bf16.mxu0 0
        %622 = vmatpush2.bf16.msra.mxu0 0
        %623 = vmatprep.subr.bf16.mxu0 0
        %624 = vmatpush2.bf16.msra.mxu0 0
        %625 = vmatprep.subr.bf16.mxu0 0
        %626 = vmatpush2.bf16.msra.mxu0 0
        %627 = vmatprep.subr.bf16.mxu0 0
        %628 = vmatpush2.bf16.msra.mxu0 0
        %629 = vmatprep.subr.bf16.mxu0 0
        %630 = vmatpush2.bf16.msra.mxu0 0
        %631 = vmatprep.subr.bf16.mxu0 0
        %632 = vmatpush2.bf16.msra.mxu0 0
        %633 = vmatprep.mubr.bf16.mxu0 0
        %634 = vmatmul.mubr.bf16.gmra.mxu0 %v599
        %v635 = vpop.f32.mrf.mxu0
        %v636 = vadd.f32 0.0, %v635
        %v637 = vpop.f32.mrf.mxu0
        %v638 = vadd.f32 0.0, %v637
        %v639 = vpop.f32.mrf.mxu0
        %v640 = vpop.f32.mrf.mxu0
        %641 = vdwg.mxu0
        %642 = vmatprep.subr.bf16.mxu0 0
        %643 = vmatpush1.bf16.msra.mxu0 0
        %644 = vmatprep.subr.bf16.mxu0 0
        %645 = vmatpush1.bf16.msra.mxu0 0
        %646 = vmatprep.subr.bf16.mxu0 0
        %647 = vmatpush1.bf16.msra.mxu0 0
        %648 = vmatprep.subr.bf16.mxu0 0
        %649 = vmatpush1.bf16.msra.mxu0 0
        %650 = vmatprep.subr.bf16.mxu0 0
        %651 = vmatpush1.bf16.msra.mxu0 0
        %652 = vmatprep.subr.bf16.mxu0 0
        %653 = vmatpush1.bf16.msra.mxu0 0
        %654 = vmatprep.subr.bf16.mxu0 %v588
        %655 = vmatpush1.bf16.msra.mxu0 %v587
        %656 = vmatprep.subr.bf16.mxu0 %v584
        %657 = vmatpush1.bf16.msra.mxu0 %v583
        %658 = vmatprep.subr.bf16.mxu0 0
        %659 = vmatpush2.bf16.msra.mxu0 0
        %660 = vmatprep.subr.bf16.mxu0 0
        %661 = vmatpush2.bf16.msra.mxu0 0
        %662 = vmatprep.subr.bf16.mxu0 0
        %663 = vmatpush2.bf16.msra.mxu0 0
        %664 = vmatprep.subr.bf16.mxu0 0
        %665 = vmatpush2.bf16.msra.mxu0 0
        %666 = vmatprep.subr.bf16.mxu0 0
        %667 = vmatpush2.bf16.msra.mxu0 0
        %668 = vmatprep.subr.bf16.mxu0 0
        %669 = vmatpush2.bf16.msra.mxu0 0
        %670 = vmatprep.subr.bf16.mxu0 0
        %671 = vmatpush2.bf16.msra.mxu0 0
        %672 = vmatprep.subr.bf16.mxu0 0
        %673 = vmatpush2.bf16.msra.mxu0 0
        %674 = vmatprep.mubr.bf16.mxu0 0
        %675 = vmatmul.mubr.bf16.gmra.mxu0 %v599
        %v676 = vpop.f32.mrf.mxu0
        %v677 = vadd.f32 0.0, %v676
        %v678 = vpop.f32.mrf.mxu0
        %v679 = vadd.f32 0.0, %v678
        %v680 = vpop.f32.mrf.mxu0
        %v681 = vpop.f32.mrf.mxu0
        %682 = vdwg.mxu0
        %v691 = vunpack.c.l.b16 %v335
        %v692 = vunpack.c.h.b16 %v335
        %v693 = vunpack.c.l.b16 %v336
        %v694 = vunpack.c.h.b16 %v336
        %v695 = vunpack.c.l.b16 %v337
        %v696 = vunpack.c.h.b16 %v337
        %v697 = vunpack.c.l.b16 %v338
        %v698 = vunpack.c.h.b16 %v338
        %v699 = vunpack.c.l.b16 %v339
        %v700 = vunpack.c.h.b16 %v339
        %v701 = vunpack.c.l.b16 %v340
        %v702 = vunpack.c.h.b16 %v340
        %v703 = vunpack.c.l.b16 %v341
        %v704 = vunpack.c.h.b16 %v341
        %v705 = vunpack.c.l.b16 %v342
        %v706 = vunpack.c.h.b16 %v342
        %v707 = vpack.c.b16 %v695, %v691
        %v708 = vpack.c.b16 %v696, %v692
        %v709 = vpack.c.b16 %v697, %v693
        %v710 = vpack.c.b16 %v698, %v694
        %v711 = vpack.c.b16 %v703, %v699
        %v712 = vpack.c.b16 %v704, %v700
        %v713 = vpack.c.b16 %v705, %v701
        %v714 = vpack.c.b16 %v706, %v702
        %v724 = vsel %vm597, %v331, 0
        %726 = vmatprep.subr.bf16.mxu0 0
        %727 = vmatpush1.bf16.msra.mxu0 0
        %728 = vmatprep.subr.bf16.mxu0 0
        %729 = vmatpush1.bf16.msra.mxu0 0
        %730 = vmatprep.subr.bf16.mxu0 0
        %731 = vmatpush1.bf16.msra.mxu0 0
        %732 = vmatprep.subr.bf16.mxu0 0
        %733 = vmatpush1.bf16.msra.mxu0 0
        %734 = vmatprep.subr.bf16.mxu0 0
        %735 = vmatpush1.bf16.msra.mxu0 0
        %736 = vmatprep.subr.bf16.mxu0 0
        %737 = vmatpush1.bf16.msra.mxu0 0
        %738 = vmatprep.subr.bf16.mxu0 %v712
        %739 = vmatpush1.bf16.msra.mxu0 %v711
        %740 = vmatprep.subr.bf16.mxu0 %v708
        %741 = vmatpush1.bf16.msra.mxu0 %v707
        %742 = vmatprep.subr.bf16.mxu0 0
        %743 = vmatpush2.bf16.msra.mxu0 0
        %744 = vmatprep.subr.bf16.mxu0 0
        %745 = vmatpush2.bf16.msra.mxu0 0
        %746 = vmatprep.subr.bf16.mxu0 0
        %747 = vmatpush2.bf16.msra.mxu0 0
        %748 = vmatprep.subr.bf16.mxu0 0
        %749 = vmatpush2.bf16.msra.mxu0 0
        %750 = vmatprep.subr.bf16.mxu0 0
        %751 = vmatpush2.bf16.msra.mxu0 0
        %752 = vmatprep.subr.bf16.mxu0 0
        %753 = vmatpush2.bf16.msra.mxu0 0
        %754 = vmatprep.subr.bf16.mxu0 0
        %755 = vmatpush2.bf16.msra.mxu0 0
        %756 = vmatprep.subr.bf16.mxu0 0
        %757 = vmatpush2.bf16.msra.mxu0 0
        %758 = vmatprep.mubr.bf16.mxu0 0
        %759 = vmatmul.mubr.bf16.gmra.mxu0 %v724
        %v760 = vpop.f32.mrf.mxu0
        %v761 = vadd.f32 %v636, %v760
        %v762 = vpop.f32.mrf.mxu0
        %v763 = vadd.f32 %v638, %v762
        %v764 = vpop.f32.mrf.mxu0
        %v765 = vpop.f32.mrf.mxu0
        %766 = vdwg.mxu0
        %767 = vmatprep.subr.bf16.mxu0 0
        %768 = vmatpush1.bf16.msra.mxu0 0
        %769 = vmatprep.subr.bf16.mxu0 0
        %770 = vmatpush1.bf16.msra.mxu0 0
        %771 = vmatprep.subr.bf16.mxu0 0
        %772 = vmatpush1.bf16.msra.mxu0 0
        %773 = vmatprep.subr.bf16.mxu0 0
        %774 = vmatpush1.bf16.msra.mxu0 0
        %775 = vmatprep.subr.bf16.mxu0 0
        %776 = vmatpush1.bf16.msra.mxu0 0
        %777 = vmatprep.subr.bf16.mxu0 0
        %778 = vmatpush1.bf16.msra.mxu0 0
        %779 = vmatprep.subr.bf16.mxu0 %v714
        %780 = vmatpush1.bf16.msra.mxu0 %v713
        %781 = vmatprep.subr.bf16.mxu0 %v710
        %782 = vmatpush1.bf16.msra.mxu0 %v709
        %783 = vmatprep.subr.bf16.mxu0 0
        %784 = vmatpush2.bf16.msra.mxu0 0
        %785 = vmatprep.subr.bf16.mxu0 0
        %786 = vmatpush2.bf16.msra.mxu0 0
        %787 = vmatprep.subr.bf16.mxu0 0
        %788 = vmatpush2.bf16.msra.mxu0 0
        %789 = vmatprep.subr.bf16.mxu0 0
        %790 = vmatpush2.bf16.msra.mxu0 0
        %791 = vmatprep.subr.bf16.mxu0 0
        %792 = vmatpush2.bf16.msra.mxu0 0
        %793 = vmatprep.subr.bf16.mxu0 0
        %794 = vmatpush2.bf16.msra.mxu0 0
        %795 = vmatprep.subr.bf16.mxu0 0
        %796 = vmatpush2.bf16.msra.mxu0 0
        %797 = vmatprep.subr.bf16.mxu0 0
        %798 = vmatpush2.bf16.msra.mxu0 0
        %799 = vmatprep.mubr.bf16.mxu0 0
        %800 = vmatmul.mubr.bf16.gmra.mxu0 %v724
        %v801 = vpop.f32.mrf.mxu0
        %v802 = vadd.f32 %v677, %v801
        %v803 = vpop.f32.mrf.mxu0
        %v804 = vadd.f32 %v679, %v803
        %v805 = vpop.f32.mrf.mxu0
        %v806 = vpop.f32.mrf.mxu0
        %807 = vdwg.mxu0
        %v816 = vunpack.c.l.b16 %v353
        %v817 = vunpack.c.h.b16 %v353
        %v818 = vunpack.c.l.b16 %v354
        %v819 = vunpack.c.h.b16 %v354
        %v820 = vunpack.c.l.b16 %v355
        %v821 = vunpack.c.h.b16 %v355
        %v822 = vunpack.c.l.b16 %v356
        %v823 = vunpack.c.h.b16 %v356
        %v824 = vunpack.c.l.b16 %v357
        %v825 = vunpack.c.h.b16 %v357
        %v826 = vunpack.c.l.b16 %v358
        %v827 = vunpack.c.h.b16 %v358
        %v828 = vunpack.c.l.b16 %v359
        %v829 = vunpack.c.h.b16 %v359
        %v830 = vunpack.c.l.b16 %v360
        %v831 = vunpack.c.h.b16 %v360
        %v832 = vpack.c.b16 %v820, %v816
        %v833 = vpack.c.b16 %v821, %v817
        %v834 = vpack.c.b16 %v822, %v818
        %v835 = vpack.c.b16 %v823, %v819
        %v836 = vpack.c.b16 %v828, %v824
        %v837 = vpack.c.b16 %v829, %v825
        %v838 = vpack.c.b16 %v830, %v826
        %v839 = vpack.c.b16 %v831, %v827
        %v849 = vsel %vm597, %v333, 0
        %851 = vmatprep.subr.bf16.mxu0 0
        %852 = vmatpush1.bf16.msra.mxu0 0
        %853 = vmatprep.subr.bf16.mxu0 0
        %854 = vmatpush1.bf16.msra.mxu0 0
        %855 = vmatprep.subr.bf16.mxu0 0
        %856 = vmatpush1.bf16.msra.mxu0 0
        %857 = vmatprep.subr.bf16.mxu0 0
        %858 = vmatpush1.bf16.msra.mxu0 0
        %859 = vmatprep.subr.bf16.mxu0 0
        %860 = vmatpush1.bf16.msra.mxu0 0
        %861 = vmatprep.subr.bf16.mxu0 0
        %862 = vmatpush1.bf16.msra.mxu0 0
        %863 = vmatprep.subr.bf16.mxu0 %v837
        %864 = vmatpush1.bf16.msra.mxu0 %v836
        %865 = vmatprep.subr.bf16.mxu0 %v833
        %866 = vmatpush1.bf16.msra.mxu0 %v832
        %867 = vmatprep.subr.bf16.mxu0 0
        %868 = vmatpush2.bf16.msra.mxu0 0
        %869 = vmatprep.subr.bf16.mxu0 0
        %870 = vmatpush2.bf16.msra.mxu0 0
        %871 = vmatprep.subr.bf16.mxu0 0
        %872 = vmatpush2.bf16.msra.mxu0 0
        %873 = vmatprep.subr.bf16.mxu0 0
        %874 = vmatpush2.bf16.msra.mxu0 0
        %875 = vmatprep.subr.bf16.mxu0 0
        %876 = vmatpush2.bf16.msra.mxu0 0
        %877 = vmatprep.subr.bf16.mxu0 0
        %878 = vmatpush2.bf16.msra.mxu0 0
        %879 = vmatprep.subr.bf16.mxu0 0
        %880 = vmatpush2.bf16.msra.mxu0 0
        %881 = vmatprep.subr.bf16.mxu0 0
        %882 = vmatpush2.bf16.msra.mxu0 0
        %883 = vmatprep.mubr.bf16.mxu0 0
        %884 = vmatmul.mubr.bf16.gmra.mxu0 %v849
        %v885 = vpop.f32.mrf.mxu0
        %v886 = vadd.f32 0.0, %v885
        %v887 = vpop.f32.mrf.mxu0
        %v888 = vadd.f32 0.0, %v887
        %v889 = vpop.f32.mrf.mxu0
        %v890 = vpop.f32.mrf.mxu0
        %891 = vdwg.mxu0
        %892 = vmatprep.subr.bf16.mxu0 0
        %893 = vmatpush1.bf16.msra.mxu0 0
        %894 = vmatprep.subr.bf16.mxu0 0
        %895 = vmatpush1.bf16.msra.mxu0 0
        %896 = vmatprep.subr.bf16.mxu0 0
        %897 = vmatpush1.bf16.msra.mxu0 0
        %898 = vmatprep.subr.bf16.mxu0 0
        %899 = vmatpush1.bf16.msra.mxu0 0
        %900 = vmatprep.subr.bf16.mxu0 0
        %901 = vmatpush1.bf16.msra.mxu0 0
        %902 = vmatprep.subr.bf16.mxu0 0
        %903 = vmatpush1.bf16.msra.mxu0 0
        %904 = vmatprep.subr.bf16.mxu0 %v839
        %905 = vmatpush1.bf16.msra.mxu0 %v838
        %906 = vmatprep.subr.bf16.mxu0 %v835
        %907 = vmatpush1.bf16.msra.mxu0 %v834
        %908 = vmatprep.subr.bf16.mxu0 0
        %909 = vmatpush2.bf16.msra.mxu0 0
        %910 = vmatprep.subr.bf16.mxu0 0
        %911 = vmatpush2.bf16.msra.mxu0 0
        %912 = vmatprep.subr.bf16.mxu0 0
        %913 = vmatpush2.bf16.msra.mxu0 0
        %914 = vmatprep.subr.bf16.mxu0 0
        %915 = vmatpush2.bf16.msra.mxu0 0
        %916 = vmatprep.subr.bf16.mxu0 0
        %917 = vmatpush2.bf16.msra.mxu0 0
        %918 = vmatprep.subr.bf16.mxu0 0
        %919 = vmatpush2.bf16.msra.mxu0 0
        %920 = vmatprep.subr.bf16.mxu0 0
        %921 = vmatpush2.bf16.msra.mxu0 0
        %922 = vmatprep.subr.bf16.mxu0 0
        %923 = vmatpush2.bf16.msra.mxu0 0
        %924 = vmatprep.mubr.bf16.mxu0 0
        %925 = vmatmul.mubr.bf16.gmra.mxu0 %v849
        %v926 = vpop.f32.mrf.mxu0
        %v927 = vadd.f32 0.0, %v926
        %v928 = vpop.f32.mrf.mxu0
        %v929 = vadd.f32 0.0, %v928
        %v930 = vpop.f32.mrf.mxu0
        %v931 = vpop.f32.mrf.mxu0
        %932 = vdwg.mxu0
        %v933 = vadd.f32 %v761, %v886
        %v934 = vadd.f32 %v763, %v888
        %v935 = vadd.f32 %v802, %v927
        %v936 = vadd.f32 %v804, %v929
        %937 = vmatprep.subr.bf16.mxu0 0
        %938 = vmatpush1.bf16.msra.mxu0 0
        %939 = vmatprep.subr.bf16.mxu0 0
        %940 = vmatpush1.bf16.msra.mxu0 0
        %941 = vmatprep.subr.bf16.mxu0 0
        %942 = vmatpush1.bf16.msra.mxu0 0
        %943 = vmatprep.subr.bf16.mxu0 0
        %944 = vmatpush1.bf16.msra.mxu0 0
        %945 = vmatprep.subr.bf16.mxu0 0
        %946 = vmatpush1.bf16.msra.mxu0 0
        %947 = vmatprep.subr.bf16.mxu0 0
        %948 = vmatpush1.bf16.msra.mxu0 0
        %949 = vmatprep.subr.bf16.mxu0 %v586
        %950 = vmatpush1.bf16.msra.mxu0 %v585
        %951 = vmatprep.subr.bf16.mxu0 %v582
        %952 = vmatpush1.bf16.msra.mxu0 %v581
        %953 = vmatprep.subr.bf16.mxu0 0
        %954 = vmatpush2.bf16.msra.mxu0 0
        %955 = vmatprep.subr.bf16.mxu0 0
        %956 = vmatpush2.bf16.msra.mxu0 0
        %957 = vmatprep.subr.bf16.mxu0 0
        %958 = vmatpush2.bf16.msra.mxu0 0
        %959 = vmatprep.subr.bf16.mxu0 0
        %960 = vmatpush2.bf16.msra.mxu0 0
        %961 = vmatprep.subr.bf16.mxu0 0
        %962 = vmatpush2.bf16.msra.mxu0 0
        %963 = vmatprep.subr.bf16.mxu0 0
        %964 = vmatpush2.bf16.msra.mxu0 0
        %965 = vmatprep.subr.bf16.mxu0 0
        %966 = vmatpush2.bf16.msra.mxu0 0
        %967 = vmatprep.subr.bf16.mxu0 0
        %968 = vmatpush2.bf16.msra.mxu0 0
        %969 = vmatprep.mubr.bf16.mxu0 0
        %970 = vmatmul.mubr.bf16.gmra.mxu0 %v849
        %v971 = vpop.f32.mrf.mxu0
        %v972 = vadd.f32 0.0, %v971
        %v973 = vpop.f32.mrf.mxu0
        %v974 = vadd.f32 0.0, %v973
        %v975 = vpop.f32.mrf.mxu0
        %v976 = vpop.f32.mrf.mxu0
        %977 = vdwg.mxu0
        %978 = vmatprep.subr.bf16.mxu0 0
        %979 = vmatpush1.bf16.msra.mxu0 0
        %980 = vmatprep.subr.bf16.mxu0 0
        %981 = vmatpush1.bf16.msra.mxu0 0
        %982 = vmatprep.subr.bf16.mxu0 0
        %983 = vmatpush1.bf16.msra.mxu0 0
        %984 = vmatprep.subr.bf16.mxu0 0
        %985 = vmatpush1.bf16.msra.mxu0 0
        %986 = vmatprep.subr.bf16.mxu0 0
        %987 = vmatpush1.bf16.msra.mxu0 0
        %988 = vmatprep.subr.bf16.mxu0 0
        %989 = vmatpush1.bf16.msra.mxu0 0
        %990 = vmatprep.subr.bf16.mxu0 %v588
        %991 = vmatpush1.bf16.msra.mxu0 %v587
        %992 = vmatprep.subr.bf16.mxu0 %v584
        %993 = vmatpush1.bf16.msra.mxu0 %v583
        %994 = vmatprep.subr.bf16.mxu0 0
        %995 = vmatpush2.bf16.msra.mxu0 0
        %996 = vmatprep.subr.bf16.mxu0 0
        %997 = vmatpush2.bf16.msra.mxu0 0
        %998 = vmatprep.subr.bf16.mxu0 0
        %999 = vmatpush2.bf16.msra.mxu0 0
        %1000 = vmatprep.subr.bf16.mxu0 0
        %1001 = vmatpush2.bf16.msra.mxu0 0
        %1002 = vmatprep.subr.bf16.mxu0 0
        %1003 = vmatpush2.bf16.msra.mxu0 0
        %1004 = vmatprep.subr.bf16.mxu0 0
        %1005 = vmatpush2.bf16.msra.mxu0 0
        %1006 = vmatprep.subr.bf16.mxu0 0
        %1007 = vmatpush2.bf16.msra.mxu0 0
        %1008 = vmatprep.subr.bf16.mxu0 0
        %1009 = vmatpush2.bf16.msra.mxu0 0
        %1010 = vmatprep.mubr.bf16.mxu0 0
        %1011 = vmatmul.mubr.bf16.gmra.mxu0 %v849
        %v1012 = vpop.f32.mrf.mxu0
        %v1013 = vadd.f32 0.0, %v1012
        %v1014 = vpop.f32.mrf.mxu0
        %v1015 = vadd.f32 0.0, %v1014
        %v1016 = vpop.f32.mrf.mxu0
        %v1017 = vpop.f32.mrf.mxu0
        %1018 = vdwg.mxu0
        %1019 = vmatprep.subr.bf16.mxu0 0
        %1020 = vmatpush1.bf16.msra.mxu0 0
        %1021 = vmatprep.subr.bf16.mxu0 0
        %1022 = vmatpush1.bf16.msra.mxu0 0
        %1023 = vmatprep.subr.bf16.mxu0 0
        %1024 = vmatpush1.bf16.msra.mxu0 0
        %1025 = vmatprep.subr.bf16.mxu0 0
        %1026 = vmatpush1.bf16.msra.mxu0 0
        %1027 = vmatprep.subr.bf16.mxu0 0
        %1028 = vmatpush1.bf16.msra.mxu0 0
        %1029 = vmatprep.subr.bf16.mxu0 0
        %1030 = vmatpush1.bf16.msra.mxu0 0
        %1031 = vmatprep.subr.bf16.mxu0 %v712
        %1032 = vmatpush1.bf16.msra.mxu0 %v711
        %1033 = vmatprep.subr.bf16.mxu0 %v708
        %1034 = vmatpush1.bf16.msra.mxu0 %v707
        %1035 = vmatprep.subr.bf16.mxu0 0
        %1036 = vmatpush2.bf16.msra.mxu0 0
        %1037 = vmatprep.subr.bf16.mxu0 0
        %1038 = vmatpush2.bf16.msra.mxu0 0
        %1039 = vmatprep.subr.bf16.mxu0 0
        %1040 = vmatpush2.bf16.msra.mxu0 0
        %1041 = vmatprep.subr.bf16.mxu0 0
        %1042 = vmatpush2.bf16.msra.mxu0 0
        %1043 = vmatprep.subr.bf16.mxu0 0
        %1044 = vmatpush2.bf16.msra.mxu0 0
        %1045 = vmatprep.subr.bf16.mxu0 0
        %1046 = vmatpush2.bf16.msra.mxu0 0
        %1047 = vmatprep.subr.bf16.mxu0 0
        %1048 = vmatpush2.bf16.msra.mxu0 0
        %1049 = vmatprep.subr.bf16.mxu0 0
        %1050 = vmatpush2.bf16.msra.mxu0 0
        %1051 = vmatprep.mubr.bf16.mxu0 0
        %1052 = vmatmul.mubr.bf16.gmra.mxu0 %v599
        %v1053 = vpop.f32.mrf.mxu0
        %v1054 = vadd.f32 %v972, %v1053
        %v1055 = vpop.f32.mrf.mxu0
        %v1056 = vadd.f32 %v974, %v1055
        %v1057 = vpop.f32.mrf.mxu0
        %v1058 = vpop.f32.mrf.mxu0
        %1059 = vdwg.mxu0
        %1060 = vmatprep.subr.bf16.mxu0 0
        %1061 = vmatpush1.bf16.msra.mxu0 0
        %1062 = vmatprep.subr.bf16.mxu0 0
        %1063 = vmatpush1.bf16.msra.mxu0 0
        %1064 = vmatprep.subr.bf16.mxu0 0
        %1065 = vmatpush1.bf16.msra.mxu0 0
        %1066 = vmatprep.subr.bf16.mxu0 0
        %1067 = vmatpush1.bf16.msra.mxu0 0
        %1068 = vmatprep.subr.bf16.mxu0 0
        %1069 = vmatpush1.bf16.msra.mxu0 0
        %1070 = vmatprep.subr.bf16.mxu0 0
        %1071 = vmatpush1.bf16.msra.mxu0 0
        %1072 = vmatprep.subr.bf16.mxu0 %v714
        %1073 = vmatpush1.bf16.msra.mxu0 %v713
        %1074 = vmatprep.subr.bf16.mxu0 %v710
        %1075 = vmatpush1.bf16.msra.mxu0 %v709
        %1076 = vmatprep.subr.bf16.mxu0 0
        %1077 = vmatpush2.bf16.msra.mxu0 0
        %1078 = vmatprep.subr.bf16.mxu0 0
        %1079 = vmatpush2.bf16.msra.mxu0 0
        %1080 = vmatprep.subr.bf16.mxu0 0
        %1081 = vmatpush2.bf16.msra.mxu0 0
        %1082 = vmatprep.subr.bf16.mxu0 0
        %1083 = vmatpush2.bf16.msra.mxu0 0
        %1084 = vmatprep.subr.bf16.mxu0 0
        %1085 = vmatpush2.bf16.msra.mxu0 0
        %1086 = vmatprep.subr.bf16.mxu0 0
        %1087 = vmatpush2.bf16.msra.mxu0 0
        %1088 = vmatprep.subr.bf16.mxu0 0
        %1089 = vmatpush2.bf16.msra.mxu0 0
        %1090 = vmatprep.subr.bf16.mxu0 0
        %1091 = vmatpush2.bf16.msra.mxu0 0
        %1092 = vmatprep.mubr.bf16.mxu0 0
        %1093 = vmatmul.mubr.bf16.gmra.mxu0 %v599
        %v1094 = vpop.f32.mrf.mxu0
        %v1095 = vadd.f32 %v1013, %v1094
        %v1096 = vpop.f32.mrf.mxu0
        %v1097 = vadd.f32 %v1015, %v1096
        %v1098 = vpop.f32.mrf.mxu0
        %v1099 = vpop.f32.mrf.mxu0
        %1100 = vdwg.mxu0
        %v1102 = vsel %vm597, %v334, 0
        %1104 = vmatprep.subr.bf16.mxu0 0
        %1105 = vmatpush1.bf16.msra.mxu0 0
        %1106 = vmatprep.subr.bf16.mxu0 0
        %1107 = vmatpush1.bf16.msra.mxu0 0
        %1108 = vmatprep.subr.bf16.mxu0 0
        %1109 = vmatpush1.bf16.msra.mxu0 0
        %1110 = vmatprep.subr.bf16.mxu0 0
        %1111 = vmatpush1.bf16.msra.mxu0 0
        %1112 = vmatprep.subr.bf16.mxu0 0
        %1113 = vmatpush1.bf16.msra.mxu0 0
        %1114 = vmatprep.subr.bf16.mxu0 0
        %1115 = vmatpush1.bf16.msra.mxu0 0
        %1116 = vmatprep.subr.bf16.mxu0 %v837
        %1117 = vmatpush1.bf16.msra.mxu0 %v836
        %1118 = vmatprep.subr.bf16.mxu0 %v833
        %1119 = vmatpush1.bf16.msra.mxu0 %v832
        %1120 = vmatprep.subr.bf16.mxu0 0
        %1121 = vmatpush2.bf16.msra.mxu0 0
        %1122 = vmatprep.subr.bf16.mxu0 0
        %1123 = vmatpush2.bf16.msra.mxu0 0
        %1124 = vmatprep.subr.bf16.mxu0 0
        %1125 = vmatpush2.bf16.msra.mxu0 0
        %1126 = vmatprep.subr.bf16.mxu0 0
        %1127 = vmatpush2.bf16.msra.mxu0 0
        %1128 = vmatprep.subr.bf16.mxu0 0
        %1129 = vmatpush2.bf16.msra.mxu0 0
        %1130 = vmatprep.subr.bf16.mxu0 0
        %1131 = vmatpush2.bf16.msra.mxu0 0
        %1132 = vmatprep.subr.bf16.mxu0 0
        %1133 = vmatpush2.bf16.msra.mxu0 0
        %1134 = vmatprep.subr.bf16.mxu0 0
        %1135 = vmatpush2.bf16.msra.mxu0 0
        %1136 = vmatprep.mubr.bf16.mxu0 0
        %1137 = vmatmul.mubr.bf16.gmra.mxu0 %v1102
        %v1138 = vpop.f32.mrf.mxu0
        %v1139 = vadd.f32 0.0, %v1138
        %v1140 = vpop.f32.mrf.mxu0
        %v1141 = vadd.f32 0.0, %v1140
        %v1142 = vpop.f32.mrf.mxu0
        %v1143 = vpop.f32.mrf.mxu0
        %1144 = vdwg.mxu0
        %1145 = vmatprep.subr.bf16.mxu0 0
        %1146 = vmatpush1.bf16.msra.mxu0 0
        %1147 = vmatprep.subr.bf16.mxu0 0
        %1148 = vmatpush1.bf16.msra.mxu0 0
        %1149 = vmatprep.subr.bf16.mxu0 0
        %1150 = vmatpush1.bf16.msra.mxu0 0
        %1151 = vmatprep.subr.bf16.mxu0 0
        %1152 = vmatpush1.bf16.msra.mxu0 0
        %1153 = vmatprep.subr.bf16.mxu0 0
        %1154 = vmatpush1.bf16.msra.mxu0 0
        %1155 = vmatprep.subr.bf16.mxu0 0
        %1156 = vmatpush1.bf16.msra.mxu0 0
        %1157 = vmatprep.subr.bf16.mxu0 %v839
        %1158 = vmatpush1.bf16.msra.mxu0 %v838
        %1159 = vmatprep.subr.bf16.mxu0 %v835
        %1160 = vmatpush1.bf16.msra.mxu0 %v834
        %1161 = vmatprep.subr.bf16.mxu0 0
        %1162 = vmatpush2.bf16.msra.mxu0 0
        %1163 = vmatprep.subr.bf16.mxu0 0
        %1164 = vmatpush2.bf16.msra.mxu0 0
        %1165 = vmatprep.subr.bf16.mxu0 0
        %1166 = vmatpush2.bf16.msra.mxu0 0
        %1167 = vmatprep.subr.bf16.mxu0 0
        %1168 = vmatpush2.bf16.msra.mxu0 0
        %1169 = vmatprep.subr.bf16.mxu0 0
        %1170 = vmatpush2.bf16.msra.mxu0 0
        %1171 = vmatprep.subr.bf16.mxu0 0
        %1172 = vmatpush2.bf16.msra.mxu0 0
        %1173 = vmatprep.subr.bf16.mxu0 0
        %1174 = vmatpush2.bf16.msra.mxu0 0
        %1175 = vmatprep.subr.bf16.mxu0 0
        %1176 = vmatpush2.bf16.msra.mxu0 0
        %1177 = vmatprep.mubr.bf16.mxu0 0
        %1178 = vmatmul.mubr.bf16.gmra.mxu0 %v1102
        %v1179 = vpop.f32.mrf.mxu0
        %v1180 = vadd.f32 0.0, %v1179
        %v1181 = vpop.f32.mrf.mxu0
        %v1182 = vadd.f32 0.0, %v1181
        %v1183 = vpop.f32.mrf.mxu0
        %v1184 = vpop.f32.mrf.mxu0
        %1185 = vdwg.mxu0
        %v1186 = vadd.f32 %v1054, %v1139
        %v1187 = vadd.f32 %v1056, %v1141
        %v1188 = vadd.f32 %v1095, %v1180
        %v1189 = vadd.f32 %v1097, %v1182
        %v1190 = vmax.f32 %v933, %v1186
        %v1191 = vmax.f32 %v934, %v1187
        %v1192 = vmax.f32 %v935, %v1188
        %v1193 = vmax.f32 %v936, %v1189
        %1197 = vrot.lane.b32.xlu0 %v1191, 32
        %v1198 = vpop.permute.xlu0 %1197
        %1199 = vrot.lane.b32.xlu0 %v1192, 32
        %v1200 = vpop.permute.xlu0 %1199
        %1201 = vrot.lane.b32.xlu0 %v1193, 32
        %v1202 = vpop.permute.xlu0 %1201
        %v1203 = vsel %vm597, %v1198, %v1200
        %v1204 = vsel %vm597, %v1200, %v1202
        %v1207 = vmax.f32 %v1190, %v1203
        %v1208 = vmax.f32 %v1191, %v1204
        %v1209 = vld [vmem:[%s2] sm:$0x3]
        %v1211 = vlaneseq
        %v1212 = vshrl.u32 %v1211, 7
        %v1213 = vsub.s32 0, %v1212
        %v1214 = vrot.slane %v1209, %v1213
        %v1215 = vlaneseq
        %v1216 = vshrl.u32 %v1215, 7
        %v1217 = vsub.s32 1, %v1216
        %v1218 = vrot.slane %v1209, %v1217
        %v1221 = vadd.f32 %v1207, %v1214
        %v1222 = vadd.f32 %v1208, %v1218
        %v1223 = vmax.f32 %v1221, 0.0
        %v1224 = vmax.f32 %v1222, 0.0
        %v1225 = vpack.c.bf16 %v1223, %v1223
        %v1226 = vpack.c.bf16 %v1224, %v1224
        %v1229 = vunpack.c.l.b16 %v1225
        %v1230 = vunpack.c.l.b16 %v1226
        %v1231 = vpack.c.b16 %v1230, %v1229
        %1232 = vrot.lane.b32.xlu0 %v1231, 16
        %v1233 = vpop.permute.xlu0 %1232
        %v1234 = vrot.slane %v1233, 4
        %vm1235 = vcmask 130048
        %v1236 = vsel %vm1235, %v1234, %v1233
        %vm1238 = vcmask 1043584
        %vm1239 = vsmask.f32 3328
        %vm1240 = vmand %vm1238, %vm1239
        %vm1241 = vcmask 916484
        %vm1242 = vsmask.f32 7424
        %vm1243 = vmand %vm1241, %vm1242
        %vm1244 = vmor %vm1243, %vm1240
        %v1245 = vld [vmem:[#allocation2 + $0x8] sm:$0xff]
        %v1246 = vsel %vm1244, %v1236, %v1245
        %1247 = vst [vmem:[#allocation2 + $0x8] sm:$0xff] %v1246
        %1248 = vmatprep.subr.bf16.mxu0 0
        %1249 = vmatpush1.bf16.msra.mxu0 0
        %1250 = vmatprep.subr.bf16.mxu0 0
        %1251 = vmatpush1.bf16.msra.mxu0 0
        %1252 = vmatprep.subr.bf16.mxu0 0
        %1253 = vmatpush1.bf16.msra.mxu0 0
        %1254 = vmatprep.subr.bf16.mxu0 0
        %1255 = vmatpush1.bf16.msra.mxu0 0
        %1256 = vmatprep.subr.bf16.mxu0 0
        %1257 = vmatpush1.bf16.msra.mxu0 0
        %1258 = vmatprep.subr.bf16.mxu0 0
        %1259 = vmatpush1.bf16.msra.mxu0 0
        %1260 = vmatprep.subr.bf16.mxu0 %v586
        %1261 = vmatpush1.bf16.msra.mxu0 %v585
        %1262 = vmatprep.subr.bf16.mxu0 %v582
        %1263 = vmatpush1.bf16.msra.mxu0 %v581
        %1264 = vmatprep.subr.bf16.mxu0 0
        %1265 = vmatpush2.bf16.msra.mxu0 0
        %1266 = vmatprep.subr.bf16.mxu0 0
        %1267 = vmatpush2.bf16.msra.mxu0 0
        %1268 = vmatprep.subr.bf16.mxu0 0
        %1269 = vmatpush2.bf16.msra.mxu0 0
        %1270 = vmatprep.subr.bf16.mxu0 0
        %1271 = vmatpush2.bf16.msra.mxu0 0
        %1272 = vmatprep.subr.bf16.mxu0 0
        %1273 = vmatpush2.bf16.msra.mxu0 0
        %1274 = vmatprep.subr.bf16.mxu0 0
        %1275 = vmatpush2.bf16.msra.mxu0 0
        %1276 = vmatprep.subr.bf16.mxu0 0
        %1277 = vmatpush2.bf16.msra.mxu0 0
        %1278 = vmatprep.subr.bf16.mxu0 0
        %1279 = vmatpush2.bf16.msra.mxu0 0
        %1280 = vmatprep.mubr.bf16.mxu0 0
        %1281 = vmatmul.mubr.bf16.gmra.mxu0 %v1102
        %v1282 = vpop.f32.mrf.mxu0
        %v1283 = vadd.f32 0.0, %v1282
        %v1284 = vpop.f32.mrf.mxu0
        %v1285 = vadd.f32 0.0, %v1284
        %v1286 = vpop.f32.mrf.mxu0
        %v1287 = vpop.f32.mrf.mxu0
        %1288 = vdwg.mxu0
        %1289 = vmatprep.subr.bf16.mxu0 0
        %1290 = vmatpush1.bf16.msra.mxu0 0
        %1291 = vmatprep.subr.bf16.mxu0 0
        %1292 = vmatpush1.bf16.msra.mxu0 0
        %1293 = vmatprep.subr.bf16.mxu0 0
        %1294 = vmatpush1.bf16.msra.mxu0 0
        %1295 = vmatprep.subr.bf16.mxu0 0
        %1296 = vmatpush1.bf16.msra.mxu0 0
        %1297 = vmatprep.subr.bf16.mxu0 0
        %1298 = vmatpush1.bf16.msra.mxu0 0
        %1299 = vmatprep.subr.bf16.mxu0 0
        %1300 = vmatpush1.bf16.msra.mxu0 0
        %1301 = vmatprep.subr.bf16.mxu0 %v588
        %1302 = vmatpush1.bf16.msra.mxu0 %v587
        %1303 = vmatprep.subr.bf16.mxu0 %v584
        %1304 = vmatpush1.bf16.msra.mxu0 %v583
        %1305 = vmatprep.subr.bf16.mxu0 0
        %1306 = vmatpush2.bf16.msra.mxu0 0
        %1307 = vmatprep.subr.bf16.mxu0 0
        %1308 = vmatpush2.bf16.msra.mxu0 0
        %1309 = vmatprep.subr.bf16.mxu0 0
        %1310 = vmatpush2.bf16.msra.mxu0 0
        %1311 = vmatprep.subr.bf16.mxu0 0
        %1312 = vmatpush2.bf16.msra.mxu0 0
        %1313 = vmatprep.subr.bf16.mxu0 0
        %1314 = vmatpush2.bf16.msra.mxu0 0
        %1315 = vmatprep.subr.bf16.mxu0 0
        %1316 = vmatpush2.bf16.msra.mxu0 0
        %1317 = vmatprep.subr.bf16.mxu0 0
        %1318 = vmatpush2.bf16.msra.mxu0 0
        %1319 = vmatprep.subr.bf16.mxu0 0
        %1320 = vmatpush2.bf16.msra.mxu0 0
        %1321 = vmatprep.mubr.bf16.mxu0 0
        %1322 = vmatmul.mubr.bf16.gmra.mxu0 %v1102
        %v1323 = vpop.f32.mrf.mxu0
        %v1324 = vadd.f32 0.0, %v1323
        %v1325 = vpop.f32.mrf.mxu0
        %v1326 = vadd.f32 0.0, %v1325
        %v1327 = vpop.f32.mrf.mxu0
        %v1328 = vpop.f32.mrf.mxu0
        %1329 = vdwg.mxu0
        %1330 = vmatprep.subr.bf16.mxu0 0
        %1331 = vmatpush1.bf16.msra.mxu0 0
        %1332 = vmatprep.subr.bf16.mxu0 0
        %1333 = vmatpush1.bf16.msra.mxu0 0
        %1334 = vmatprep.subr.bf16.mxu0 0
        %1335 = vmatpush1.bf16.msra.mxu0 0
        %1336 = vmatprep.subr.bf16.mxu0 0
        %1337 = vmatpush1.bf16.msra.mxu0 0
        %1338 = vmatprep.subr.bf16.mxu0 0
        %1339 = vmatpush1.bf16.msra.mxu0 0
        %1340 = vmatprep.subr.bf16.mxu0 0
        %1341 = vmatpush1.bf16.msra.mxu0 0
        %1342 = vmatprep.subr.bf16.mxu0 %v712
        %1343 = vmatpush1.bf16.msra.mxu0 %v711
        %1344 = vmatprep.subr.bf16.mxu0 %v708
        %1345 = vmatpush1.bf16.msra.mxu0 %v707
        %1346 = vmatprep.subr.bf16.mxu0 0
        %1347 = vmatpush2.bf16.msra.mxu0 0
        %1348 = vmatprep.subr.bf16.mxu0 0
        %1349 = vmatpush2.bf16.msra.mxu0 0
        %1350 = vmatprep.subr.bf16.mxu0 0
        %1351 = vmatpush2.bf16.msra.mxu0 0
        %1352 = vmatprep.subr.bf16.mxu0 0
        %1353 = vmatpush2.bf16.msra.mxu0 0
        %1354 = vmatprep.subr.bf16.mxu0 0
        %1355 = vmatpush2.bf16.msra.mxu0 0
        %1356 = vmatprep.subr.bf16.mxu0 0
        %1357 = vmatpush2.bf16.msra.mxu0 0
        %1358 = vmatprep.subr.bf16.mxu0 0
        %1359 = vmatpush2.bf16.msra.mxu0 0
        %1360 = vmatprep.subr.bf16.mxu0 0
        %1361 = vmatpush2.bf16.msra.mxu0 0
        %1362 = vmatprep.mubr.bf16.mxu0 0
        %1363 = vmatmul.mubr.bf16.gmra.mxu0 %v849
        %v1364 = vpop.f32.mrf.mxu0
        %v1365 = vadd.f32 %v1283, %v1364
        %v1366 = vpop.f32.mrf.mxu0
        %v1367 = vadd.f32 %v1285, %v1366
        %v1368 = vpop.f32.mrf.mxu0
        %v1369 = vpop.f32.mrf.mxu0
        %1370 = vdwg.mxu0
        %1371 = vmatprep.subr.bf16.mxu0 0
        %1372 = vmatpush1.bf16.msra.mxu0 0
        %1373 = vmatprep.subr.bf16.mxu0 0
        %1374 = vmatpush1.bf16.msra.mxu0 0
        %1375 = vmatprep.subr.bf16.mxu0 0
        %1376 = vmatpush1.bf16.msra.mxu0 0
        %1377 = vmatprep.subr.bf16.mxu0 0
        %1378 = vmatpush1.bf16.msra.mxu0 0
        %1379 = vmatprep.subr.bf16.mxu0 0
        %1380 = vmatpush1.bf16.msra.mxu0 0
        %1381 = vmatprep.subr.bf16.mxu0 0
        %1382 = vmatpush1.bf16.msra.mxu0 0
        %1383 = vmatprep.subr.bf16.mxu0 %v714
        %1384 = vmatpush1.bf16.msra.mxu0 %v713
        %1385 = vmatprep.subr.bf16.mxu0 %v710
        %1386 = vmatpush1.bf16.msra.mxu0 %v709
        %1387 = vmatprep.subr.bf16.mxu0 0
        %1388 = vmatpush2.bf16.msra.mxu0 0
        %1389 = vmatprep.subr.bf16.mxu0 0
        %1390 = vmatpush2.bf16.msra.mxu0 0
        %1391 = vmatprep.subr.bf16.mxu0 0
        %1392 = vmatpush2.bf16.msra.mxu0 0
        %1393 = vmatprep.subr.bf16.mxu0 0
        %1394 = vmatpush2.bf16.msra.mxu0 0
        %1395 = vmatprep.subr.bf16.mxu0 0
        %1396 = vmatpush2.bf16.msra.mxu0 0
        %1397 = vmatprep.subr.bf16.mxu0 0
        %1398 = vmatpush2.bf16.msra.mxu0 0
        %1399 = vmatprep.subr.bf16.mxu0 0
        %1400 = vmatpush2.bf16.msra.mxu0 0
        %1401 = vmatprep.subr.bf16.mxu0 0
        %1402 = vmatpush2.bf16.msra.mxu0 0
        %1403 = vmatprep.mubr.bf16.mxu0 0
        %1404 = vmatmul.mubr.bf16.gmra.mxu0 %v849
        %v1405 = vpop.f32.mrf.mxu0
        %v1406 = vadd.f32 %v1324, %v1405
        %v1407 = vpop.f32.mrf.mxu0
        %v1408 = vadd.f32 %v1326, %v1407
        %v1409 = vpop.f32.mrf.mxu0
        %v1410 = vpop.f32.mrf.mxu0
        %1411 = vdwg.mxu0
        %v1413 = vunpack.c.l.b16 %v331
        %v1414 = vpack.c.b16 %v1413, %v1413
        %v1416 = vshrl.u32 %v1414, 16
        %v1418 = vshll.u32 %v1414, 16
        %v1420 = vrot.slane %v1418, 1
        %v1421 = vor.u32 %v1416, %v1420
        %v1423 = vsel %vm597, %v1421, 0
        %1425 = vmatprep.subr.bf16.mxu0 0
        %1426 = vmatpush1.bf16.msra.mxu0 0
        %1427 = vmatprep.subr.bf16.mxu0 0
        %1428 = vmatpush1.bf16.msra.mxu0 0
        %1429 = vmatprep.subr.bf16.mxu0 0
        %1430 = vmatpush1.bf16.msra.mxu0 0
        %1431 = vmatprep.subr.bf16.mxu0 0
        %1432 = vmatpush1.bf16.msra.mxu0 0
        %1433 = vmatprep.subr.bf16.mxu0 0
        %1434 = vmatpush1.bf16.msra.mxu0 0
        %1435 = vmatprep.subr.bf16.mxu0 0
        %1436 = vmatpush1.bf16.msra.mxu0 0
        %1437 = vmatprep.subr.bf16.mxu0 %v837
        %1438 = vmatpush1.bf16.msra.mxu0 %v836
        %1439 = vmatprep.subr.bf16.mxu0 %v833
        %1440 = vmatpush1.bf16.msra.mxu0 %v832
        %1441 = vmatprep.subr.bf16.mxu0 0
        %1442 = vmatpush2.bf16.msra.mxu0 0
        %1443 = vmatprep.subr.bf16.mxu0 0
        %1444 = vmatpush2.bf16.msra.mxu0 0
        %1445 = vmatprep.subr.bf16.mxu0 0
        %1446 = vmatpush2.bf16.msra.mxu0 0
        %1447 = vmatprep.subr.bf16.mxu0 0
        %1448 = vmatpush2.bf16.msra.mxu0 0
        %1449 = vmatprep.subr.bf16.mxu0 0
        %1450 = vmatpush2.bf16.msra.mxu0 0
        %1451 = vmatprep.subr.bf16.mxu0 0
        %1452 = vmatpush2.bf16.msra.mxu0 0
        %1453 = vmatprep.subr.bf16.mxu0 0
        %1454 = vmatpush2.bf16.msra.mxu0 0
        %1455 = vmatprep.subr.bf16.mxu0 0
        %1456 = vmatpush2.bf16.msra.mxu0 0
        %1457 = vmatprep.mubr.bf16.mxu0 0
        %1458 = vmatmul.mubr.bf16.gmra.mxu0 %v1423
        %v1459 = vpop.f32.mrf.mxu0
        %v1460 = vadd.f32 0.0, %v1459
        %v1461 = vpop.f32.mrf.mxu0
        %v1462 = vadd.f32 0.0, %v1461
        %v1463 = vpop.f32.mrf.mxu0
        %v1464 = vpop.f32.mrf.mxu0
        %1465 = vdwg.mxu0
        %1466 = vmatprep.subr.bf16.mxu0 0
        %1467 = vmatpush1.bf16.msra.mxu0 0
        %1468 = vmatprep.subr.bf16.mxu0 0
        %1469 = vmatpush1.bf16.msra.mxu0 0
        %1470 = vmatprep.subr.bf16.mxu0 0
        %1471 = vmatpush1.bf16.msra.mxu0 0
        %1472 = vmatprep.subr.bf16.mxu0 0
        %1473 = vmatpush1.bf16.msra.mxu0 0
        %1474 = vmatprep.subr.bf16.mxu0 0
        %1475 = vmatpush1.bf16.msra.mxu0 0
        %1476 = vmatprep.subr.bf16.mxu0 0
        %1477 = vmatpush1.bf16.msra.mxu0 0
        %1478 = vmatprep.subr.bf16.mxu0 %v839
        %1479 = vmatpush1.bf16.msra.mxu0 %v838
        %1480 = vmatprep.subr.bf16.mxu0 %v835
        %1481 = vmatpush1.bf16.msra.mxu0 %v834
        %1482 = vmatprep.subr.bf16.mxu0 0
        %1483 = vmatpush2.bf16.msra.mxu0 0
        %1484 = vmatprep.subr.bf16.mxu0 0
        %1485 = vmatpush2.bf16.msra.mxu0 0
        %1486 = vmatprep.subr.bf16.mxu0 0
        %1487 = vmatpush2.bf16.msra.mxu0 0
        %1488 = vmatprep.subr.bf16.mxu0 0
        %1489 = vmatpush2.bf16.msra.mxu0 0
        %1490 = vmatprep.subr.bf16.mxu0 0
        %1491 = vmatpush2.bf16.msra.mxu0 0
        %1492 = vmatprep.subr.bf16.mxu0 0
        %1493 = vmatpush2.bf16.msra.mxu0 0
        %1494 = vmatprep.subr.bf16.mxu0 0
        %1495 = vmatpush2.bf16.msra.mxu0 0
        %1496 = vmatprep.subr.bf16.mxu0 0
        %1497 = vmatpush2.bf16.msra.mxu0 0
        %1498 = vmatprep.mubr.bf16.mxu0 0
        %1499 = vmatmul.mubr.bf16.gmra.mxu0 %v1423
        %v1500 = vpop.f32.mrf.mxu0
        %v1501 = vadd.f32 0.0, %v1500
        %v1502 = vpop.f32.mrf.mxu0
        %v1503 = vadd.f32 0.0, %v1502
        %v1504 = vpop.f32.mrf.mxu0
        %v1505 = vpop.f32.mrf.mxu0
        %1506 = vdwg.mxu0
        %v1507 = vadd.f32 %v1365, %v1460
        %v1508 = vadd.f32 %v1367, %v1462
        %v1509 = vadd.f32 %v1406, %v1501
        %v1510 = vadd.f32 %v1408, %v1503
        %1511 = vmatprep.subr.bf16.mxu0 0
        %1512 = vmatpush1.bf16.msra.mxu0 0
        %1513 = vmatprep.subr.bf16.mxu0 0
        %1514 = vmatpush1.bf16.msra.mxu0 0
        %1515 = vmatprep.subr.bf16.mxu0 0
        %1516 = vmatpush1.bf16.msra.mxu0 0
        %1517 = vmatprep.subr.bf16.mxu0 0
        %1518 = vmatpush1.bf16.msra.mxu0 0
        %1519 = vmatprep.subr.bf16.mxu0 0
        %1520 = vmatpush1.bf16.msra.mxu0 0
        %1521 = vmatprep.subr.bf16.mxu0 0
        %1522 = vmatpush1.bf16.msra.mxu0 0
        %1523 = vmatprep.subr.bf16.mxu0 %v586
        %1524 = vmatpush1.bf16.msra.mxu0 %v585
        %1525 = vmatprep.subr.bf16.mxu0 %v582
        %1526 = vmatpush1.bf16.msra.mxu0 %v581
        %1527 = vmatprep.subr.bf16.mxu0 0
        %1528 = vmatpush2.bf16.msra.mxu0 0
        %1529 = vmatprep.subr.bf16.mxu0 0
        %1530 = vmatpush2.bf16.msra.mxu0 0
        %1531 = vmatprep.subr.bf16.mxu0 0
        %1532 = vmatpush2.bf16.msra.mxu0 0
        %1533 = vmatprep.subr.bf16.mxu0 0
        %1534 = vmatpush2.bf16.msra.mxu0 0
        %1535 = vmatprep.subr.bf16.mxu0 0
        %1536 = vmatpush2.bf16.msra.mxu0 0
        %1537 = vmatprep.subr.bf16.mxu0 0
        %1538 = vmatpush2.bf16.msra.mxu0 0
        %1539 = vmatprep.subr.bf16.mxu0 0
        %1540 = vmatpush2.bf16.msra.mxu0 0
        %1541 = vmatprep.subr.bf16.mxu0 0
        %1542 = vmatpush2.bf16.msra.mxu0 0
        %1543 = vmatprep.mubr.bf16.mxu0 0
        %1544 = vmatmul.mubr.bf16.gmra.mxu0 %v1423
        %v1545 = vpop.f32.mrf.mxu0
        %v1546 = vadd.f32 0.0, %v1545
        %v1547 = vpop.f32.mrf.mxu0
        %v1548 = vadd.f32 0.0, %v1547
        %v1549 = vpop.f32.mrf.mxu0
        %v1550 = vpop.f32.mrf.mxu0
        %1551 = vdwg.mxu0
        %1552 = vmatprep.subr.bf16.mxu0 0
        %1553 = vmatpush1.bf16.msra.mxu0 0
        %1554 = vmatprep.subr.bf16.mxu0 0
        %1555 = vmatpush1.bf16.msra.mxu0 0
        %1556 = vmatprep.subr.bf16.mxu0 0
        %1557 = vmatpush1.bf16.msra.mxu0 0
        %1558 = vmatprep.subr.bf16.mxu0 0
        %1559 = vmatpush1.bf16.msra.mxu0 0
        %1560 = vmatprep.subr.bf16.mxu0 0
        %1561 = vmatpush1.bf16.msra.mxu0 0
        %1562 = vmatprep.subr.bf16.mxu0 0
        %1563 = vmatpush1.bf16.msra.mxu0 0
        %1564 = vmatprep.subr.bf16.mxu0 %v588
        %1565 = vmatpush1.bf16.msra.mxu0 %v587
        %1566 = vmatprep.subr.bf16.mxu0 %v584
        %1567 = vmatpush1.bf16.msra.mxu0 %v583
        %1568 = vmatprep.subr.bf16.mxu0 0
        %1569 = vmatpush2.bf16.msra.mxu0 0
        %1570 = vmatprep.subr.bf16.mxu0 0
        %1571 = vmatpush2.bf16.msra.mxu0 0
        %1572 = vmatprep.subr.bf16.mxu0 0
        %1573 = vmatpush2.bf16.msra.mxu0 0
        %1574 = vmatprep.subr.bf16.mxu0 0
        %1575 = vmatpush2.bf16.msra.mxu0 0
        %1576 = vmatprep.subr.bf16.mxu0 0
        %1577 = vmatpush2.bf16.msra.mxu0 0
        %1578 = vmatprep.subr.bf16.mxu0 0
        %1579 = vmatpush2.bf16.msra.mxu0 0
        %1580 = vmatprep.subr.bf16.mxu0 0
        %1581 = vmatpush2.bf16.msra.mxu0 0
        %1582 = vmatprep.subr.bf16.mxu0 0
        %1583 = vmatpush2.bf16.msra.mxu0 0
        %1584 = vmatprep.mubr.bf16.mxu0 0
        %1585 = vmatmul.mubr.bf16.gmra.mxu0 %v1423
        %v1586 = vpop.f32.mrf.mxu0
        %v1587 = vadd.f32 0.0, %v1586
        %v1588 = vpop.f32.mrf.mxu0
        %v1589 = vadd.f32 0.0, %v1588
        %v1590 = vpop.f32.mrf.mxu0
        %v1591 = vpop.f32.mrf.mxu0
        %1592 = vdwg.mxu0
        %1593 = vmatprep.subr.bf16.mxu0 0
        %1594 = vmatpush1.bf16.msra.mxu0 0
        %1595 = vmatprep.subr.bf16.mxu0 0
        %1596 = vmatpush1.bf16.msra.mxu0 0
        %1597 = vmatprep.subr.bf16.mxu0 0
        %1598 = vmatpush1.bf16.msra.mxu0 0
        %1599 = vmatprep.subr.bf16.mxu0 0
        %1600 = vmatpush1.bf16.msra.mxu0 0
        %1601 = vmatprep.subr.bf16.mxu0 0
        %1602 = vmatpush1.bf16.msra.mxu0 0
        %1603 = vmatprep.subr.bf16.mxu0 0
        %1604 = vmatpush1.bf16.msra.mxu0 0
        %1605 = vmatprep.subr.bf16.mxu0 %v712
        %1606 = vmatpush1.bf16.msra.mxu0 %v711
        %1607 = vmatprep.subr.bf16.mxu0 %v708
        %1608 = vmatpush1.bf16.msra.mxu0 %v707
        %1609 = vmatprep.subr.bf16.mxu0 0
        %1610 = vmatpush2.bf16.msra.mxu0 0
        %1611 = vmatprep.subr.bf16.mxu0 0
        %1612 = vmatpush2.bf16.msra.mxu0 0
        %1613 = vmatprep.subr.bf16.mxu0 0
        %1614 = vmatpush2.bf16.msra.mxu0 0
        %1615 = vmatprep.subr.bf16.mxu0 0
        %1616 = vmatpush2.bf16.msra.mxu0 0
        %1617 = vmatprep.subr.bf16.mxu0 0
        %1618 = vmatpush2.bf16.msra.mxu0 0
        %1619 = vmatprep.subr.bf16.mxu0 0
        %1620 = vmatpush2.bf16.msra.mxu0 0
        %1621 = vmatprep.subr.bf16.mxu0 0
        %1622 = vmatpush2.bf16.msra.mxu0 0
        %1623 = vmatprep.subr.bf16.mxu0 0
        %1624 = vmatpush2.bf16.msra.mxu0 0
        %1625 = vmatprep.mubr.bf16.mxu0 0
        %1626 = vmatmul.mubr.bf16.gmra.mxu0 %v1102
        %v1627 = vpop.f32.mrf.mxu0
        %v1628 = vadd.f32 %v1546, %v1627
        %v1629 = vpop.f32.mrf.mxu0
        %v1630 = vadd.f32 %v1548, %v1629
        %v1631 = vpop.f32.mrf.mxu0
        %v1632 = vpop.f32.mrf.mxu0
        %1633 = vdwg.mxu0
        %1634 = vmatprep.subr.bf16.mxu0 0
        %1635 = vmatpush1.bf16.msra.mxu0 0
        %1636 = vmatprep.subr.bf16.mxu0 0
        %1637 = vmatpush1.bf16.msra.mxu0 0
        %1638 = vmatprep.subr.bf16.mxu0 0
        %1639 = vmatpush1.bf16.msra.mxu0 0
        %1640 = vmatprep.subr.bf16.mxu0 0
        %1641 = vmatpush1.bf16.msra.mxu0 0
        %1642 = vmatprep.subr.bf16.mxu0 0
        %1643 = vmatpush1.bf16.msra.mxu0 0
        %1644 = vmatprep.subr.bf16.mxu0 0
        %1645 = vmatpush1.bf16.msra.mxu0 0
        %1646 = vmatprep.subr.bf16.mxu0 %v714
        %1647 = vmatpush1.bf16.msra.mxu0 %v713
        %1648 = vmatprep.subr.bf16.mxu0 %v710
        %1649 = vmatpush1.bf16.msra.mxu0 %v709
        %1650 = vmatprep.subr.bf16.mxu0 0
        %1651 = vmatpush2.bf16.msra.mxu0 0
        %1652 = vmatprep.subr.bf16.mxu0 0
        %1653 = vmatpush2.bf16.msra.mxu0 0
        %1654 = vmatprep.subr.bf16.mxu0 0
        %1655 = vmatpush2.bf16.msra.mxu0 0
        %1656 = vmatprep.subr.bf16.mxu0 0
        %1657 = vmatpush2.bf16.msra.mxu0 0
        %1658 = vmatprep.subr.bf16.mxu0 0
        %1659 = vmatpush2.bf16.msra.mxu0 0
        %1660 = vmatprep.subr.bf16.mxu0 0
        %1661 = vmatpush2.bf16.msra.mxu0 0
        %1662 = vmatprep.subr.bf16.mxu0 0
        %1663 = vmatpush2.bf16.msra.mxu0 0
        %1664 = vmatprep.subr.bf16.mxu0 0
        %1665 = vmatpush2.bf16.msra.mxu0 0
        %1666 = vmatprep.mubr.bf16.mxu0 0
        %1667 = vmatmul.mubr.bf16.gmra.mxu0 %v1102
        %v1668 = vpop.f32.mrf.mxu0
        %v1669 = vadd.f32 %v1587, %v1668
        %v1670 = vpop.f32.mrf.mxu0
        %v1671 = vadd.f32 %v1589, %v1670
        %v1672 = vpop.f32.mrf.mxu0
        %v1673 = vpop.f32.mrf.mxu0
        %1674 = vdwg.mxu0
        %v1676 = vunpack.c.l.b16 %v332
        %v1677 = vpack.c.b16 %v1676, %v1676
        %v1679 = vshrl.u32 %v1677, 16
        %v1681 = vshll.u32 %v1677, 16
        %v1683 = vrot.slane %v1681, 1
        %v1684 = vor.u32 %v1679, %v1683
        %v1686 = vsel %vm597, %v1684, 0
        %1688 = vmatprep.subr.bf16.mxu0 0
        %1689 = vmatpush1.bf16.msra.mxu0 0
        %1690 = vmatprep.subr.bf16.mxu0 0
        %1691 = vmatpush1.bf16.msra.mxu0 0
        %1692 = vmatprep.subr.bf16.mxu0 0
        %1693 = vmatpush1.bf16.msra.mxu0 0
        %1694 = vmatprep.subr.bf16.mxu0 0
        %1695 = vmatpush1.bf16.msra.mxu0 0
        %1696 = vmatprep.subr.bf16.mxu0 0
        %1697 = vmatpush1.bf16.msra.mxu0 0
        %1698 = vmatprep.subr.bf16.mxu0 0
        %1699 = vmatpush1.bf16.msra.mxu0 0
        %1700 = vmatprep.subr.bf16.mxu0 %v837
        %1701 = vmatpush1.bf16.msra.mxu0 %v836
        %1702 = vmatprep.subr.bf16.mxu0 %v833
        %1703 = vmatpush1.bf16.msra.mxu0 %v832
        %1704 = vmatprep.subr.bf16.mxu0 0
        %1705 = vmatpush2.bf16.msra.mxu0 0
        %1706 = vmatprep.subr.bf16.mxu0 0
        %1707 = vmatpush2.bf16.msra.mxu0 0
        %1708 = vmatprep.subr.bf16.mxu0 0
        %1709 = vmatpush2.bf16.msra.mxu0 0
        %1710 = vmatprep.subr.bf16.mxu0 0
        %1711 = vmatpush2.bf16.msra.mxu0 0
        %1712 = vmatprep.subr.bf16.mxu0 0
        %1713 = vmatpush2.bf16.msra.mxu0 0
        %1714 = vmatprep.subr.bf16.mxu0 0
        %1715 = vmatpush2.bf16.msra.mxu0 0
        %1716 = vmatprep.subr.bf16.mxu0 0
        %1717 = vmatpush2.bf16.msra.mxu0 0
        %1718 = vmatprep.subr.bf16.mxu0 0
        %1719 = vmatpush2.bf16.msra.mxu0 0
        %1720 = vmatprep.mubr.bf16.mxu0 0
        %1721 = vmatmul.mubr.bf16.gmra.mxu0 %v1686
        %v1722 = vpop.f32.mrf.mxu0
        %v1723 = vadd.f32 0.0, %v1722
        %v1724 = vpop.f32.mrf.mxu0
        %v1725 = vadd.f32 0.0, %v1724
        %v1726 = vpop.f32.mrf.mxu0
        %v1727 = vpop.f32.mrf.mxu0
        %1728 = vdwg.mxu0
        %1729 = vmatprep.subr.bf16.mxu0 0
        %1730 = vmatpush1.bf16.msra.mxu0 0
        %1731 = vmatprep.subr.bf16.mxu0 0
        %1732 = vmatpush1.bf16.msra.mxu0 0
        %1733 = vmatprep.subr.bf16.mxu0 0
        %1734 = vmatpush1.bf16.msra.mxu0 0
        %1735 = vmatprep.subr.bf16.mxu0 0
        %1736 = vmatpush1.bf16.msra.mxu0 0
        %1737 = vmatprep.subr.bf16.mxu0 0
        %1738 = vmatpush1.bf16.msra.mxu0 0
        %1739 = vmatprep.subr.bf16.mxu0 0
        %1740 = vmatpush1.bf16.msra.mxu0 0
        %1741 = vmatprep.subr.bf16.mxu0 %v839
        %1742 = vmatpush1.bf16.msra.mxu0 %v838
        %1743 = vmatprep.subr.bf16.mxu0 %v835
        %1744 = vmatpush1.bf16.msra.mxu0 %v834
        %1745 = vmatprep.subr.bf16.mxu0 0
        %1746 = vmatpush2.bf16.msra.mxu0 0
        %1747 = vmatprep.subr.bf16.mxu0 0
        %1748 = vmatpush2.bf16.msra.mxu0 0
        %1749 = vmatprep.subr.bf16.mxu0 0
        %1750 = vmatpush2.bf16.msra.mxu0 0
        %1751 = vmatprep.subr.bf16.mxu0 0
        %1752 = vmatpush2.bf16.msra.mxu0 0
        %1753 = vmatprep.subr.bf16.mxu0 0
        %1754 = vmatpush2.bf16.msra.mxu0 0
        %1755 = vmatprep.subr.bf16.mxu0 0
        %1756 = vmatpush2.bf16.msra.mxu0 0
        %1757 = vmatprep.subr.bf16.mxu0 0
        %1758 = vmatpush2.bf16.msra.mxu0 0
        %1759 = vmatprep.subr.bf16.mxu0 0
        %1760 = vmatpush2.bf16.msra.mxu0 0
        %1761 = vmatprep.mubr.bf16.mxu0 0
        %1762 = vmatmul.mubr.bf16.gmra.mxu0 %v1686
        %v1763 = vpop.f32.mrf.mxu0
        %v1764 = vadd.f32 0.0, %v1763
        %v1765 = vpop.f32.mrf.mxu0
        %v1766 = vadd.f32 0.0, %v1765
        %v1767 = vpop.f32.mrf.mxu0
        %v1768 = vpop.f32.mrf.mxu0
        %1769 = vdwg.mxu0
        %v1770 = vadd.f32 %v1628, %v1723
        %v1771 = vadd.f32 %v1630, %v1725
        %v1772 = vadd.f32 %v1669, %v1764
        %v1773 = vadd.f32 %v1671, %v1766
        %v1774 = vmax.f32 %v1507, %v1770
        %v1775 = vmax.f32 %v1508, %v1771
        %v1776 = vmax.f32 %v1509, %v1772
        %v1777 = vmax.f32 %v1510, %v1773
        %1781 = vrot.lane.b32.xlu0 %v1775, 32
        %v1782 = vpop.permute.xlu0 %1781
        %1783 = vrot.lane.b32.xlu0 %v1776, 32
        %v1784 = vpop.permute.xlu0 %1783
        %1785 = vrot.lane.b32.xlu0 %v1777, 32
        %v1786 = vpop.permute.xlu0 %1785
        %v1787 = vsel %vm597, %v1782, %v1784
        %v1788 = vsel %vm597, %v1784, %v1786
        %v1791 = vmax.f32 %v1774, %v1787
        %v1792 = vmax.f32 %v1775, %v1788
        %v1793 = vld [vmem:[%s2] sm:$0x3]
        %v1795 = vlaneseq
        %v1796 = vshrl.u32 %v1795, 7
        %v1797 = vsub.s32 0, %v1796
        %v1798 = vrot.slane %v1793, %v1797
        %v1799 = vlaneseq
        %v1800 = vshrl.u32 %v1799, 7
        %v1801 = vsub.s32 1, %v1800
        %v1802 = vrot.slane %v1793, %v1801
        %v1805 = vadd.f32 %v1791, %v1798
        %v1806 = vadd.f32 %v1792, %v1802
        %v1807 = vmax.f32 %v1805, 0.0
        %v1808 = vmax.f32 %v1806, 0.0
        %v1809 = vpack.c.bf16 %v1807, %v1807
        %v1810 = vpack.c.bf16 %v1808, %v1808
        %v1813 = vunpack.c.l.b16 %v1809
        %v1814 = vunpack.c.l.b16 %v1810
        %v1815 = vpack.c.b16 %v1814, %v1813
        %v1817 = vshrl.u32 %v1815, 16
        %v1819 = vrot.slane %v1817, 7
        %v1820 = vshll.u32 %v1815, 16
        %v1822 = vor.u32 %v1819, %v1820
        %1823 = vrot.lane.b32.xlu0 %v1822, 16
        %v1824 = vpop.permute.xlu0 %1823
        %v1825 = vrot.slane %v1824, 4
        %v1826 = vsel %vm1235, %v1825, %v1824
        %vm1828 = vsmask.f32 7938
        %vm1829 = vmand %vm1238, %vm1828
        %vm1830 = vsmask.f32 7954
        %vm1831 = vmand %vm1241, %vm1830
        %vm1832 = vmor %vm1831, %vm1829
        %v1833 = vld [vmem:[#allocation2] sm:$0xff]
        %v1834 = vsel %vm1832, %v1826, %v1833
        %1835 = vst [vmem:[#allocation2] sm:$0xff] %v1834
        %v1836 = vld [vmem:[#allocation2] sm:$0xff]
        %v1837 = vld [vmem:[#allocation2 + $0x8] sm:$0xff]
        %v1839 = vunpack.c.l.b16 %v1837
        %v1840 = vunpack.c.h.b16 %v1837
        %v1841 = vpack.c.b16 %v1839, %v1839
        %v1842 = vpack.c.b16 %v1840, %v1840
        %v1909 = vunpack.c.l.b16 %v426
        %v1910 = vunpack.c.h.b16 %v426
        %v1911 = vunpack.c.l.b16 %v427
        %v1912 = vunpack.c.h.b16 %v427
        %v1913 = vunpack.c.l.b16 %v428
        %v1914 = vunpack.c.h.b16 %v428
        %v1915 = vunpack.c.l.b16 %v429
        %v1916 = vunpack.c.h.b16 %v429
        %v1917 = vunpack.c.l.b16 %v430
        %v1918 = vunpack.c.h.b16 %v430
        %v1919 = vunpack.c.l.b16 %v431
        %v1920 = vunpack.c.h.b16 %v431
        %v1921 = vunpack.c.l.b16 %v432
        %v1922 = vunpack.c.h.b16 %v432
        %v1923 = vunpack.c.l.b16 %v433
        %v1924 = vunpack.c.h.b16 %v433
        %v1925 = vunpack.c.l.b16 %v434
        %v1926 = vunpack.c.h.b16 %v434
        %v1927 = vunpack.c.l.b16 %v435
        %v1928 = vunpack.c.h.b16 %v435
        %v1929 = vunpack.c.l.b16 %v436
        %v1930 = vunpack.c.h.b16 %v436
        %v1931 = vunpack.c.l.b16 %v437
        %v1932 = vunpack.c.h.b16 %v437
        %v1933 = vunpack.c.l.b16 %v438
        %v1934 = vunpack.c.h.b16 %v438
        %v1935 = vunpack.c.l.b16 %v439
        %v1936 = vunpack.c.h.b16 %v439
        %v1937 = vunpack.c.l.b16 %v440
        %v1938 = vunpack.c.h.b16 %v440
        %v1939 = vunpack.c.l.b16 %v441
        %v1940 = vunpack.c.h.b16 %v441
        %v1941 = vunpack.c.l.b16 %v442
        %v1942 = vunpack.c.h.b16 %v442
        %v1943 = vunpack.c.l.b16 %v443
        %v1944 = vunpack.c.h.b16 %v443
        %v1945 = vunpack.c.l.b16 %v444
        %v1946 = vunpack.c.h.b16 %v444
        %v1947 = vunpack.c.l.b16 %v445
        %v1948 = vunpack.c.h.b16 %v445
        %v1949 = vunpack.c.l.b16 %v446
        %v1950 = vunpack.c.h.b16 %v446
        %v1951 = vunpack.c.l.b16 %v447
        %v1952 = vunpack.c.h.b16 %v447
        %v1953 = vunpack.c.l.b16 %v448
        %v1954 = vunpack.c.h.b16 %v448
        %v1955 = vunpack.c.l.b16 %v449
        %v1956 = vunpack.c.h.b16 %v449
        %v1957 = vunpack.c.l.b16 %v450
        %v1958 = vunpack.c.h.b16 %v450
        %v1959 = vunpack.c.l.b16 %v451
        %v1960 = vunpack.c.h.b16 %v451
        %v1961 = vunpack.c.l.b16 %v452
        %v1962 = vunpack.c.h.b16 %v452
        %v1963 = vunpack.c.l.b16 %v453
        %v1964 = vunpack.c.h.b16 %v453
        %v1965 = vunpack.c.l.b16 %v454
        %v1966 = vunpack.c.h.b16 %v454
        %v1967 = vunpack.c.l.b16 %v455
        %v1968 = vunpack.c.h.b16 %v455
        %v1969 = vunpack.c.l.b16 %v456
        %v1970 = vunpack.c.h.b16 %v456
        %v1971 = vunpack.c.l.b16 %v457
        %v1972 = vunpack.c.h.b16 %v457
        %v1973 = vunpack.c.l.b16 %v458
        %v1974 = vunpack.c.h.b16 %v458
        %v1975 = vunpack.c.l.b16 %v459
        %v1976 = vunpack.c.h.b16 %v459
        %v1977 = vunpack.c.l.b16 %v460
        %v1978 = vunpack.c.h.b16 %v460
        %v1979 = vunpack.c.l.b16 %v461
        %v1980 = vunpack.c.h.b16 %v461
        %v1981 = vunpack.c.l.b16 %v462
        %v1982 = vunpack.c.h.b16 %v462
        %v1983 = vunpack.c.l.b16 %v463
        %v1984 = vunpack.c.h.b16 %v463
        %v1985 = vunpack.c.l.b16 %v464
        %v1986 = vunpack.c.h.b16 %v464
        %v1987 = vunpack.c.l.b16 %v465
        %v1988 = vunpack.c.h.b16 %v465
        %v1989 = vunpack.c.l.b16 %v466
        %v1990 = vunpack.c.h.b16 %v466
        %v1991 = vunpack.c.l.b16 %v467
        %v1992 = vunpack.c.h.b16 %v467
        %v1993 = vunpack.c.l.b16 %v468
        %v1994 = vunpack.c.h.b16 %v468
        %v1995 = vunpack.c.l.b16 %v469
        %v1996 = vunpack.c.h.b16 %v469
        %v1997 = vunpack.c.l.b16 %v470
        %v1998 = vunpack.c.h.b16 %v470
        %v1999 = vunpack.c.l.b16 %v471
        %v2000 = vunpack.c.h.b16 %v471
        %v2001 = vunpack.c.l.b16 %v472
        %v2002 = vunpack.c.h.b16 %v472
        %v2003 = vunpack.c.l.b16 %v473
        %v2004 = vunpack.c.h.b16 %v473
        %v2005 = vunpack.c.l.b16 %v474
        %v2006 = vunpack.c.h.b16 %v474
        %v2007 = vunpack.c.l.b16 %v475
        %v2008 = vunpack.c.h.b16 %v475
        %v2009 = vunpack.c.l.b16 %v476
        %v2010 = vunpack.c.h.b16 %v476
        %v2011 = vunpack.c.l.b16 %v477
        %v2012 = vunpack.c.h.b16 %v477
        %v2013 = vunpack.c.l.b16 %v478
        %v2014 = vunpack.c.h.b16 %v478
        %v2015 = vunpack.c.l.b16 %v479
        %v2016 = vunpack.c.h.b16 %v479
        %v2017 = vunpack.c.l.b16 %v480
        %v2018 = vunpack.c.h.b16 %v480
        %v2019 = vunpack.c.l.b16 %v481
        %v2020 = vunpack.c.h.b16 %v481
        %v2021 = vunpack.c.l.b16 %v482
        %v2022 = vunpack.c.h.b16 %v482
        %v2023 = vunpack.c.l.b16 %v483
        %v2024 = vunpack.c.h.b16 %v483
        %v2025 = vunpack.c.l.b16 %v484
        %v2026 = vunpack.c.h.b16 %v484
        %v2027 = vunpack.c.l.b16 %v485
        %v2028 = vunpack.c.h.b16 %v485
        %v2029 = vunpack.c.l.b16 %v486
        %v2030 = vunpack.c.h.b16 %v486
        %v2031 = vunpack.c.l.b16 %v487
        %v2032 = vunpack.c.h.b16 %v487
        %v2033 = vunpack.c.l.b16 %v488
        %v2034 = vunpack.c.h.b16 %v488
        %v2035 = vunpack.c.l.b16 %v489
        %v2036 = vunpack.c.h.b16 %v489
        %v2037 = vpack.c.b16 %v1913, %v1909
        %v2038 = vpack.c.b16 %v1914, %v1910
        %v2039 = vpack.c.b16 %v1915, %v1911
        %v2040 = vpack.c.b16 %v1916, %v1912
        %v2041 = vpack.c.b16 %v1921, %v1917
        %v2042 = vpack.c.b16 %v1922, %v1918
        %v2043 = vpack.c.b16 %v1923, %v1919
        %v2044 = vpack.c.b16 %v1924, %v1920
        %v2045 = vpack.c.b16 %v1929, %v1925
        %v2046 = vpack.c.b16 %v1930, %v1926
        %v2047 = vpack.c.b16 %v1931, %v1927
        %v2048 = vpack.c.b16 %v1932, %v1928
        %v2049 = vpack.c.b16 %v1937, %v1933
        %v2050 = vpack.c.b16 %v1938, %v1934
        %v2051 = vpack.c.b16 %v1939, %v1935
        %v2052 = vpack.c.b16 %v1940, %v1936
        %v2053 = vpack.c.b16 %v1945, %v1941
        %v2054 = vpack.c.b16 %v1946, %v1942
        %v2055 = vpack.c.b16 %v1947, %v1943
        %v2056 = vpack.c.b16 %v1948, %v1944
        %v2057 = vpack.c.b16 %v1953, %v1949
        %v2058 = vpack.c.b16 %v1954, %v1950
        %v2059 = vpack.c.b16 %v1955, %v1951
        %v2060 = vpack.c.b16 %v1956, %v1952
        %v2061 = vpack.c.b16 %v1961, %v1957
        %v2062 = vpack.c.b16 %v1962, %v1958
        %v2063 = vpack.c.b16 %v1963, %v1959
        %v2064 = vpack.c.b16 %v1964, %v1960
        %v2065 = vpack.c.b16 %v1969, %v1965
        %v2066 = vpack.c.b16 %v1970, %v1966
        %v2067 = vpack.c.b16 %v1971, %v1967
        %v2068 = vpack.c.b16 %v1972, %v1968
        %v2069 = vpack.c.b16 %v1977, %v1973
        %v2070 = vpack.c.b16 %v1978, %v1974
        %v2071 = vpack.c.b16 %v1979, %v1975
        %v2072 = vpack.c.b16 %v1980, %v1976
        %v2073 = vpack.c.b16 %v1985, %v1981
        %v2074 = vpack.c.b16 %v1986, %v1982
        %v2075 = vpack.c.b16 %v1987, %v1983
        %v2076 = vpack.c.b16 %v1988, %v1984
        %v2077 = vpack.c.b16 %v1993, %v1989
        %v2078 = vpack.c.b16 %v1994, %v1990
        %v2079 = vpack.c.b16 %v1995, %v1991
        %v2080 = vpack.c.b16 %v1996, %v1992
        %v2081 = vpack.c.b16 %v2001, %v1997
        %v2082 = vpack.c.b16 %v2002, %v1998
        %v2083 = vpack.c.b16 %v2003, %v1999
        %v2084 = vpack.c.b16 %v2004, %v2000
        %v2085 = vpack.c.b16 %v2009, %v2005
        %v2086 = vpack.c.b16 %v2010, %v2006
        %v2087 = vpack.c.b16 %v2011, %v2007
        %v2088 = vpack.c.b16 %v2012, %v2008
        %v2089 = vpack.c.b16 %v2017, %v2013
        %v2090 = vpack.c.b16 %v2018, %v2014
        %v2091 = vpack.c.b16 %v2019, %v2015
        %v2092 = vpack.c.b16 %v2020, %v2016
        %v2093 = vpack.c.b16 %v2025, %v2021
        %v2094 = vpack.c.b16 %v2026, %v2022
        %v2095 = vpack.c.b16 %v2027, %v2023
        %v2096 = vpack.c.b16 %v2028, %v2024
        %v2097 = vpack.c.b16 %v2033, %v2029
        %v2098 = vpack.c.b16 %v2034, %v2030
        %v2099 = vpack.c.b16 %v2035, %v2031
        %v2100 = vpack.c.b16 %v2036, %v2032
        %2165 = vmatprep.subr.bf16.mxu0 %v2066
        %2166 = vmatpush1.bf16.msra.mxu0 %v2065
        %2167 = vmatprep.subr.bf16.mxu0 %v2062
        %2168 = vmatpush1.bf16.msra.mxu0 %v2061
        %2169 = vmatprep.subr.bf16.mxu0 %v2058
        %2170 = vmatpush1.bf16.msra.mxu0 %v2057
        %2171 = vmatprep.subr.bf16.mxu0 %v2054
        %2172 = vmatpush1.bf16.msra.mxu0 %v2053
        %2173 = vmatprep.subr.bf16.mxu0 %v2050
        %2174 = vmatpush1.bf16.msra.mxu0 %v2049
        %2175 = vmatprep.subr.bf16.mxu0 %v2046
        %2176 = vmatpush1.bf16.msra.mxu0 %v2045
        %2177 = vmatprep.subr.bf16.mxu0 %v2042
        %2178 = vmatpush1.bf16.msra.mxu0 %v2041
        %2179 = vmatprep.subr.bf16.mxu0 %v2038
        %2180 = vmatpush1.bf16.msra.mxu0 %v2037
        %2181 = vmatprep.subr.bf16.mxu0 %v2098
        %2182 = vmatpush2.bf16.msra.mxu0 %v2097
        %2183 = vmatprep.subr.bf16.mxu0 %v2094
        %2184 = vmatpush2.bf16.msra.mxu0 %v2093
        %2185 = vmatprep.subr.bf16.mxu0 %v2090
        %2186 = vmatpush2.bf16.msra.mxu0 %v2089
        %2187 = vmatprep.subr.bf16.mxu0 %v2086
        %2188 = vmatpush2.bf16.msra.mxu0 %v2085
        %2189 = vmatprep.subr.bf16.mxu0 %v2082
        %2190 = vmatpush2.bf16.msra.mxu0 %v2081
        %2191 = vmatprep.subr.bf16.mxu0 %v2078
        %2192 = vmatpush2.bf16.msra.mxu0 %v2077
        %2193 = vmatprep.subr.bf16.mxu0 %v2074
        %2194 = vmatpush2.bf16.msra.mxu0 %v2073
        %2195 = vmatprep.subr.bf16.mxu0 %v2070
        %2196 = vmatpush2.bf16.msra.mxu0 %v2069
        %2197 = vmatprep.mubr.bf16.mxu0 %v1842
        %2198 = vmatmul.mubr.bf16.gmra.mxu0 %v1841
        %v2199 = vpop.f32.mrf.mxu0
        %v2200 = vadd.f32 0.0, %v2199
        %v2201 = vpop.f32.mrf.mxu0
        %v2202 = vadd.f32 0.0, %v2201
        %v2203 = vpop.f32.mrf.mxu0
        %v2204 = vpop.f32.mrf.mxu0
        %2205 = vdwg.mxu0
        %2206 = vmatprep.subr.bf16.mxu0 %v2068
        %2207 = vmatpush1.bf16.msra.mxu0 %v2067
        %2208 = vmatprep.subr.bf16.mxu0 %v2064
        %2209 = vmatpush1.bf16.msra.mxu0 %v2063
        %2210 = vmatprep.subr.bf16.mxu0 %v2060
        %2211 = vmatpush1.bf16.msra.mxu0 %v2059
        %2212 = vmatprep.subr.bf16.mxu0 %v2056
        %2213 = vmatpush1.bf16.msra.mxu0 %v2055
        %2214 = vmatprep.subr.bf16.mxu0 %v2052
        %2215 = vmatpush1.bf16.msra.mxu0 %v2051
        %2216 = vmatprep.subr.bf16.mxu0 %v2048
        %2217 = vmatpush1.bf16.msra.mxu0 %v2047
        %2218 = vmatprep.subr.bf16.mxu0 %v2044
        %2219 = vmatpush1.bf16.msra.mxu0 %v2043
        %2220 = vmatprep.subr.bf16.mxu0 %v2040
        %2221 = vmatpush1.bf16.msra.mxu0 %v2039
        %2222 = vmatprep.subr.bf16.mxu0 %v2100
        %2223 = vmatpush2.bf16.msra.mxu0 %v2099
        %2224 = vmatprep.subr.bf16.mxu0 %v2096
        %2225 = vmatpush2.bf16.msra.mxu0 %v2095
        %2226 = vmatprep.subr.bf16.mxu0 %v2092
        %2227 = vmatpush2.bf16.msra.mxu0 %v2091
        %2228 = vmatprep.subr.bf16.mxu0 %v2088
        %2229 = vmatpush2.bf16.msra.mxu0 %v2087
        %2230 = vmatprep.subr.bf16.mxu0 %v2084
        %2231 = vmatpush2.bf16.msra.mxu0 %v2083
        %2232 = vmatprep.subr.bf16.mxu0 %v2080
        %2233 = vmatpush2.bf16.msra.mxu0 %v2079
        %2234 = vmatprep.subr.bf16.mxu0 %v2076
        %2235 = vmatpush2.bf16.msra.mxu0 %v2075
        %2236 = vmatprep.subr.bf16.mxu0 %v2072
        %2237 = vmatpush2.bf16.msra.mxu0 %v2071
        %2238 = vmatprep.mubr.bf16.mxu0 %v1842
        %2239 = vmatmul.mubr.bf16.gmra.mxu0 %v1841
        %v2240 = vpop.f32.mrf.mxu0
        %v2241 = vadd.f32 0.0, %v2240
        %v2242 = vpop.f32.mrf.mxu0
        %v2243 = vadd.f32 0.0, %v2242
        %v2244 = vpop.f32.mrf.mxu0
        %v2245 = vpop.f32.mrf.mxu0
        %2246 = vdwg.mxu0
        %v2248 = vunpack.c.l.b16 %v1836
        %v2249 = vunpack.c.h.b16 %v1836
        %v2250 = vpack.c.b16 %v2248, %v2248
        %v2251 = vpack.c.b16 %v2249, %v2249
        %v2318 = vunpack.c.l.b16 %v361
        %v2319 = vunpack.c.h.b16 %v361
        %v2320 = vunpack.c.l.b16 %v362
        %v2321 = vunpack.c.h.b16 %v362
        %v2322 = vunpack.c.l.b16 %v363
        %v2323 = vunpack.c.h.b16 %v363
        %v2324 = vunpack.c.l.b16 %v364
        %v2325 = vunpack.c.h.b16 %v364
        %v2326 = vunpack.c.l.b16 %v365
        %v2327 = vunpack.c.h.b16 %v365
        %v2328 = vunpack.c.l.b16 %v366
        %v2329 = vunpack.c.h.b16 %v366
        %v2330 = vunpack.c.l.b16 %v367
        %v2331 = vunpack.c.h.b16 %v367
        %v2332 = vunpack.c.l.b16 %v368
        %v2333 = vunpack.c.h.b16 %v368
        %v2334 = vunpack.c.l.b16 %v369
        %v2335 = vunpack.c.h.b16 %v369
        %v2336 = vunpack.c.l.b16 %v370
        %v2337 = vunpack.c.h.b16 %v370
        %v2338 = vunpack.c.l.b16 %v371
        %v2339 = vunpack.c.h.b16 %v371
        %v2340 = vunpack.c.l.b16 %v372
        %v2341 = vunpack.c.h.b16 %v372
        %v2342 = vunpack.c.l.b16 %v373
        %v2343 = vunpack.c.h.b16 %v373
        %v2344 = vunpack.c.l.b16 %v374
        %v2345 = vunpack.c.h.b16 %v374
        %v2346 = vunpack.c.l.b16 %v375
        %v2347 = vunpack.c.h.b16 %v375
        %v2348 = vunpack.c.l.b16 %v376
        %v2349 = vunpack.c.h.b16 %v376
        %v2350 = vunpack.c.l.b16 %v377
        %v2351 = vunpack.c.h.b16 %v377
        %v2352 = vunpack.c.l.b16 %v378
        %v2353 = vunpack.c.h.b16 %v378
        %v2354 = vunpack.c.l.b16 %v379
        %v2355 = vunpack.c.h.b16 %v379
        %v2356 = vunpack.c.l.b16 %v380
        %v2357 = vunpack.c.h.b16 %v380
        %v2358 = vunpack.c.l.b16 %v381
        %v2359 = vunpack.c.h.b16 %v381
        %v2360 = vunpack.c.l.b16 %v382
        %v2361 = vunpack.c.h.b16 %v382
        %v2362 = vunpack.c.l.b16 %v383
        %v2363 = vunpack.c.h.b16 %v383
        %v2364 = vunpack.c.l.b16 %v384
        %v2365 = vunpack.c.h.b16 %v384
        %v2366 = vunpack.c.l.b16 %v385
        %v2367 = vunpack.c.h.b16 %v385
        %v2368 = vunpack.c.l.b16 %v386
        %v2369 = vunpack.c.h.b16 %v386
        %v2370 = vunpack.c.l.b16 %v387
        %v2371 = vunpack.c.h.b16 %v387
        %v2372 = vunpack.c.l.b16 %v388
        %v2373 = vunpack.c.h.b16 %v388
        %v2374 = vunpack.c.l.b16 %v389
        %v2375 = vunpack.c.h.b16 %v389
        %v2376 = vunpack.c.l.b16 %v390
        %v2377 = vunpack.c.h.b16 %v390
        %v2378 = vunpack.c.l.b16 %v391
        %v2379 = vunpack.c.h.b16 %v391
        %v2380 = vunpack.c.l.b16 %v392
        %v2381 = vunpack.c.h.b16 %v392
        %v2382 = vunpack.c.l.b16 %v393
        %v2383 = vunpack.c.h.b16 %v393
        %v2384 = vunpack.c.l.b16 %v394
        %v2385 = vunpack.c.h.b16 %v394
        %v2386 = vunpack.c.l.b16 %v395
        %v2387 = vunpack.c.h.b16 %v395
        %v2388 = vunpack.c.l.b16 %v396
        %v2389 = vunpack.c.h.b16 %v396
        %v2390 = vunpack.c.l.b16 %v397
        %v2391 = vunpack.c.h.b16 %v397
        %v2392 = vunpack.c.l.b16 %v398
        %v2393 = vunpack.c.h.b16 %v398
        %v2394 = vunpack.c.l.b16 %v399
        %v2395 = vunpack.c.h.b16 %v399
        %v2396 = vunpack.c.l.b16 %v400
        %v2397 = vunpack.c.h.b16 %v400
        %v2398 = vunpack.c.l.b16 %v401
        %v2399 = vunpack.c.h.b16 %v401
        %v2400 = vunpack.c.l.b16 %v402
        %v2401 = vunpack.c.h.b16 %v402
        %v2402 = vunpack.c.l.b16 %v403
        %v2403 = vunpack.c.h.b16 %v403
        %v2404 = vunpack.c.l.b16 %v404
        %v2405 = vunpack.c.h.b16 %v404
        %v2406 = vunpack.c.l.b16 %v405
        %v2407 = vunpack.c.h.b16 %v405
        %v2408 = vunpack.c.l.b16 %v406
        %v2409 = vunpack.c.h.b16 %v406
        %v2410 = vunpack.c.l.b16 %v407
        %v2411 = vunpack.c.h.b16 %v407
        %v2412 = vunpack.c.l.b16 %v408
        %v2413 = vunpack.c.h.b16 %v408
        %v2414 = vunpack.c.l.b16 %v409
        %v2415 = vunpack.c.h.b16 %v409
        %v2416 = vunpack.c.l.b16 %v410
        %v2417 = vunpack.c.h.b16 %v410
        %v2418 = vunpack.c.l.b16 %v411
        %v2419 = vunpack.c.h.b16 %v411
        %v2420 = vunpack.c.l.b16 %v412
        %v2421 = vunpack.c.h.b16 %v412
        %v2422 = vunpack.c.l.b16 %v413
        %v2423 = vunpack.c.h.b16 %v413
        %v2424 = vunpack.c.l.b16 %v414
        %v2425 = vunpack.c.h.b16 %v414
        %v2426 = vunpack.c.l.b16 %v415
        %v2427 = vunpack.c.h.b16 %v415
        %v2428 = vunpack.c.l.b16 %v416
        %v2429 = vunpack.c.h.b16 %v416
        %v2430 = vunpack.c.l.b16 %v417
        %v2431 = vunpack.c.h.b16 %v417
        %v2432 = vunpack.c.l.b16 %v418
        %v2433 = vunpack.c.h.b16 %v418
        %v2434 = vunpack.c.l.b16 %v419
        %v2435 = vunpack.c.h.b16 %v419
        %v2436 = vunpack.c.l.b16 %v420
        %v2437 = vunpack.c.h.b16 %v420
        %v2438 = vunpack.c.l.b16 %v421
        %v2439 = vunpack.c.h.b16 %v421
        %v2440 = vunpack.c.l.b16 %v422
        %v2441 = vunpack.c.h.b16 %v422
        %v2442 = vunpack.c.l.b16 %v423
        %v2443 = vunpack.c.h.b16 %v423
        %v2444 = vunpack.c.l.b16 %v424
        %v2445 = vunpack.c.h.b16 %v424
        %v2446 = vpack.c.b16 %v2322, %v2318
        %v2447 = vpack.c.b16 %v2323, %v2319
        %v2448 = vpack.c.b16 %v2324, %v2320
        %v2449 = vpack.c.b16 %v2325, %v2321
        %v2450 = vpack.c.b16 %v2330, %v2326
        %v2451 = vpack.c.b16 %v2331, %v2327
        %v2452 = vpack.c.b16 %v2332, %v2328
        %v2453 = vpack.c.b16 %v2333, %v2329
        %v2454 = vpack.c.b16 %v2338, %v2334
        %v2455 = vpack.c.b16 %v2339, %v2335
        %v2456 = vpack.c.b16 %v2340, %v2336
        %v2457 = vpack.c.b16 %v2341, %v2337
        %v2458 = vpack.c.b16 %v2346, %v2342
        %v2459 = vpack.c.b16 %v2347, %v2343
        %v2460 = vpack.c.b16 %v2348, %v2344
        %v2461 = vpack.c.b16 %v2349, %v2345
        %v2462 = vpack.c.b16 %v2354, %v2350
        %v2463 = vpack.c.b16 %v2355, %v2351
        %v2464 = vpack.c.b16 %v2356, %v2352
        %v2465 = vpack.c.b16 %v2357, %v2353
        %v2466 = vpack.c.b16 %v2362, %v2358
        %v2467 = vpack.c.b16 %v2363, %v2359
        %v2468 = vpack.c.b16 %v2364, %v2360
        %v2469 = vpack.c.b16 %v2365, %v2361
        %v2470 = vpack.c.b16 %v2370, %v2366
        %v2471 = vpack.c.b16 %v2371, %v2367
        %v2472 = vpack.c.b16 %v2372, %v2368
        %v2473 = vpack.c.b16 %v2373, %v2369
        %v2474 = vpack.c.b16 %v2378, %v2374
        %v2475 = vpack.c.b16 %v2379, %v2375
        %v2476 = vpack.c.b16 %v2380, %v2376
        %v2477 = vpack.c.b16 %v2381, %v2377
        %v2478 = vpack.c.b16 %v2386, %v2382
        %v2479 = vpack.c.b16 %v2387, %v2383
        %v2480 = vpack.c.b16 %v2388, %v2384
        %v2481 = vpack.c.b16 %v2389, %v2385
        %v2482 = vpack.c.b16 %v2394, %v2390
        %v2483 = vpack.c.b16 %v2395, %v2391
        %v2484 = vpack.c.b16 %v2396, %v2392
        %v2485 = vpack.c.b16 %v2397, %v2393
        %v2486 = vpack.c.b16 %v2402, %v2398
        %v2487 = vpack.c.b16 %v2403, %v2399
        %v2488 = vpack.c.b16 %v2404, %v2400
        %v2489 = vpack.c.b16 %v2405, %v2401
        %v2490 = vpack.c.b16 %v2410, %v2406
        %v2491 = vpack.c.b16 %v2411, %v2407
        %v2492 = vpack.c.b16 %v2412, %v2408
        %v2493 = vpack.c.b16 %v2413, %v2409
        %v2494 = vpack.c.b16 %v2418, %v2414
        %v2495 = vpack.c.b16 %v2419, %v2415
        %v2496 = vpack.c.b16 %v2420, %v2416
        %v2497 = vpack.c.b16 %v2421, %v2417
        %v2498 = vpack.c.b16 %v2426, %v2422
        %v2499 = vpack.c.b16 %v2427, %v2423
        %v2500 = vpack.c.b16 %v2428, %v2424
        %v2501 = vpack.c.b16 %v2429, %v2425
        %v2502 = vpack.c.b16 %v2434, %v2430
        %v2503 = vpack.c.b16 %v2435, %v2431
        %v2504 = vpack.c.b16 %v2436, %v2432
        %v2505 = vpack.c.b16 %v2437, %v2433
        %v2506 = vpack.c.b16 %v2442, %v2438
        %v2507 = vpack.c.b16 %v2443, %v2439
        %v2508 = vpack.c.b16 %v2444, %v2440
        %v2509 = vpack.c.b16 %v2445, %v2441
        %2574 = vmatprep.subr.bf16.mxu0 %v2475
        %2575 = vmatpush1.bf16.msra.mxu0 %v2474
        %2576 = vmatprep.subr.bf16.mxu0 %v2471
        %2577 = vmatpush1.bf16.msra.mxu0 %v2470
        %2578 = vmatprep.subr.bf16.mxu0 %v2467
        %2579 = vmatpush1.bf16.msra.mxu0 %v2466
        %2580 = vmatprep.subr.bf16.mxu0 %v2463
        %2581 = vmatpush1.bf16.msra.mxu0 %v2462
        %2582 = vmatprep.subr.bf16.mxu0 %v2459
        %2583 = vmatpush1.bf16.msra.mxu0 %v2458
        %2584 = vmatprep.subr.bf16.mxu0 %v2455
        %2585 = vmatpush1.bf16.msra.mxu0 %v2454
        %2586 = vmatprep.subr.bf16.mxu0 %v2451
        %2587 = vmatpush1.bf16.msra.mxu0 %v2450
        %2588 = vmatprep.subr.bf16.mxu0 %v2447
        %2589 = vmatpush1.bf16.msra.mxu0 %v2446
        %2590 = vmatprep.subr.bf16.mxu0 %v2507
        %2591 = vmatpush2.bf16.msra.mxu0 %v2506
        %2592 = vmatprep.subr.bf16.mxu0 %v2503
        %2593 = vmatpush2.bf16.msra.mxu0 %v2502
        %2594 = vmatprep.subr.bf16.mxu0 %v2499
        %2595 = vmatpush2.bf16.msra.mxu0 %v2498
        %2596 = vmatprep.subr.bf16.mxu0 %v2495
        %2597 = vmatpush2.bf16.msra.mxu0 %v2494
        %2598 = vmatprep.subr.bf16.mxu0 %v2491
        %2599 = vmatpush2.bf16.msra.mxu0 %v2490
        %2600 = vmatprep.subr.bf16.mxu0 %v2487
        %2601 = vmatpush2.bf16.msra.mxu0 %v2486
        %2602 = vmatprep.subr.bf16.mxu0 %v2483
        %2603 = vmatpush2.bf16.msra.mxu0 %v2482
        %2604 = vmatprep.subr.bf16.mxu0 %v2479
        %2605 = vmatpush2.bf16.msra.mxu0 %v2478
        %2606 = vmatprep.mubr.bf16.mxu0 %v2251
        %2607 = vmatmul.mubr.bf16.gmra.mxu0 %v2250
        %v2608 = vpop.f32.mrf.mxu0
        %v2609 = vadd.f32 %v2200, %v2608
        %v2610 = vpop.f32.mrf.mxu0
        %v2611 = vadd.f32 %v2202, %v2610
        %v2612 = vpop.f32.mrf.mxu0
        %v2613 = vpop.f32.mrf.mxu0
        %2614 = vdwg.mxu0
        %2615 = vmatprep.subr.bf16.mxu0 %v2477
        %2616 = vmatpush1.bf16.msra.mxu0 %v2476
        %2617 = vmatprep.subr.bf16.mxu0 %v2473
        %2618 = vmatpush1.bf16.msra.mxu0 %v2472
        %2619 = vmatprep.subr.bf16.mxu0 %v2469
        %2620 = vmatpush1.bf16.msra.mxu0 %v2468
        %2621 = vmatprep.subr.bf16.mxu0 %v2465
        %2622 = vmatpush1.bf16.msra.mxu0 %v2464
        %2623 = vmatprep.subr.bf16.mxu0 %v2461
        %2624 = vmatpush1.bf16.msra.mxu0 %v2460
        %2625 = vmatprep.subr.bf16.mxu0 %v2457
        %2626 = vmatpush1.bf16.msra.mxu0 %v2456
        %2627 = vmatprep.subr.bf16.mxu0 %v2453
        %2628 = vmatpush1.bf16.msra.mxu0 %v2452
        %2629 = vmatprep.subr.bf16.mxu0 %v2449
        %2630 = vmatpush1.bf16.msra.mxu0 %v2448
        %2631 = vmatprep.subr.bf16.mxu0 %v2509
        %2632 = vmatpush2.bf16.msra.mxu0 %v2508
        %2633 = vmatprep.subr.bf16.mxu0 %v2505
        %2634 = vmatpush2.bf16.msra.mxu0 %v2504
        %2635 = vmatprep.subr.bf16.mxu0 %v2501
        %2636 = vmatpush2.bf16.msra.mxu0 %v2500
        %2637 = vmatprep.subr.bf16.mxu0 %v2497
        %2638 = vmatpush2.bf16.msra.mxu0 %v2496
        %2639 = vmatprep.subr.bf16.mxu0 %v2493
        %2640 = vmatpush2.bf16.msra.mxu0 %v2492
        %2641 = vmatprep.subr.bf16.mxu0 %v2489
        %2642 = vmatpush2.bf16.msra.mxu0 %v2488
        %2643 = vmatprep.subr.bf16.mxu0 %v2485
        %2644 = vmatpush2.bf16.msra.mxu0 %v2484
        %2645 = vmatprep.subr.bf16.mxu0 %v2481
        %2646 = vmatpush2.bf16.msra.mxu0 %v2480
        %2647 = vmatprep.mubr.bf16.mxu0 %v2251
        %2648 = vmatmul.mubr.bf16.gmra.mxu0 %v2250
        %v2649 = vpop.f32.mrf.mxu0
        %v2650 = vadd.f32 %v2241, %v2649
        %v2651 = vpop.f32.mrf.mxu0
        %v2652 = vadd.f32 %v2243, %v2651
        %v2653 = vpop.f32.mrf.mxu0
        %v2654 = vpop.f32.mrf.mxu0
        %2655 = vdwg.mxu0
        %v2657 = vshrl.u32 %v2250, 16
        %v2659 = vshll.u32 %v2250, 16
        %v2661 = vrot.slane %v2659, 1
        %v2662 = vor.u32 %v2657, %v2661
        %v2664 = vshrl.u32 %v2251, 16
        %v2666 = vshll.u32 %v2251, 16
        %v2668 = vrot.slane %v2666, 1
        %v2669 = vor.u32 %v2664, %v2668
        %v2736 = vunpack.c.l.b16 %v491
        %v2737 = vunpack.c.h.b16 %v491
        %v2738 = vunpack.c.l.b16 %v492
        %v2739 = vunpack.c.h.b16 %v492
        %v2740 = vunpack.c.l.b16 %v493
        %v2741 = vunpack.c.h.b16 %v493
        %v2742 = vunpack.c.l.b16 %v494
        %v2743 = vunpack.c.h.b16 %v494
        %v2744 = vunpack.c.l.b16 %v495
        %v2745 = vunpack.c.h.b16 %v495
        %v2746 = vunpack.c.l.b16 %v496
        %v2747 = vunpack.c.h.b16 %v496
        %v2748 = vunpack.c.l.b16 %v497
        %v2749 = vunpack.c.h.b16 %v497
        %v2750 = vunpack.c.l.b16 %v498
        %v2751 = vunpack.c.h.b16 %v498
        %v2752 = vunpack.c.l.b16 %v499
        %v2753 = vunpack.c.h.b16 %v499
        %v2754 = vunpack.c.l.b16 %v500
        %v2755 = vunpack.c.h.b16 %v500
        %v2756 = vunpack.c.l.b16 %v501
        %v2757 = vunpack.c.h.b16 %v501
        %v2758 = vunpack.c.l.b16 %v502
        %v2759 = vunpack.c.h.b16 %v502
        %v2760 = vunpack.c.l.b16 %v503
        %v2761 = vunpack.c.h.b16 %v503
        %v2762 = vunpack.c.l.b16 %v504
        %v2763 = vunpack.c.h.b16 %v504
        %v2764 = vunpack.c.l.b16 %v505
        %v2765 = vunpack.c.h.b16 %v505
        %v2766 = vunpack.c.l.b16 %v506
        %v2767 = vunpack.c.h.b16 %v506
        %v2768 = vunpack.c.l.b16 %v507
        %v2769 = vunpack.c.h.b16 %v507
        %v2770 = vunpack.c.l.b16 %v508
        %v2771 = vunpack.c.h.b16 %v508
        %v2772 = vunpack.c.l.b16 %v509
        %v2773 = vunpack.c.h.b16 %v509
        %v2774 = vunpack.c.l.b16 %v510
        %v2775 = vunpack.c.h.b16 %v510
        %v2776 = vunpack.c.l.b16 %v511
        %v2777 = vunpack.c.h.b16 %v511
        %v2778 = vunpack.c.l.b16 %v512
        %v2779 = vunpack.c.h.b16 %v512
        %v2780 = vunpack.c.l.b16 %v513
        %v2781 = vunpack.c.h.b16 %v513
        %v2782 = vunpack.c.l.b16 %v514
        %v2783 = vunpack.c.h.b16 %v514
        %v2784 = vunpack.c.l.b16 %v515
        %v2785 = vunpack.c.h.b16 %v515
        %v2786 = vunpack.c.l.b16 %v516
        %v2787 = vunpack.c.h.b16 %v516
        %v2788 = vunpack.c.l.b16 %v517
        %v2789 = vunpack.c.h.b16 %v517
        %v2790 = vunpack.c.l.b16 %v518
        %v2791 = vunpack.c.h.b16 %v518
        %v2792 = vunpack.c.l.b16 %v519
        %v2793 = vunpack.c.h.b16 %v519
        %v2794 = vunpack.c.l.b16 %v520
        %v2795 = vunpack.c.h.b16 %v520
        %v2796 = vunpack.c.l.b16 %v521
        %v2797 = vunpack.c.h.b16 %v521
        %v2798 = vunpack.c.l.b16 %v522
        %v2799 = vunpack.c.h.b16 %v522
        %v2800 = vunpack.c.l.b16 %v523
        %v2801 = vunpack.c.h.b16 %v523
        %v2802 = vunpack.c.l.b16 %v524
        %v2803 = vunpack.c.h.b16 %v524
        %v2804 = vunpack.c.l.b16 %v525
        %v2805 = vunpack.c.h.b16 %v525
        %v2806 = vunpack.c.l.b16 %v526
        %v2807 = vunpack.c.h.b16 %v526
        %v2808 = vunpack.c.l.b16 %v527
        %v2809 = vunpack.c.h.b16 %v527
        %v2810 = vunpack.c.l.b16 %v528
        %v2811 = vunpack.c.h.b16 %v528
        %v2812 = vunpack.c.l.b16 %v529
        %v2813 = vunpack.c.h.b16 %v529
        %v2814 = vunpack.c.l.b16 %v530
        %v2815 = vunpack.c.h.b16 %v530
        %v2816 = vunpack.c.l.b16 %v531
        %v2817 = vunpack.c.h.b16 %v531
        %v2818 = vunpack.c.l.b16 %v532
        %v2819 = vunpack.c.h.b16 %v532
        %v2820 = vunpack.c.l.b16 %v533
        %v2821 = vunpack.c.h.b16 %v533
        %v2822 = vunpack.c.l.b16 %v534
        %v2823 = vunpack.c.h.b16 %v534
        %v2824 = vunpack.c.l.b16 %v535
        %v2825 = vunpack.c.h.b16 %v535
        %v2826 = vunpack.c.l.b16 %v536
        %v2827 = vunpack.c.h.b16 %v536
        %v2828 = vunpack.c.l.b16 %v537
        %v2829 = vunpack.c.h.b16 %v537
        %v2830 = vunpack.c.l.b16 %v538
        %v2831 = vunpack.c.h.b16 %v538
        %v2832 = vunpack.c.l.b16 %v539
        %v2833 = vunpack.c.h.b16 %v539
        %v2834 = vunpack.c.l.b16 %v540
        %v2835 = vunpack.c.h.b16 %v540
        %v2836 = vunpack.c.l.b16 %v541
        %v2837 = vunpack.c.h.b16 %v541
        %v2838 = vunpack.c.l.b16 %v542
        %v2839 = vunpack.c.h.b16 %v542
        %v2840 = vunpack.c.l.b16 %v543
        %v2841 = vunpack.c.h.b16 %v543
        %v2842 = vunpack.c.l.b16 %v544
        %v2843 = vunpack.c.h.b16 %v544
        %v2844 = vunpack.c.l.b16 %v545
        %v2845 = vunpack.c.h.b16 %v545
        %v2846 = vunpack.c.l.b16 %v546
        %v2847 = vunpack.c.h.b16 %v546
        %v2848 = vunpack.c.l.b16 %v547
        %v2849 = vunpack.c.h.b16 %v547
        %v2850 = vunpack.c.l.b16 %v548
        %v2851 = vunpack.c.h.b16 %v548
        %v2852 = vunpack.c.l.b16 %v549
        %v2853 = vunpack.c.h.b16 %v549
        %v2854 = vunpack.c.l.b16 %v550
        %v2855 = vunpack.c.h.b16 %v550
        %v2856 = vunpack.c.l.b16 %v551
        %v2857 = vunpack.c.h.b16 %v551
        %v2858 = vunpack.c.l.b16 %v552
        %v2859 = vunpack.c.h.b16 %v552
        %v2860 = vunpack.c.l.b16 %v553
        %v2861 = vunpack.c.h.b16 %v553
        %v2862 = vunpack.c.l.b16 %v554
        %v2863 = vunpack.c.h.b16 %v554
        %v2864 = vpack.c.b16 %v2740, %v2736
        %v2865 = vpack.c.b16 %v2741, %v2737
        %v2866 = vpack.c.b16 %v2742, %v2738
        %v2867 = vpack.c.b16 %v2743, %v2739
        %v2868 = vpack.c.b16 %v2748, %v2744
        %v2869 = vpack.c.b16 %v2749, %v2745
        %v2870 = vpack.c.b16 %v2750, %v2746
        %v2871 = vpack.c.b16 %v2751, %v2747
        %v2872 = vpack.c.b16 %v2756, %v2752
        %v2873 = vpack.c.b16 %v2757, %v2753
        %v2874 = vpack.c.b16 %v2758, %v2754
        %v2875 = vpack.c.b16 %v2759, %v2755
        %v2876 = vpack.c.b16 %v2764, %v2760
        %v2877 = vpack.c.b16 %v2765, %v2761
        %v2878 = vpack.c.b16 %v2766, %v2762
        %v2879 = vpack.c.b16 %v2767, %v2763
        %v2880 = vpack.c.b16 %v2772, %v2768
        %v2881 = vpack.c.b16 %v2773, %v2769
        %v2882 = vpack.c.b16 %v2774, %v2770
        %v2883 = vpack.c.b16 %v2775, %v2771
        %v2884 = vpack.c.b16 %v2780, %v2776
        %v2885 = vpack.c.b16 %v2781, %v2777
        %v2886 = vpack.c.b16 %v2782, %v2778
        %v2887 = vpack.c.b16 %v2783, %v2779
        %v2888 = vpack.c.b16 %v2788, %v2784
        %v2889 = vpack.c.b16 %v2789, %v2785
        %v2890 = vpack.c.b16 %v2790, %v2786
        %v2891 = vpack.c.b16 %v2791, %v2787
        %v2892 = vpack.c.b16 %v2796, %v2792
        %v2893 = vpack.c.b16 %v2797, %v2793
        %v2894 = vpack.c.b16 %v2798, %v2794
        %v2895 = vpack.c.b16 %v2799, %v2795
        %v2896 = vpack.c.b16 %v2804, %v2800
        %v2897 = vpack.c.b16 %v2805, %v2801
        %v2898 = vpack.c.b16 %v2806, %v2802
        %v2899 = vpack.c.b16 %v2807, %v2803
        %v2900 = vpack.c.b16 %v2812, %v2808
        %v2901 = vpack.c.b16 %v2813, %v2809
        %v2902 = vpack.c.b16 %v2814, %v2810
        %v2903 = vpack.c.b16 %v2815, %v2811
        %v2904 = vpack.c.b16 %v2820, %v2816
        %v2905 = vpack.c.b16 %v2821, %v2817
        %v2906 = vpack.c.b16 %v2822, %v2818
        %v2907 = vpack.c.b16 %v2823, %v2819
        %v2908 = vpack.c.b16 %v2828, %v2824
        %v2909 = vpack.c.b16 %v2829, %v2825
        %v2910 = vpack.c.b16 %v2830, %v2826
        %v2911 = vpack.c.b16 %v2831, %v2827
        %v2912 = vpack.c.b16 %v2836, %v2832
        %v2913 = vpack.c.b16 %v2837, %v2833
        %v2914 = vpack.c.b16 %v2838, %v2834
        %v2915 = vpack.c.b16 %v2839, %v2835
        %v2916 = vpack.c.b16 %v2844, %v2840
        %v2917 = vpack.c.b16 %v2845, %v2841
        %v2918 = vpack.c.b16 %v2846, %v2842
        %v2919 = vpack.c.b16 %v2847, %v2843
        %v2920 = vpack.c.b16 %v2852, %v2848
        %v2921 = vpack.c.b16 %v2853, %v2849
        %v2922 = vpack.c.b16 %v2854, %v2850
        %v2923 = vpack.c.b16 %v2855, %v2851
        %v2924 = vpack.c.b16 %v2860, %v2856
        %v2925 = vpack.c.b16 %v2861, %v2857
        %v2926 = vpack.c.b16 %v2862, %v2858
        %v2927 = vpack.c.b16 %v2863, %v2859
        %2992 = vmatprep.subr.bf16.mxu0 %v2893
        %2993 = vmatpush1.bf16.msra.mxu0 %v2892
        %2994 = vmatprep.subr.bf16.mxu0 %v2889
        %2995 = vmatpush1.bf16.msra.mxu0 %v2888
        %2996 = vmatprep.subr.bf16.mxu0 %v2885
        %2997 = vmatpush1.bf16.msra.mxu0 %v2884
        %2998 = vmatprep.subr.bf16.mxu0 %v2881
        %2999 = vmatpush1.bf16.msra.mxu0 %v2880
        %3000 = vmatprep.subr.bf16.mxu0 %v2877
        %3001 = vmatpush1.bf16.msra.mxu0 %v2876
        %3002 = vmatprep.subr.bf16.mxu0 %v2873
        %3003 = vmatpush1.bf16.msra.mxu0 %v2872
        %3004 = vmatprep.subr.bf16.mxu0 %v2869
        %3005 = vmatpush1.bf16.msra.mxu0 %v2868
        %3006 = vmatprep.subr.bf16.mxu0 %v2865
        %3007 = vmatpush1.bf16.msra.mxu0 %v2864
        %3008 = vmatprep.subr.bf16.mxu0 %v2925
        %3009 = vmatpush2.bf16.msra.mxu0 %v2924
        %3010 = vmatprep.subr.bf16.mxu0 %v2921
        %3011 = vmatpush2.bf16.msra.mxu0 %v2920
        %3012 = vmatprep.subr.bf16.mxu0 %v2917
        %3013 = vmatpush2.bf16.msra.mxu0 %v2916
        %3014 = vmatprep.subr.bf16.mxu0 %v2913
        %3015 = vmatpush2.bf16.msra.mxu0 %v2912
        %3016 = vmatprep.subr.bf16.mxu0 %v2909
        %3017 = vmatpush2.bf16.msra.mxu0 %v2908
        %3018 = vmatprep.subr.bf16.mxu0 %v2905
        %3019 = vmatpush2.bf16.msra.mxu0 %v2904
        %3020 = vmatprep.subr.bf16.mxu0 %v2901
        %3021 = vmatpush2.bf16.msra.mxu0 %v2900
        %3022 = vmatprep.subr.bf16.mxu0 %v2897
        %3023 = vmatpush2.bf16.msra.mxu0 %v2896
        %3024 = vmatprep.mubr.bf16.mxu0 %v2669
        %3025 = vmatmul.mubr.bf16.gmra.mxu0 %v2662
        %v3026 = vpop.f32.mrf.mxu0
        %v3027 = vadd.f32 0.0, %v3026
        %v3028 = vpop.f32.mrf.mxu0
        %v3029 = vadd.f32 0.0, %v3028
        %v3030 = vpop.f32.mrf.mxu0
        %v3031 = vpop.f32.mrf.mxu0
        %3032 = vdwg.mxu0
        %3033 = vmatprep.subr.bf16.mxu0 %v2895
        %3034 = vmatpush1.bf16.msra.mxu0 %v2894
        %3035 = vmatprep.subr.bf16.mxu0 %v2891
        %3036 = vmatpush1.bf16.msra.mxu0 %v2890
        %3037 = vmatprep.subr.bf16.mxu0 %v2887
        %3038 = vmatpush1.bf16.msra.mxu0 %v2886
        %3039 = vmatprep.subr.bf16.mxu0 %v2883
        %3040 = vmatpush1.bf16.msra.mxu0 %v2882
        %3041 = vmatprep.subr.bf16.mxu0 %v2879
        %3042 = vmatpush1.bf16.msra.mxu0 %v2878
        %3043 = vmatprep.subr.bf16.mxu0 %v2875
        %3044 = vmatpush1.bf16.msra.mxu0 %v2874
        %3045 = vmatprep.subr.bf16.mxu0 %v2871
        %3046 = vmatpush1.bf16.msra.mxu0 %v2870
        %3047 = vmatprep.subr.bf16.mxu0 %v2867
        %3048 = vmatpush1.bf16.msra.mxu0 %v2866
        %3049 = vmatprep.subr.bf16.mxu0 %v2927
        %3050 = vmatpush2.bf16.msra.mxu0 %v2926
        %3051 = vmatprep.subr.bf16.mxu0 %v2923
        %3052 = vmatpush2.bf16.msra.mxu0 %v2922
        %3053 = vmatprep.subr.bf16.mxu0 %v2919
        %3054 = vmatpush2.bf16.msra.mxu0 %v2918
        %3055 = vmatprep.subr.bf16.mxu0 %v2915
        %3056 = vmatpush2.bf16.msra.mxu0 %v2914
        %3057 = vmatprep.subr.bf16.mxu0 %v2911
        %3058 = vmatpush2.bf16.msra.mxu0 %v2910
        %3059 = vmatprep.subr.bf16.mxu0 %v2907
        %3060 = vmatpush2.bf16.msra.mxu0 %v2906
        %3061 = vmatprep.subr.bf16.mxu0 %v2903
        %3062 = vmatpush2.bf16.msra.mxu0 %v2902
        %3063 = vmatprep.subr.bf16.mxu0 %v2899
        %3064 = vmatpush2.bf16.msra.mxu0 %v2898
        %3065 = vmatprep.mubr.bf16.mxu0 %v2669
        %3066 = vmatmul.mubr.bf16.gmra.mxu0 %v2662
        %v3067 = vpop.f32.mrf.mxu0
        %v3068 = vadd.f32 0.0, %v3067
        %v3069 = vpop.f32.mrf.mxu0
        %v3070 = vadd.f32 0.0, %v3069
        %v3071 = vpop.f32.mrf.mxu0
        %v3072 = vpop.f32.mrf.mxu0
        %3073 = vdwg.mxu0
        %v3074 = vadd.f32 %v2609, %v3027
        %v3075 = vadd.f32 %v2611, %v3029
        %v3076 = vadd.f32 %v2650, %v3068
        %v3077 = vadd.f32 %v2652, %v3070
        %3078 = vmatprep.subr.bf16.mxu0 %v2066
        %3079 = vmatpush1.bf16.msra.mxu0 %v2065
        %3080 = vmatprep.subr.bf16.mxu0 %v2062
        %3081 = vmatpush1.bf16.msra.mxu0 %v2061
        %3082 = vmatprep.subr.bf16.mxu0 %v2058
        %3083 = vmatpush1.bf16.msra.mxu0 %v2057
        %3084 = vmatprep.subr.bf16.mxu0 %v2054
        %3085 = vmatpush1.bf16.msra.mxu0 %v2053
        %3086 = vmatprep.subr.bf16.mxu0 %v2050
        %3087 = vmatpush1.bf16.msra.mxu0 %v2049
        %3088 = vmatprep.subr.bf16.mxu0 %v2046
        %3089 = vmatpush1.bf16.msra.mxu0 %v2045
        %3090 = vmatprep.subr.bf16.mxu0 %v2042
        %3091 = vmatpush1.bf16.msra.mxu0 %v2041
        %3092 = vmatprep.subr.bf16.mxu0 %v2038
        %3093 = vmatpush1.bf16.msra.mxu0 %v2037
        %3094 = vmatprep.subr.bf16.mxu0 %v2098
        %3095 = vmatpush2.bf16.msra.mxu0 %v2097
        %3096 = vmatprep.subr.bf16.mxu0 %v2094
        %3097 = vmatpush2.bf16.msra.mxu0 %v2093
        %3098 = vmatprep.subr.bf16.mxu0 %v2090
        %3099 = vmatpush2.bf16.msra.mxu0 %v2089
        %3100 = vmatprep.subr.bf16.mxu0 %v2086
        %3101 = vmatpush2.bf16.msra.mxu0 %v2085
        %3102 = vmatprep.subr.bf16.mxu0 %v2082
        %3103 = vmatpush2.bf16.msra.mxu0 %v2081
        %3104 = vmatprep.subr.bf16.mxu0 %v2078
        %3105 = vmatpush2.bf16.msra.mxu0 %v2077
        %3106 = vmatprep.subr.bf16.mxu0 %v2074
        %3107 = vmatpush2.bf16.msra.mxu0 %v2073
        %3108 = vmatprep.subr.bf16.mxu0 %v2070
        %3109 = vmatpush2.bf16.msra.mxu0 %v2069
        %3110 = vmatprep.mubr.bf16.mxu0 %v2669
        %3111 = vmatmul.mubr.bf16.gmra.mxu0 %v2662
        %v3112 = vpop.f32.mrf.mxu0
        %v3113 = vadd.f32 0.0, %v3112
        %v3114 = vpop.f32.mrf.mxu0
        %v3115 = vadd.f32 0.0, %v3114
        %v3116 = vpop.f32.mrf.mxu0
        %v3117 = vpop.f32.mrf.mxu0
        %3118 = vdwg.mxu0
        %3119 = vmatprep.subr.bf16.mxu0 %v2068
        %3120 = vmatpush1.bf16.msra.mxu0 %v2067
        %3121 = vmatprep.subr.bf16.mxu0 %v2064
        %3122 = vmatpush1.bf16.msra.mxu0 %v2063
        %3123 = vmatprep.subr.bf16.mxu0 %v2060
        %3124 = vmatpush1.bf16.msra.mxu0 %v2059
        %3125 = vmatprep.subr.bf16.mxu0 %v2056
        %3126 = vmatpush1.bf16.msra.mxu0 %v2055
        %3127 = vmatprep.subr.bf16.mxu0 %v2052
        %3128 = vmatpush1.bf16.msra.mxu0 %v2051
        %3129 = vmatprep.subr.bf16.mxu0 %v2048
        %3130 = vmatpush1.bf16.msra.mxu0 %v2047
        %3131 = vmatprep.subr.bf16.mxu0 %v2044
        %3132 = vmatpush1.bf16.msra.mxu0 %v2043
        %3133 = vmatprep.subr.bf16.mxu0 %v2040
        %3134 = vmatpush1.bf16.msra.mxu0 %v2039
        %3135 = vmatprep.subr.bf16.mxu0 %v2100
        %3136 = vmatpush2.bf16.msra.mxu0 %v2099
        %3137 = vmatprep.subr.bf16.mxu0 %v2096
        %3138 = vmatpush2.bf16.msra.mxu0 %v2095
        %3139 = vmatprep.subr.bf16.mxu0 %v2092
        %3140 = vmatpush2.bf16.msra.mxu0 %v2091
        %3141 = vmatprep.subr.bf16.mxu0 %v2088
        %3142 = vmatpush2.bf16.msra.mxu0 %v2087
        %3143 = vmatprep.subr.bf16.mxu0 %v2084
        %3144 = vmatpush2.bf16.msra.mxu0 %v2083
        %3145 = vmatprep.subr.bf16.mxu0 %v2080
        %3146 = vmatpush2.bf16.msra.mxu0 %v2079
        %3147 = vmatprep.subr.bf16.mxu0 %v2076
        %3148 = vmatpush2.bf16.msra.mxu0 %v2075
        %3149 = vmatprep.subr.bf16.mxu0 %v2072
        %3150 = vmatpush2.bf16.msra.mxu0 %v2071
        %3151 = vmatprep.mubr.bf16.mxu0 %v2669
        %3152 = vmatmul.mubr.bf16.gmra.mxu0 %v2662
        %v3153 = vpop.f32.mrf.mxu0
        %v3154 = vadd.f32 0.0, %v3153
        %v3155 = vpop.f32.mrf.mxu0
        %v3156 = vadd.f32 0.0, %v3155
        %v3157 = vpop.f32.mrf.mxu0
        %v3158 = vpop.f32.mrf.mxu0
        %3159 = vdwg.mxu0
        %3160 = vmatprep.subr.bf16.mxu0 %v2475
        %3161 = vmatpush1.bf16.msra.mxu0 %v2474
        %3162 = vmatprep.subr.bf16.mxu0 %v2471
        %3163 = vmatpush1.bf16.msra.mxu0 %v2470
        %3164 = vmatprep.subr.bf16.mxu0 %v2467
        %3165 = vmatpush1.bf16.msra.mxu0 %v2466
        %3166 = vmatprep.subr.bf16.mxu0 %v2463
        %3167 = vmatpush1.bf16.msra.mxu0 %v2462
        %3168 = vmatprep.subr.bf16.mxu0 %v2459
        %3169 = vmatpush1.bf16.msra.mxu0 %v2458
        %3170 = vmatprep.subr.bf16.mxu0 %v2455
        %3171 = vmatpush1.bf16.msra.mxu0 %v2454
        %3172 = vmatprep.subr.bf16.mxu0 %v2451
        %3173 = vmatpush1.bf16.msra.mxu0 %v2450
        %3174 = vmatprep.subr.bf16.mxu0 %v2447
        %3175 = vmatpush1.bf16.msra.mxu0 %v2446
        %3176 = vmatprep.subr.bf16.mxu0 %v2507
        %3177 = vmatpush2.bf16.msra.mxu0 %v2506
        %3178 = vmatprep.subr.bf16.mxu0 %v2503
        %3179 = vmatpush2.bf16.msra.mxu0 %v2502
        %3180 = vmatprep.subr.bf16.mxu0 %v2499
        %3181 = vmatpush2.bf16.msra.mxu0 %v2498
        %3182 = vmatprep.subr.bf16.mxu0 %v2495
        %3183 = vmatpush2.bf16.msra.mxu0 %v2494
        %3184 = vmatprep.subr.bf16.mxu0 %v2491
        %3185 = vmatpush2.bf16.msra.mxu0 %v2490
        %3186 = vmatprep.subr.bf16.mxu0 %v2487
        %3187 = vmatpush2.bf16.msra.mxu0 %v2486
        %3188 = vmatprep.subr.bf16.mxu0 %v2483
        %3189 = vmatpush2.bf16.msra.mxu0 %v2482
        %3190 = vmatprep.subr.bf16.mxu0 %v2479
        %3191 = vmatpush2.bf16.msra.mxu0 %v2478
        %3192 = vmatprep.mubr.bf16.mxu0 %v1842
        %3193 = vmatmul.mubr.bf16.gmra.mxu0 %v1841
        %v3194 = vpop.f32.mrf.mxu0
        %v3195 = vadd.f32 %v3113, %v3194
        %v3196 = vpop.f32.mrf.mxu0
        %v3197 = vadd.f32 %v3115, %v3196
        %v3198 = vpop.f32.mrf.mxu0
        %v3199 = vpop.f32.mrf.mxu0
        %3200 = vdwg.mxu0
        %3201 = vmatprep.subr.bf16.mxu0 %v2477
        %3202 = vmatpush1.bf16.msra.mxu0 %v2476
        %3203 = vmatprep.subr.bf16.mxu0 %v2473
        %3204 = vmatpush1.bf16.msra.mxu0 %v2472
        %3205 = vmatprep.subr.bf16.mxu0 %v2469
        %3206 = vmatpush1.bf16.msra.mxu0 %v2468
        %3207 = vmatprep.subr.bf16.mxu0 %v2465
        %3208 = vmatpush1.bf16.msra.mxu0 %v2464
        %3209 = vmatprep.subr.bf16.mxu0 %v2461
        %3210 = vmatpush1.bf16.msra.mxu0 %v2460
        %3211 = vmatprep.subr.bf16.mxu0 %v2457
        %3212 = vmatpush1.bf16.msra.mxu0 %v2456
        %3213 = vmatprep.subr.bf16.mxu0 %v2453
        %3214 = vmatpush1.bf16.msra.mxu0 %v2452
        %3215 = vmatprep.subr.bf16.mxu0 %v2449
        %3216 = vmatpush1.bf16.msra.mxu0 %v2448
        %3217 = vmatprep.subr.bf16.mxu0 %v2509
        %3218 = vmatpush2.bf16.msra.mxu0 %v2508
        %3219 = vmatprep.subr.bf16.mxu0 %v2505
        %3220 = vmatpush2.bf16.msra.mxu0 %v2504
        %3221 = vmatprep.subr.bf16.mxu0 %v2501
        %3222 = vmatpush2.bf16.msra.mxu0 %v2500
        %3223 = vmatprep.subr.bf16.mxu0 %v2497
        %3224 = vmatpush2.bf16.msra.mxu0 %v2496
        %3225 = vmatprep.subr.bf16.mxu0 %v2493
        %3226 = vmatpush2.bf16.msra.mxu0 %v2492
        %3227 = vmatprep.subr.bf16.mxu0 %v2489
        %3228 = vmatpush2.bf16.msra.mxu0 %v2488
        %3229 = vmatprep.subr.bf16.mxu0 %v2485
        %3230 = vmatpush2.bf16.msra.mxu0 %v2484
        %3231 = vmatprep.subr.bf16.mxu0 %v2481
        %3232 = vmatpush2.bf16.msra.mxu0 %v2480
        %3233 = vmatprep.mubr.bf16.mxu0 %v1842
        %3234 = vmatmul.mubr.bf16.gmra.mxu0 %v1841
        %v3235 = vpop.f32.mrf.mxu0
        %v3236 = vadd.f32 %v3154, %v3235
        %v3237 = vpop.f32.mrf.mxu0
        %v3238 = vadd.f32 %v3156, %v3237
        %v3239 = vpop.f32.mrf.mxu0
        %v3240 = vpop.f32.mrf.mxu0
        %3241 = vdwg.mxu0
        %v3243 = vshrl.u32 %v1841, 16
        %v3245 = vshll.u32 %v1841, 16
        %v3247 = vrot.slane %v3245, 1
        %v3248 = vor.u32 %v3243, %v3247
        %v3250 = vshrl.u32 %v1842, 16
        %v3252 = vshll.u32 %v1842, 16
        %v3254 = vrot.slane %v3252, 1
        %v3255 = vor.u32 %v3250, %v3254
        %3258 = vmatprep.subr.bf16.mxu0 %v2893
        %3259 = vmatpush1.bf16.msra.mxu0 %v2892
        %3260 = vmatprep.subr.bf16.mxu0 %v2889
        %3261 = vmatpush1.bf16.msra.mxu0 %v2888
        %3262 = vmatprep.subr.bf16.mxu0 %v2885
        %3263 = vmatpush1.bf16.msra.mxu0 %v2884
        %3264 = vmatprep.subr.bf16.mxu0 %v2881
        %3265 = vmatpush1.bf16.msra.mxu0 %v2880
        %3266 = vmatprep.subr.bf16.mxu0 %v2877
        %3267 = vmatpush1.bf16.msra.mxu0 %v2876
        %3268 = vmatprep.subr.bf16.mxu0 %v2873
        %3269 = vmatpush1.bf16.msra.mxu0 %v2872
        %3270 = vmatprep.subr.bf16.mxu0 %v2869
        %3271 = vmatpush1.bf16.msra.mxu0 %v2868
        %3272 = vmatprep.subr.bf16.mxu0 %v2865
        %3273 = vmatpush1.bf16.msra.mxu0 %v2864
        %3274 = vmatprep.subr.bf16.mxu0 %v2925
        %3275 = vmatpush2.bf16.msra.mxu0 %v2924
        %3276 = vmatprep.subr.bf16.mxu0 %v2921
        %3277 = vmatpush2.bf16.msra.mxu0 %v2920
        %3278 = vmatprep.subr.bf16.mxu0 %v2917
        %3279 = vmatpush2.bf16.msra.mxu0 %v2916
        %3280 = vmatprep.subr.bf16.mxu0 %v2913
        %3281 = vmatpush2.bf16.msra.mxu0 %v2912
        %3282 = vmatprep.subr.bf16.mxu0 %v2909
        %3283 = vmatpush2.bf16.msra.mxu0 %v2908
        %3284 = vmatprep.subr.bf16.mxu0 %v2905
        %3285 = vmatpush2.bf16.msra.mxu0 %v2904
        %3286 = vmatprep.subr.bf16.mxu0 %v2901
        %3287 = vmatpush2.bf16.msra.mxu0 %v2900
        %3288 = vmatprep.subr.bf16.mxu0 %v2897
        %3289 = vmatpush2.bf16.msra.mxu0 %v2896
        %3290 = vmatprep.mubr.bf16.mxu0 %v3255
        %3291 = vmatmul.mubr.bf16.gmra.mxu0 %v3248
        %v3292 = vpop.f32.mrf.mxu0
        %v3293 = vadd.f32 0.0, %v3292
        %v3294 = vpop.f32.mrf.mxu0
        %v3295 = vadd.f32 0.0, %v3294
        %v3296 = vpop.f32.mrf.mxu0
        %v3297 = vpop.f32.mrf.mxu0
        %3298 = vdwg.mxu0
        %3299 = vmatprep.subr.bf16.mxu0 %v2895
        %3300 = vmatpush1.bf16.msra.mxu0 %v2894
        %3301 = vmatprep.subr.bf16.mxu0 %v2891
        %3302 = vmatpush1.bf16.msra.mxu0 %v2890
        %3303 = vmatprep.subr.bf16.mxu0 %v2887
        %3304 = vmatpush1.bf16.msra.mxu0 %v2886
        %3305 = vmatprep.subr.bf16.mxu0 %v2883
        %3306 = vmatpush1.bf16.msra.mxu0 %v2882
        %3307 = vmatprep.subr.bf16.mxu0 %v2879
        %3308 = vmatpush1.bf16.msra.mxu0 %v2878
        %3309 = vmatprep.subr.bf16.mxu0 %v2875
        %3310 = vmatpush1.bf16.msra.mxu0 %v2874
        %3311 = vmatprep.subr.bf16.mxu0 %v2871
        %3312 = vmatpush1.bf16.msra.mxu0 %v2870
        %3313 = vmatprep.subr.bf16.mxu0 %v2867
        %3314 = vmatpush1.bf16.msra.mxu0 %v2866
        %3315 = vmatprep.subr.bf16.mxu0 %v2927
        %3316 = vmatpush2.bf16.msra.mxu0 %v2926
        %3317 = vmatprep.subr.bf16.mxu0 %v2923
        %3318 = vmatpush2.bf16.msra.mxu0 %v2922
        %3319 = vmatprep.subr.bf16.mxu0 %v2919
        %3320 = vmatpush2.bf16.msra.mxu0 %v2918
        %3321 = vmatprep.subr.bf16.mxu0 %v2915
        %3322 = vmatpush2.bf16.msra.mxu0 %v2914
        %3323 = vmatprep.subr.bf16.mxu0 %v2911
        %3324 = vmatpush2.bf16.msra.mxu0 %v2910
        %3325 = vmatprep.subr.bf16.mxu0 %v2907
        %3326 = vmatpush2.bf16.msra.mxu0 %v2906
        %3327 = vmatprep.subr.bf16.mxu0 %v2903
        %3328 = vmatpush2.bf16.msra.mxu0 %v2902
        %3329 = vmatprep.subr.bf16.mxu0 %v2899
        %3330 = vmatpush2.bf16.msra.mxu0 %v2898
        %3331 = vmatprep.mubr.bf16.mxu0 %v3255
        %3332 = vmatmul.mubr.bf16.gmra.mxu0 %v3248
        %v3333 = vpop.f32.mrf.mxu0
        %v3334 = vadd.f32 0.0, %v3333
        %v3335 = vpop.f32.mrf.mxu0
        %v3336 = vadd.f32 0.0, %v3335
        %v3337 = vpop.f32.mrf.mxu0
        %v3338 = vpop.f32.mrf.mxu0
        %3339 = vdwg.mxu0
        %v3340 = vadd.f32 %v3195, %v3293
        %v3341 = vadd.f32 %v3197, %v3295
        %v3342 = vadd.f32 %v3236, %v3334
        %v3343 = vadd.f32 %v3238, %v3336
        %v3344 = vmax.f32 %v3074, %v3340
        %v3345 = vmax.f32 %v3075, %v3341
        %v3346 = vmax.f32 %v3076, %v3342
        %v3347 = vmax.f32 %v3077, %v3343
        %3351 = vrot.lane.b32.xlu0 %v3345, 32
        %v3352 = vpop.permute.xlu0 %3351
        %3353 = vrot.lane.b32.xlu0 %v3346, 32
        %v3354 = vpop.permute.xlu0 %3353
        %3355 = vrot.lane.b32.xlu0 %v3347, 32
        %v3356 = vpop.permute.xlu0 %3355
        %v3357 = vsel %vm597, %v3352, %v3354
        %v3358 = vsel %vm597, %v3354, %v3356
        %v3361 = vmax.f32 %v3344, %v3357
        %v3362 = vmax.f32 %v3345, %v3358
        %v3363 = vld [vmem:[%s4] sm:$0x3]
        %v3365 = vlaneseq
        %v3366 = vshrl.u32 %v3365, 7
        %v3367 = vsub.s32 0, %v3366
        %v3368 = vrot.slane %v3363, %v3367
        %v3369 = vlaneseq
        %v3370 = vshrl.u32 %v3369, 7
        %v3371 = vsub.s32 1, %v3370
        %v3372 = vrot.slane %v3363, %v3371
        %v3375 = vadd.f32 %v3361, %v3368
        %v3376 = vadd.f32 %v3362, %v3372
        %v3377 = vmax.f32 %v3375, 0.0
        %v3378 = vmax.f32 %v3376, 0.0
        %v3379 = vpack.c.bf16 %v3377, %v3377
        %v3380 = vpack.c.bf16 %v3378, %v3378
        %v3381 = vld [vmem:[%s5] sm:$0xf]
        %v3382 = vld [vmem:[%s5 + $0x4] sm:$0xf]
        %v3383 = vld [vmem:[%s5 + $0x8] sm:$0xf]
        %v3384 = vld [vmem:[%s5 + $0xc] sm:$0xf]
        %v3385 = vld [vmem:[%s5 + $0x10] sm:$0xf]
        %v3386 = vld [vmem:[%s5 + $0x14] sm:$0xf]
        %v3387 = vld [vmem:[%s5 + $0x18] sm:$0xf]
        %v3388 = vld [vmem:[%s5 + $0x1c] sm:$0xf]
        %v3389 = vld [vmem:[%s5 + $0x20] sm:$0xf]
        %v3390 = vld [vmem:[%s5 + $0x24] sm:$0xf]
        %v3391 = vld [vmem:[%s5 + $0x28] sm:$0xf]
        %v3392 = vld [vmem:[%s5 + $0x2c] sm:$0xf]
        %v3393 = vld [vmem:[%s5 + $0x30] sm:$0xf]
        %v3394 = vld [vmem:[%s5 + $0x34] sm:$0xf]
        %v3395 = vld [vmem:[%s5 + $0x38] sm:$0xf]
        %v3396 = vld [vmem:[%s5 + $0x3c] sm:$0xf]
        %v3397 = vld [vmem:[%s5 + $0x40] sm:$0xf]
        %v3398 = vld [vmem:[%s5 + $0x44] sm:$0xf]
        %v3399 = vld [vmem:[%s5 + $0x48] sm:$0xf]
        %v3400 = vld [vmem:[%s5 + $0x4c] sm:$0xf]
        %v3401 = vld [vmem:[%s5 + $0x50] sm:$0xf]
        %v3402 = vld [vmem:[%s5 + $0x54] sm:$0xf]
        %v3403 = vld [vmem:[%s5 + $0x58] sm:$0xf]
        %v3404 = vld [vmem:[%s5 + $0x5c] sm:$0xf]
        %v3405 = vld [vmem:[%s5 + $0x60] sm:$0xf]
        %v3406 = vld [vmem:[%s5 + $0x64] sm:$0xf]
        %v3407 = vld [vmem:[%s5 + $0x68] sm:$0xf]
        %v3408 = vld [vmem:[%s5 + $0x6c] sm:$0xf]
        %v3409 = vld [vmem:[%s5 + $0x70] sm:$0xf]
        %v3410 = vld [vmem:[%s5 + $0x74] sm:$0xf]
        %v3411 = vld [vmem:[%s5 + $0x78] sm:$0xf]
        %v3412 = vld [vmem:[%s5 + $0x7c] sm:$0xf]
        %v3413 = vld [vmem:[%s5 + $0x80] sm:$0xf]
        %v3414 = vld [vmem:[%s5 + $0x84] sm:$0xf]
        %v3415 = vld [vmem:[%s5 + $0x88] sm:$0xf]
        %v3416 = vld [vmem:[%s5 + $0x8c] sm:$0xf]
        %v3417 = vld [vmem:[%s5 + $0x90] sm:$0xf]
        %v3418 = vld [vmem:[%s5 + $0x94] sm:$0xf]
        %v3419 = vld [vmem:[%s5 + $0x98] sm:$0xf]
        %v3420 = vld [vmem:[%s5 + $0x9c] sm:$0xf]
        %v3421 = vld [vmem:[%s5 + $0xa0] sm:$0xf]
        %v3422 = vld [vmem:[%s5 + $0xa4] sm:$0xf]
        %v3423 = vld [vmem:[%s5 + $0xa8] sm:$0xf]
        %v3424 = vld [vmem:[%s5 + $0xac] sm:$0xf]
        %v3425 = vld [vmem:[%s5 + $0xb0] sm:$0xf]
        %v3426 = vld [vmem:[%s5 + $0xb4] sm:$0xf]
        %v3427 = vld [vmem:[%s5 + $0xb8] sm:$0xf]
        %v3428 = vld [vmem:[%s5 + $0xbc] sm:$0xf]
        %v3429 = vld [vmem:[%s5 + $0xc0] sm:$0xf]
        %v3430 = vld [vmem:[%s5 + $0xc4] sm:$0xf]
        %v3431 = vld [vmem:[%s5 + $0xc8] sm:$0xf]
        %v3432 = vld [vmem:[%s5 + $0xcc] sm:$0xf]
        %v3433 = vld [vmem:[%s5 + $0xd0] sm:$0xf]
        %v3434 = vld [vmem:[%s5 + $0xd4] sm:$0xf]
        %v3435 = vld [vmem:[%s5 + $0xd8] sm:$0xf]
        %v3436 = vld [vmem:[%s5 + $0xdc] sm:$0xf]
        %v3438 = vshrl.u32 %v3379, 16
        %v3441 = vshrl.u32 %v3380, 16
        %v3472 = vunpack.c.l.b16 %v3409
        %v3473 = vunpack.c.l.b16 %v3410
        %v3474 = vunpack.c.l.b16 %v3411
        %v3475 = vunpack.c.l.b16 %v3412
        %v3476 = vunpack.c.l.b16 %v3413
        %v3477 = vunpack.c.l.b16 %v3414
        %v3478 = vunpack.c.l.b16 %v3415
        %v3479 = vunpack.c.l.b16 %v3416
        %v3480 = vunpack.c.l.b16 %v3417
        %v3481 = vunpack.c.l.b16 %v3418
        %v3482 = vunpack.c.l.b16 %v3419
        %v3483 = vunpack.c.l.b16 %v3420
        %v3484 = vunpack.c.l.b16 %v3421
        %v3485 = vunpack.c.l.b16 %v3422
        %v3486 = vunpack.c.l.b16 %v3423
        %v3487 = vunpack.c.l.b16 %v3424
        %v3488 = vunpack.c.l.b16 %v3425
        %v3489 = vunpack.c.l.b16 %v3426
        %v3490 = vunpack.c.l.b16 %v3427
        %v3491 = vunpack.c.l.b16 %v3428
        %v3492 = vunpack.c.l.b16 %v3429
        %v3493 = vunpack.c.l.b16 %v3430
        %v3494 = vunpack.c.l.b16 %v3431
        %v3495 = vunpack.c.l.b16 %v3432
        %v3496 = vunpack.c.l.b16 %v3433
        %v3497 = vunpack.c.l.b16 %v3434
        %v3498 = vunpack.c.l.b16 %v3435
        %v3499 = vunpack.c.l.b16 %v3436
        %v3500 = vpack.c.b16 %v3473, %v3472
        %v3501 = vpack.c.b16 %v3475, %v3474
        %v3502 = vpack.c.b16 %v3477, %v3476
        %v3503 = vpack.c.b16 %v3479, %v3478
        %v3504 = vpack.c.b16 %v3481, %v3480
        %v3505 = vpack.c.b16 %v3483, %v3482
        %v3506 = vpack.c.b16 %v3485, %v3484
        %v3507 = vpack.c.b16 %v3487, %v3486
        %v3508 = vpack.c.b16 %v3489, %v3488
        %v3509 = vpack.c.b16 %v3491, %v3490
        %v3510 = vpack.c.b16 %v3493, %v3492
        %v3511 = vpack.c.b16 %v3495, %v3494
        %v3512 = vpack.c.b16 %v3497, %v3496
        %v3513 = vpack.c.b16 %v3499, %v3498
        %vm3528 = vcmask 785408
        %v3530 = vsel %vm3528, %v3441, 0
        %3532 = vmatprep.subr.bf16.mxu0 0
        %3533 = vmatpush1.bf16.msra.mxu0 %v3507
        %3534 = vmatprep.subr.bf16.mxu0 0
        %3535 = vmatpush1.bf16.msra.mxu0 %v3506
        %3536 = vmatprep.subr.bf16.mxu0 0
        %3537 = vmatpush1.bf16.msra.mxu0 %v3505
        %3538 = vmatprep.subr.bf16.mxu0 0
        %3539 = vmatpush1.bf16.msra.mxu0 %v3504
        %3540 = vmatprep.subr.bf16.mxu0 0
        %3541 = vmatpush1.bf16.msra.mxu0 %v3503
        %3542 = vmatprep.subr.bf16.mxu0 0
        %3543 = vmatpush1.bf16.msra.mxu0 %v3502
        %3544 = vmatprep.subr.bf16.mxu0 0
        %3545 = vmatpush1.bf16.msra.mxu0 %v3501
        %3546 = vmatprep.subr.bf16.mxu0 0
        %3547 = vmatpush1.bf16.msra.mxu0 %v3500
        %3548 = vmatprep.subr.bf16.mxu0 0
        %3549 = vmatpush2.bf16.msra.mxu0 0
        %3550 = vmatprep.subr.bf16.mxu0 0
        %3551 = vmatpush2.bf16.msra.mxu0 0
        %3552 = vmatprep.subr.bf16.mxu0 0
        %3553 = vmatpush2.bf16.msra.mxu0 %v3513
        %3554 = vmatprep.subr.bf16.mxu0 0
        %3555 = vmatpush2.bf16.msra.mxu0 %v3512
        %3556 = vmatprep.subr.bf16.mxu0 0
        %3557 = vmatpush2.bf16.msra.mxu0 %v3511
        %3558 = vmatprep.subr.bf16.mxu0 0
        %3559 = vmatpush2.bf16.msra.mxu0 %v3510
        %3560 = vmatprep.subr.bf16.mxu0 0
        %3561 = vmatpush2.bf16.msra.mxu0 %v3509
        %3562 = vmatprep.subr.bf16.mxu0 0
        %3563 = vmatpush2.bf16.msra.mxu0 %v3508
        %3564 = vmatprep.mubr.bf16.mxu0 %v3530
        %3565 = vmatmul.mubr.bf16.gmra.mxu0 %v3438
        %v3566 = vpop.f32.mrf.mxu0
        %v3567 = vadd.f32 0.0, %v3566
        %v3568 = vpop.f32.mrf.mxu0
        %v3569 = vpop.f32.mrf.mxu0
        %v3570 = vpop.f32.mrf.mxu0
        %3571 = vdwg.mxu0
        %v3600 = vunpack.c.l.b16 %v3381
        %v3601 = vunpack.c.l.b16 %v3382
        %v3602 = vunpack.c.l.b16 %v3383
        %v3603 = vunpack.c.l.b16 %v3384
        %v3604 = vunpack.c.l.b16 %v3385
        %v3605 = vunpack.c.l.b16 %v3386
        %v3606 = vunpack.c.l.b16 %v3387
        %v3607 = vunpack.c.l.b16 %v3388
        %v3608 = vunpack.c.l.b16 %v3389
        %v3609 = vunpack.c.l.b16 %v3390
        %v3610 = vunpack.c.l.b16 %v3391
        %v3611 = vunpack.c.l.b16 %v3392
        %v3612 = vunpack.c.l.b16 %v3393
        %v3613 = vunpack.c.l.b16 %v3394
        %v3614 = vunpack.c.l.b16 %v3395
        %v3615 = vunpack.c.l.b16 %v3396
        %v3616 = vunpack.c.l.b16 %v3397
        %v3617 = vunpack.c.l.b16 %v3398
        %v3618 = vunpack.c.l.b16 %v3399
        %v3619 = vunpack.c.l.b16 %v3400
        %v3620 = vunpack.c.l.b16 %v3401
        %v3621 = vunpack.c.l.b16 %v3402
        %v3622 = vunpack.c.l.b16 %v3403
        %v3623 = vunpack.c.l.b16 %v3404
        %v3624 = vunpack.c.l.b16 %v3405
        %v3625 = vunpack.c.l.b16 %v3406
        %v3626 = vunpack.c.l.b16 %v3407
        %v3627 = vunpack.c.l.b16 %v3408
        %v3628 = vpack.c.b16 %v3601, %v3600
        %v3629 = vpack.c.b16 %v3603, %v3602
        %v3630 = vpack.c.b16 %v3605, %v3604
        %v3631 = vpack.c.b16 %v3607, %v3606
        %v3632 = vpack.c.b16 %v3609, %v3608
        %v3633 = vpack.c.b16 %v3611, %v3610
        %v3634 = vpack.c.b16 %v3613, %v3612
        %v3635 = vpack.c.b16 %v3615, %v3614
        %v3636 = vpack.c.b16 %v3617, %v3616
        %v3637 = vpack.c.b16 %v3619, %v3618
        %v3638 = vpack.c.b16 %v3621, %v3620
        %v3639 = vpack.c.b16 %v3623, %v3622
        %v3640 = vpack.c.b16 %v3625, %v3624
        %v3641 = vpack.c.b16 %v3627, %v3626
        %v3656 = vsel %vm3528, %v3380, 0
        %3658 = vmatprep.subr.bf16.mxu0 0
        %3659 = vmatpush1.bf16.msra.mxu0 %v3635
        %3660 = vmatprep.subr.bf16.mxu0 0
        %3661 = vmatpush1.bf16.msra.mxu0 %v3634
        %3662 = vmatprep.subr.bf16.mxu0 0
        %3663 = vmatpush1.bf16.msra.mxu0 %v3633
        %3664 = vmatprep.subr.bf16.mxu0 0
        %3665 = vmatpush1.bf16.msra.mxu0 %v3632
        %3666 = vmatprep.subr.bf16.mxu0 0
        %3667 = vmatpush1.bf16.msra.mxu0 %v3631
        %3668 = vmatprep.subr.bf16.mxu0 0
        %3669 = vmatpush1.bf16.msra.mxu0 %v3630
        %3670 = vmatprep.subr.bf16.mxu0 0
        %3671 = vmatpush1.bf16.msra.mxu0 %v3629
        %3672 = vmatprep.subr.bf16.mxu0 0
        %3673 = vmatpush1.bf16.msra.mxu0 %v3628
        %3674 = vmatprep.subr.bf16.mxu0 0
        %3675 = vmatpush2.bf16.msra.mxu0 0
        %3676 = vmatprep.subr.bf16.mxu0 0
        %3677 = vmatpush2.bf16.msra.mxu0 0
        %3678 = vmatprep.subr.bf16.mxu0 0
        %3679 = vmatpush2.bf16.msra.mxu0 %v3641
        %3680 = vmatprep.subr.bf16.mxu0 0
        %3681 = vmatpush2.bf16.msra.mxu0 %v3640
        %3682 = vmatprep.subr.bf16.mxu0 0
        %3683 = vmatpush2.bf16.msra.mxu0 %v3639
        %3684 = vmatprep.subr.bf16.mxu0 0
        %3685 = vmatpush2.bf16.msra.mxu0 %v3638
        %3686 = vmatprep.subr.bf16.mxu0 0
        %3687 = vmatpush2.bf16.msra.mxu0 %v3637
        %3688 = vmatprep.subr.bf16.mxu0 0
        %3689 = vmatpush2.bf16.msra.mxu0 %v3636
        %3690 = vmatprep.mubr.bf16.mxu0 %v3656
        %3691 = vmatmul.mubr.bf16.gmra.mxu0 %v3379
        %v3692 = vpop.f32.mrf.mxu0
        %v3693 = vadd.f32 %v3567, %v3692
        %v3694 = vpop.f32.mrf.mxu0
        %v3695 = vpop.f32.mrf.mxu0
        %v3696 = vpop.f32.mrf.mxu0
        %3697 = vdwg.mxu0
        %v3698 = vld [vmem:[%s5 + $0xe0] sm:$0xf]
        %v3699 = vld [vmem:[%s5 + $0xe4] sm:$0xf]
        %v3700 = vld [vmem:[%s5 + $0xe8] sm:$0xf]
        %v3701 = vld [vmem:[%s5 + $0xec] sm:$0xf]
        %v3702 = vld [vmem:[%s5 + $0xf0] sm:$0xf]
        %v3703 = vld [vmem:[%s5 + $0xf4] sm:$0xf]
        %v3704 = vld [vmem:[%s5 + $0xf8] sm:$0xf]
        %v3705 = vld [vmem:[%s5 + $0xfc] sm:$0xf]
        %v3706 = vld [vmem:[%s5 + $0x100] sm:$0xf]
        %v3707 = vld [vmem:[%s5 + $0x104] sm:$0xf]
        %v3708 = vld [vmem:[%s5 + $0x108] sm:$0xf]
        %v3709 = vld [vmem:[%s5 + $0x10c] sm:$0xf]
        %v3710 = vld [vmem:[%s5 + $0x110] sm:$0xf]
        %v3711 = vld [vmem:[%s5 + $0x114] sm:$0xf]
        %v3712 = vld [vmem:[%s5 + $0x118] sm:$0xf]
        %v3713 = vld [vmem:[%s5 + $0x11c] sm:$0xf]
        %v3714 = vld [vmem:[%s5 + $0x120] sm:$0xf]
        %v3715 = vld [vmem:[%s5 + $0x124] sm:$0xf]
        %v3716 = vld [vmem:[%s5 + $0x128] sm:$0xf]
        %v3717 = vld [vmem:[%s5 + $0x12c] sm:$0xf]
        %v3718 = vld [vmem:[%s5 + $0x130] sm:$0xf]
        %v3719 = vld [vmem:[%s5 + $0x134] sm:$0xf]
        %v3720 = vld [vmem:[%s5 + $0x138] sm:$0xf]
        %v3721 = vld [vmem:[%s5 + $0x13c] sm:$0xf]
        %v3722 = vld [vmem:[%s5 + $0x140] sm:$0xf]
        %v3723 = vld [vmem:[%s5 + $0x144] sm:$0xf]
        %v3724 = vld [vmem:[%s5 + $0x148] sm:$0xf]
        %v3725 = vld [vmem:[%s5 + $0x14c] sm:$0xf]
        %v3728 = vrot.slane %v3379, 1
        %v3729 = vrot.slane %v3380, 1
        %v3759 = vunpack.c.l.b16 %v3698
        %v3760 = vunpack.c.l.b16 %v3699
        %v3761 = vunpack.c.l.b16 %v3700
        %v3762 = vunpack.c.l.b16 %v3701
        %v3763 = vunpack.c.l.b16 %v3702
        %v3764 = vunpack.c.l.b16 %v3703
        %v3765 = vunpack.c.l.b16 %v3704
        %v3766 = vunpack.c.l.b16 %v3705
        %v3767 = vunpack.c.l.b16 %v3706
        %v3768 = vunpack.c.l.b16 %v3707
        %v3769 = vunpack.c.l.b16 %v3708
        %v3770 = vunpack.c.l.b16 %v3709
        %v3771 = vunpack.c.l.b16 %v3710
        %v3772 = vunpack.c.l.b16 %v3711
        %v3773 = vunpack.c.l.b16 %v3712
        %v3774 = vunpack.c.l.b16 %v3713
        %v3775 = vunpack.c.l.b16 %v3714
        %v3776 = vunpack.c.l.b16 %v3715
        %v3777 = vunpack.c.l.b16 %v3716
        %v3778 = vunpack.c.l.b16 %v3717
        %v3779 = vunpack.c.l.b16 %v3718
        %v3780 = vunpack.c.l.b16 %v3719
        %v3781 = vunpack.c.l.b16 %v3720
        %v3782 = vunpack.c.l.b16 %v3721
        %v3783 = vunpack.c.l.b16 %v3722
        %v3784 = vunpack.c.l.b16 %v3723
        %v3785 = vunpack.c.l.b16 %v3724
        %v3786 = vunpack.c.l.b16 %v3725
        %v3787 = vpack.c.b16 %v3760, %v3759
        %v3788 = vpack.c.b16 %v3762, %v3761
        %v3789 = vpack.c.b16 %v3764, %v3763
        %v3790 = vpack.c.b16 %v3766, %v3765
        %v3791 = vpack.c.b16 %v3768, %v3767
        %v3792 = vpack.c.b16 %v3770, %v3769
        %v3793 = vpack.c.b16 %v3772, %v3771
        %v3794 = vpack.c.b16 %v3774, %v3773
        %v3795 = vpack.c.b16 %v3776, %v3775
        %v3796 = vpack.c.b16 %v3778, %v3777
        %v3797 = vpack.c.b16 %v3780, %v3779
        %v3798 = vpack.c.b16 %v3782, %v3781
        %v3799 = vpack.c.b16 %v3784, %v3783
        %v3800 = vpack.c.b16 %v3786, %v3785
        %v3816 = vsel %vm3528, %v3729, 0
        %3818 = vmatprep.subr.bf16.mxu0 0
        %3819 = vmatpush1.bf16.msra.mxu0 %v3794
        %3820 = vmatprep.subr.bf16.mxu0 0
        %3821 = vmatpush1.bf16.msra.mxu0 %v3793
        %3822 = vmatprep.subr.bf16.mxu0 0
        %3823 = vmatpush1.bf16.msra.mxu0 %v3792
        %3824 = vmatprep.subr.bf16.mxu0 0
        %3825 = vmatpush1.bf16.msra.mxu0 %v3791
        %3826 = vmatprep.subr.bf16.mxu0 0
        %3827 = vmatpush1.bf16.msra.mxu0 %v3790
        %3828 = vmatprep.subr.bf16.mxu0 0
        %3829 = vmatpush1.bf16.msra.mxu0 %v3789
        %3830 = vmatprep.subr.bf16.mxu0 0
        %3831 = vmatpush1.bf16.msra.mxu0 %v3788
        %3832 = vmatprep.subr.bf16.mxu0 0
        %3833 = vmatpush1.bf16.msra.mxu0 %v3787
        %3834 = vmatprep.subr.bf16.mxu0 0
        %3835 = vmatpush2.bf16.msra.mxu0 0
        %3836 = vmatprep.subr.bf16.mxu0 0
        %3837 = vmatpush2.bf16.msra.mxu0 0
        %3838 = vmatprep.subr.bf16.mxu0 0
        %3839 = vmatpush2.bf16.msra.mxu0 %v3800
        %3840 = vmatprep.subr.bf16.mxu0 0
        %3841 = vmatpush2.bf16.msra.mxu0 %v3799
        %3842 = vmatprep.subr.bf16.mxu0 0
        %3843 = vmatpush2.bf16.msra.mxu0 %v3798
        %3844 = vmatprep.subr.bf16.mxu0 0
        %3845 = vmatpush2.bf16.msra.mxu0 %v3797
        %3846 = vmatprep.subr.bf16.mxu0 0
        %3847 = vmatpush2.bf16.msra.mxu0 %v3796
        %3848 = vmatprep.subr.bf16.mxu0 0
        %3849 = vmatpush2.bf16.msra.mxu0 %v3795
        %3850 = vmatprep.mubr.bf16.mxu0 %v3816
        %3851 = vmatmul.mubr.bf16.gmra.mxu0 %v3728
        %v3852 = vpop.f32.mrf.mxu0
        %v3853 = vadd.f32 0.0, %v3852
        %v3854 = vpop.f32.mrf.mxu0
        %v3855 = vpop.f32.mrf.mxu0
        %v3856 = vpop.f32.mrf.mxu0
        %3857 = vdwg.mxu0
        %v3858 = vadd.f32 %v3693, %v3853
        %v3859 = vld [vmem:[%s5 + $0x150] sm:$0xf]
        %v3860 = vld [vmem:[%s5 + $0x154] sm:$0xf]
        %v3861 = vld [vmem:[%s5 + $0x158] sm:$0xf]
        %v3862 = vld [vmem:[%s5 + $0x15c] sm:$0xf]
        %v3863 = vld [vmem:[%s5 + $0x160] sm:$0xf]
        %v3864 = vld [vmem:[%s5 + $0x164] sm:$0xf]
        %v3865 = vld [vmem:[%s5 + $0x168] sm:$0xf]
        %v3866 = vld [vmem:[%s5 + $0x16c] sm:$0xf]
        %v3867 = vld [vmem:[%s5 + $0x170] sm:$0xf]
        %v3868 = vld [vmem:[%s5 + $0x174] sm:$0xf]
        %v3869 = vld [vmem:[%s5 + $0x178] sm:$0xf]
        %v3870 = vld [vmem:[%s5 + $0x17c] sm:$0xf]
        %v3871 = vld [vmem:[%s5 + $0x180] sm:$0xf]
        %v3872 = vld [vmem:[%s5 + $0x184] sm:$0xf]
        %v3873 = vld [vmem:[%s5 + $0x188] sm:$0xf]
        %v3874 = vld [vmem:[%s5 + $0x18c] sm:$0xf]
        %v3875 = vld [vmem:[%s5 + $0x190] sm:$0xf]
        %v3876 = vld [vmem:[%s5 + $0x194] sm:$0xf]
        %v3877 = vld [vmem:[%s5 + $0x198] sm:$0xf]
        %v3878 = vld [vmem:[%s5 + $0x19c] sm:$0xf]
        %v3879 = vld [vmem:[%s5 + $0x1a0] sm:$0xf]
        %v3880 = vld [vmem:[%s5 + $0x1a4] sm:$0xf]
        %v3881 = vld [vmem:[%s5 + $0x1a8] sm:$0xf]
        %v3882 = vld [vmem:[%s5 + $0x1ac] sm:$0xf]
        %v3883 = vld [vmem:[%s5 + $0x1b0] sm:$0xf]
        %v3884 = vld [vmem:[%s5 + $0x1b4] sm:$0xf]
        %v3885 = vld [vmem:[%s5 + $0x1b8] sm:$0xf]
        %v3886 = vld [vmem:[%s5 + $0x1bc] sm:$0xf]
        %v3887 = vrot.slane %v3438, 1
        %v3888 = vrot.slane %v3441, 1
        %v3918 = vunpack.c.l.b16 %v3859
        %v3919 = vunpack.c.l.b16 %v3860
        %v3920 = vunpack.c.l.b16 %v3861
        %v3921 = vunpack.c.l.b16 %v3862
        %v3922 = vunpack.c.l.b16 %v3863
        %v3923 = vunpack.c.l.b16 %v3864
        %v3924 = vunpack.c.l.b16 %v3865
        %v3925 = vunpack.c.l.b16 %v3866
        %v3926 = vunpack.c.l.b16 %v3867
        %v3927 = vunpack.c.l.b16 %v3868
        %v3928 = vunpack.c.l.b16 %v3869
        %v3929 = vunpack.c.l.b16 %v3870
        %v3930 = vunpack.c.l.b16 %v3871
        %v3931 = vunpack.c.l.b16 %v3872
        %v3932 = vunpack.c.l.b16 %v3873
        %v3933 = vunpack.c.l.b16 %v3874
        %v3934 = vunpack.c.l.b16 %v3875
        %v3935 = vunpack.c.l.b16 %v3876
        %v3936 = vunpack.c.l.b16 %v3877
        %v3937 = vunpack.c.l.b16 %v3878
        %v3938 = vunpack.c.l.b16 %v3879
        %v3939 = vunpack.c.l.b16 %v3880
        %v3940 = vunpack.c.l.b16 %v3881
        %v3941 = vunpack.c.l.b16 %v3882
        %v3942 = vunpack.c.l.b16 %v3883
        %v3943 = vunpack.c.l.b16 %v3884
        %v3944 = vunpack.c.l.b16 %v3885
        %v3945 = vunpack.c.l.b16 %v3886
        %v3946 = vpack.c.b16 %v3919, %v3918
        %v3947 = vpack.c.b16 %v3921, %v3920
        %v3948 = vpack.c.b16 %v3923, %v3922
        %v3949 = vpack.c.b16 %v3925, %v3924
        %v3950 = vpack.c.b16 %v3927, %v3926
        %v3951 = vpack.c.b16 %v3929, %v3928
        %v3952 = vpack.c.b16 %v3931, %v3930
        %v3953 = vpack.c.b16 %v3933, %v3932
        %v3954 = vpack.c.b16 %v3935, %v3934
        %v3955 = vpack.c.b16 %v3937, %v3936
        %v3956 = vpack.c.b16 %v3939, %v3938
        %v3957 = vpack.c.b16 %v3941, %v3940
        %v3958 = vpack.c.b16 %v3943, %v3942
        %v3959 = vpack.c.b16 %v3945, %v3944
        %v3975 = vsel %vm3528, %v3888, 0
        %3977 = vmatprep.subr.bf16.mxu0 0
        %3978 = vmatpush1.bf16.msra.mxu0 %v3953
        %3979 = vmatprep.subr.bf16.mxu0 0
        %3980 = vmatpush1.bf16.msra.mxu0 %v3952
        %3981 = vmatprep.subr.bf16.mxu0 0
        %3982 = vmatpush1.bf16.msra.mxu0 %v3951
        %3983 = vmatprep.subr.bf16.mxu0 0
        %3984 = vmatpush1.bf16.msra.mxu0 %v3950
        %3985 = vmatprep.subr.bf16.mxu0 0
        %3986 = vmatpush1.bf16.msra.mxu0 %v3949
        %3987 = vmatprep.subr.bf16.mxu0 0
        %3988 = vmatpush1.bf16.msra.mxu0 %v3948
        %3989 = vmatprep.subr.bf16.mxu0 0
        %3990 = vmatpush1.bf16.msra.mxu0 %v3947
        %3991 = vmatprep.subr.bf16.mxu0 0
        %3992 = vmatpush1.bf16.msra.mxu0 %v3946
        %3993 = vmatprep.subr.bf16.mxu0 0
        %3994 = vmatpush2.bf16.msra.mxu0 0
        %3995 = vmatprep.subr.bf16.mxu0 0
        %3996 = vmatpush2.bf16.msra.mxu0 0
        %3997 = vmatprep.subr.bf16.mxu0 0
        %3998 = vmatpush2.bf16.msra.mxu0 %v3959
        %3999 = vmatprep.subr.bf16.mxu0 0
        %4000 = vmatpush2.bf16.msra.mxu0 %v3958
        %4001 = vmatprep.subr.bf16.mxu0 0
        %4002 = vmatpush2.bf16.msra.mxu0 %v3957
        %4003 = vmatprep.subr.bf16.mxu0 0
        %4004 = vmatpush2.bf16.msra.mxu0 %v3956
        %4005 = vmatprep.subr.bf16.mxu0 0
        %4006 = vmatpush2.bf16.msra.mxu0 %v3955
        %4007 = vmatprep.subr.bf16.mxu0 0
        %4008 = vmatpush2.bf16.msra.mxu0 %v3954
        %4009 = vmatprep.mubr.bf16.mxu0 %v3975
        %4010 = vmatmul.mubr.bf16.gmra.mxu0 %v3887
        %v4011 = vpop.f32.mrf.mxu0
        %v4012 = vadd.f32 0.0, %v4011
        %v4013 = vpop.f32.mrf.mxu0
        %v4014 = vpop.f32.mrf.mxu0
        %v4015 = vpop.f32.mrf.mxu0
        %4016 = vdwg.mxu0
        %v4017 = vadd.f32 %v3858, %v4012
        %v4018 = vld [vmem:[%s5 + $0x1c0] sm:$0xf]
        %v4019 = vld [vmem:[%s5 + $0x1c4] sm:$0xf]
        %v4020 = vld [vmem:[%s5 + $0x1c8] sm:$0xf]
        %v4021 = vld [vmem:[%s5 + $0x1cc] sm:$0xf]
        %v4022 = vld [vmem:[%s5 + $0x1d0] sm:$0xf]
        %v4023 = vld [vmem:[%s5 + $0x1d4] sm:$0xf]
        %v4024 = vld [vmem:[%s5 + $0x1d8] sm:$0xf]
        %v4025 = vld [vmem:[%s5 + $0x1dc] sm:$0xf]
        %v4026 = vld [vmem:[%s5 + $0x1e0] sm:$0xf]
        %v4027 = vld [vmem:[%s5 + $0x1e4] sm:$0xf]
        %v4028 = vld [vmem:[%s5 + $0x1e8] sm:$0xf]
        %v4029 = vld [vmem:[%s5 + $0x1ec] sm:$0xf]
        %v4030 = vld [vmem:[%s5 + $0x1f0] sm:$0xf]
        %v4031 = vld [vmem:[%s5 + $0x1f4] sm:$0xf]
        %v4032 = vld [vmem:[%s5 + $0x1f8] sm:$0xf]
        %v4033 = vld [vmem:[%s5 + $0x1fc] sm:$0xf]
        %v4034 = vld [vmem:[%s5 + $0x200] sm:$0xf]
        %v4035 = vld [vmem:[%s5 + $0x204] sm:$0xf]
        %v4036 = vld [vmem:[%s5 + $0x208] sm:$0xf]
        %v4037 = vld [vmem:[%s5 + $0x20c] sm:$0xf]
        %v4038 = vld [vmem:[%s5 + $0x210] sm:$0xf]
        %v4039 = vld [vmem:[%s5 + $0x214] sm:$0xf]
        %v4040 = vld [vmem:[%s5 + $0x218] sm:$0xf]
        %v4041 = vld [vmem:[%s5 + $0x21c] sm:$0xf]
        %v4042 = vld [vmem:[%s5 + $0x220] sm:$0xf]
        %v4043 = vld [vmem:[%s5 + $0x224] sm:$0xf]
        %v4044 = vld [vmem:[%s5 + $0x228] sm:$0xf]
        %v4045 = vld [vmem:[%s5 + $0x22c] sm:$0xf]
        %v4046 = vrot.slane %v3379, 2
        %v4047 = vrot.slane %v3380, 2
        %v4077 = vunpack.c.l.b16 %v4018
        %v4078 = vunpack.c.l.b16 %v4019
        %v4079 = vunpack.c.l.b16 %v4020
        %v4080 = vunpack.c.l.b16 %v4021
        %v4081 = vunpack.c.l.b16 %v4022
        %v4082 = vunpack.c.l.b16 %v4023
        %v4083 = vunpack.c.l.b16 %v4024
        %v4084 = vunpack.c.l.b16 %v4025
        %v4085 = vunpack.c.l.b16 %v4026
        %v4086 = vunpack.c.l.b16 %v4027
        %v4087 = vunpack.c.l.b16 %v4028
        %v4088 = vunpack.c.l.b16 %v4029
        %v4089 = vunpack.c.l.b16 %v4030
        %v4090 = vunpack.c.l.b16 %v4031
        %v4091 = vunpack.c.l.b16 %v4032
        %v4092 = vunpack.c.l.b16 %v4033
        %v4093 = vunpack.c.l.b16 %v4034
        %v4094 = vunpack.c.l.b16 %v4035
        %v4095 = vunpack.c.l.b16 %v4036
        %v4096 = vunpack.c.l.b16 %v4037
        %v4097 = vunpack.c.l.b16 %v4038
        %v4098 = vunpack.c.l.b16 %v4039
        %v4099 = vunpack.c.l.b16 %v4040
        %v4100 = vunpack.c.l.b16 %v4041
        %v4101 = vunpack.c.l.b16 %v4042
        %v4102 = vunpack.c.l.b16 %v4043
        %v4103 = vunpack.c.l.b16 %v4044
        %v4104 = vunpack.c.l.b16 %v4045
        %v4105 = vpack.c.b16 %v4078, %v4077
        %v4106 = vpack.c.b16 %v4080, %v4079
        %v4107 = vpack.c.b16 %v4082, %v4081
        %v4108 = vpack.c.b16 %v4084, %v4083
        %v4109 = vpack.c.b16 %v4086, %v4085
        %v4110 = vpack.c.b16 %v4088, %v4087
        %v4111 = vpack.c.b16 %v4090, %v4089
        %v4112 = vpack.c.b16 %v4092, %v4091
        %v4113 = vpack.c.b16 %v4094, %v4093
        %v4114 = vpack.c.b16 %v4096, %v4095
        %v4115 = vpack.c.b16 %v4098, %v4097
        %v4116 = vpack.c.b16 %v4100, %v4099
        %v4117 = vpack.c.b16 %v4102, %v4101
        %v4118 = vpack.c.b16 %v4104, %v4103
        %v4134 = vsel %vm3528, %v4047, 0
        %4136 = vmatprep.subr.bf16.mxu0 0
        %4137 = vmatpush1.bf16.msra.mxu0 %v4112
        %4138 = vmatprep.subr.bf16.mxu0 0
        %4139 = vmatpush1.bf16.msra.mxu0 %v4111
        %4140 = vmatprep.subr.bf16.mxu0 0
        %4141 = vmatpush1.bf16.msra.mxu0 %v4110
        %4142 = vmatprep.subr.bf16.mxu0 0
        %4143 = vmatpush1.bf16.msra.mxu0 %v4109
        %4144 = vmatprep.subr.bf16.mxu0 0
        %4145 = vmatpush1.bf16.msra.mxu0 %v4108
        %4146 = vmatprep.subr.bf16.mxu0 0
        %4147 = vmatpush1.bf16.msra.mxu0 %v4107
        %4148 = vmatprep.subr.bf16.mxu0 0
        %4149 = vmatpush1.bf16.msra.mxu0 %v4106
        %4150 = vmatprep.subr.bf16.mxu0 0
        %4151 = vmatpush1.bf16.msra.mxu0 %v4105
        %4152 = vmatprep.subr.bf16.mxu0 0
        %4153 = vmatpush2.bf16.msra.mxu0 0
        %4154 = vmatprep.subr.bf16.mxu0 0
        %4155 = vmatpush2.bf16.msra.mxu0 0
        %4156 = vmatprep.subr.bf16.mxu0 0
        %4157 = vmatpush2.bf16.msra.mxu0 %v4118
        %4158 = vmatprep.subr.bf16.mxu0 0
        %4159 = vmatpush2.bf16.msra.mxu0 %v4117
        %4160 = vmatprep.subr.bf16.mxu0 0
        %4161 = vmatpush2.bf16.msra.mxu0 %v4116
        %4162 = vmatprep.subr.bf16.mxu0 0
        %4163 = vmatpush2.bf16.msra.mxu0 %v4115
        %4164 = vmatprep.subr.bf16.mxu0 0
        %4165 = vmatpush2.bf16.msra.mxu0 %v4114
        %4166 = vmatprep.subr.bf16.mxu0 0
        %4167 = vmatpush2.bf16.msra.mxu0 %v4113
        %4168 = vmatprep.mubr.bf16.mxu0 %v4134
        %4169 = vmatmul.mubr.bf16.gmra.mxu0 %v4046
        %v4170 = vpop.f32.mrf.mxu0
        %v4171 = vadd.f32 0.0, %v4170
        %v4172 = vpop.f32.mrf.mxu0
        %v4173 = vpop.f32.mrf.mxu0
        %v4174 = vpop.f32.mrf.mxu0
        %4175 = vdwg.mxu0
        %v4176 = vadd.f32 %v4017, %v4171
        %v4177 = vld [vmem:[%s5 + $0x230] sm:$0xf]
        %v4178 = vld [vmem:[%s5 + $0x234] sm:$0xf]
        %v4179 = vld [vmem:[%s5 + $0x238] sm:$0xf]
        %v4180 = vld [vmem:[%s5 + $0x23c] sm:$0xf]
        %v4181 = vld [vmem:[%s5 + $0x240] sm:$0xf]
        %v4182 = vld [vmem:[%s5 + $0x244] sm:$0xf]
        %v4183 = vld [vmem:[%s5 + $0x248] sm:$0xf]
        %v4184 = vld [vmem:[%s5 + $0x24c] sm:$0xf]
        %v4185 = vld [vmem:[%s5 + $0x250] sm:$0xf]
        %v4186 = vld [vmem:[%s5 + $0x254] sm:$0xf]
        %v4187 = vld [vmem:[%s5 + $0x258] sm:$0xf]
        %v4188 = vld [vmem:[%s5 + $0x25c] sm:$0xf]
        %v4189 = vld [vmem:[%s5 + $0x260] sm:$0xf]
        %v4190 = vld [vmem:[%s5 + $0x264] sm:$0xf]
        %v4191 = vld [vmem:[%s5 + $0x268] sm:$0xf]
        %v4192 = vld [vmem:[%s5 + $0x26c] sm:$0xf]
        %v4193 = vld [vmem:[%s5 + $0x270] sm:$0xf]
        %v4194 = vld [vmem:[%s5 + $0x274] sm:$0xf]
        %v4195 = vld [vmem:[%s5 + $0x278] sm:$0xf]
        %v4196 = vld [vmem:[%s5 + $0x27c] sm:$0xf]
        %v4197 = vld [vmem:[%s5 + $0x280] sm:$0xf]
        %v4198 = vld [vmem:[%s5 + $0x284] sm:$0xf]
        %v4199 = vld [vmem:[%s5 + $0x288] sm:$0xf]
        %v4200 = vld [vmem:[%s5 + $0x28c] sm:$0xf]
        %v4201 = vld [vmem:[%s5 + $0x290] sm:$0xf]
        %v4202 = vld [vmem:[%s5 + $0x294] sm:$0xf]
        %v4203 = vld [vmem:[%s5 + $0x298] sm:$0xf]
        %v4204 = vld [vmem:[%s5 + $0x29c] sm:$0xf]
        %v4205 = vrot.slane %v3438, 2
        %v4206 = vrot.slane %v3441, 2
        %v4236 = vunpack.c.l.b16 %v4177
        %v4237 = vunpack.c.l.b16 %v4178
        %v4238 = vunpack.c.l.b16 %v4179
        %v4239 = vunpack.c.l.b16 %v4180
        %v4240 = vunpack.c.l.b16 %v4181
        %v4241 = vunpack.c.l.b16 %v4182
        %v4242 = vunpack.c.l.b16 %v4183
        %v4243 = vunpack.c.l.b16 %v4184
        %v4244 = vunpack.c.l.b16 %v4185
        %v4245 = vunpack.c.l.b16 %v4186
        %v4246 = vunpack.c.l.b16 %v4187
        %v4247 = vunpack.c.l.b16 %v4188
        %v4248 = vunpack.c.l.b16 %v4189
        %v4249 = vunpack.c.l.b16 %v4190
        %v4250 = vunpack.c.l.b16 %v4191
        %v4251 = vunpack.c.l.b16 %v4192
        %v4252 = vunpack.c.l.b16 %v4193
        %v4253 = vunpack.c.l.b16 %v4194
        %v4254 = vunpack.c.l.b16 %v4195
        %v4255 = vunpack.c.l.b16 %v4196
        %v4256 = vunpack.c.l.b16 %v4197
        %v4257 = vunpack.c.l.b16 %v4198
        %v4258 = vunpack.c.l.b16 %v4199
        %v4259 = vunpack.c.l.b16 %v4200
        %v4260 = vunpack.c.l.b16 %v4201
        %v4261 = vunpack.c.l.b16 %v4202
        %v4262 = vunpack.c.l.b16 %v4203
        %v4263 = vunpack.c.l.b16 %v4204
        %v4264 = vpack.c.b16 %v4237, %v4236
        %v4265 = vpack.c.b16 %v4239, %v4238
        %v4266 = vpack.c.b16 %v4241, %v4240
        %v4267 = vpack.c.b16 %v4243, %v4242
        %v4268 = vpack.c.b16 %v4245, %v4244
        %v4269 = vpack.c.b16 %v4247, %v4246
        %v4270 = vpack.c.b16 %v4249, %v4248
        %v4271 = vpack.c.b16 %v4251, %v4250
        %v4272 = vpack.c.b16 %v4253, %v4252
        %v4273 = vpack.c.b16 %v4255, %v4254
        %v4274 = vpack.c.b16 %v4257, %v4256
        %v4275 = vpack.c.b16 %v4259, %v4258
        %v4276 = vpack.c.b16 %v4261, %v4260
        %v4277 = vpack.c.b16 %v4263, %v4262
        %v4293 = vsel %vm3528, %v4206, 0
        %4295 = vmatprep.subr.bf16.mxu0 0
        %4296 = vmatpush1.bf16.msra.mxu0 %v4271
        %4297 = vmatprep.subr.bf16.mxu0 0
        %4298 = vmatpush1.bf16.msra.mxu0 %v4270
        %4299 = vmatprep.subr.bf16.mxu0 0
        %4300 = vmatpush1.bf16.msra.mxu0 %v4269
        %4301 = vmatprep.subr.bf16.mxu0 0
        %4302 = vmatpush1.bf16.msra.mxu0 %v4268
        %4303 = vmatprep.subr.bf16.mxu0 0
        %4304 = vmatpush1.bf16.msra.mxu0 %v4267
        %4305 = vmatprep.subr.bf16.mxu0 0
        %4306 = vmatpush1.bf16.msra.mxu0 %v4266
        %4307 = vmatprep.subr.bf16.mxu0 0
        %4308 = vmatpush1.bf16.msra.mxu0 %v4265
        %4309 = vmatprep.subr.bf16.mxu0 0
        %4310 = vmatpush1.bf16.msra.mxu0 %v4264
        %4311 = vmatprep.subr.bf16.mxu0 0
        %4312 = vmatpush2.bf16.msra.mxu0 0
        %4313 = vmatprep.subr.bf16.mxu0 0
        %4314 = vmatpush2.bf16.msra.mxu0 0
        %4315 = vmatprep.subr.bf16.mxu0 0
        %4316 = vmatpush2.bf16.msra.mxu0 %v4277
        %4317 = vmatprep.subr.bf16.mxu0 0
        %4318 = vmatpush2.bf16.msra.mxu0 %v4276
        %4319 = vmatprep.subr.bf16.mxu0 0
        %4320 = vmatpush2.bf16.msra.mxu0 %v4275
        %4321 = vmatprep.subr.bf16.mxu0 0
        %4322 = vmatpush2.bf16.msra.mxu0 %v4274
        %4323 = vmatprep.subr.bf16.mxu0 0
        %4324 = vmatpush2.bf16.msra.mxu0 %v4273
        %4325 = vmatprep.subr.bf16.mxu0 0
        %4326 = vmatpush2.bf16.msra.mxu0 %v4272
        %4327 = vmatprep.mubr.bf16.mxu0 %v4293
        %4328 = vmatmul.mubr.bf16.gmra.mxu0 %v4205
        %v4329 = vpop.f32.mrf.mxu0
        %v4330 = vadd.f32 0.0, %v4329
        %v4331 = vpop.f32.mrf.mxu0
        %v4332 = vpop.f32.mrf.mxu0
        %v4333 = vpop.f32.mrf.mxu0
        %4334 = vdwg.mxu0
        %v4335 = vadd.f32 %v4176, %v4330
        %v4336 = vld [vmem:[%s5 + $0x2a0] sm:$0xf]
        %v4337 = vld [vmem:[%s5 + $0x2a4] sm:$0xf]
        %v4338 = vld [vmem:[%s5 + $0x2a8] sm:$0xf]
        %v4339 = vld [vmem:[%s5 + $0x2ac] sm:$0xf]
        %v4340 = vld [vmem:[%s5 + $0x2b0] sm:$0xf]
        %v4341 = vld [vmem:[%s5 + $0x2b4] sm:$0xf]
        %v4342 = vld [vmem:[%s5 + $0x2b8] sm:$0xf]
        %v4343 = vld [vmem:[%s5 + $0x2bc] sm:$0xf]
        %v4344 = vld [vmem:[%s5 + $0x2c0] sm:$0xf]
        %v4345 = vld [vmem:[%s5 + $0x2c4] sm:$0xf]
        %v4346 = vld [vmem:[%s5 + $0x2c8] sm:$0xf]
        %v4347 = vld [vmem:[%s5 + $0x2cc] sm:$0xf]
        %v4348 = vld [vmem:[%s5 + $0x2d0] sm:$0xf]
        %v4349 = vld [vmem:[%s5 + $0x2d4] sm:$0xf]
        %v4350 = vld [vmem:[%s5 + $0x2d8] sm:$0xf]
        %v4351 = vld [vmem:[%s5 + $0x2dc] sm:$0xf]
        %v4352 = vld [vmem:[%s5 + $0x2e0] sm:$0xf]
        %v4353 = vld [vmem:[%s5 + $0x2e4] sm:$0xf]
        %v4354 = vld [vmem:[%s5 + $0x2e8] sm:$0xf]
        %v4355 = vld [vmem:[%s5 + $0x2ec] sm:$0xf]
        %v4356 = vld [vmem:[%s5 + $0x2f0] sm:$0xf]
        %v4357 = vld [vmem:[%s5 + $0x2f4] sm:$0xf]
        %v4358 = vld [vmem:[%s5 + $0x2f8] sm:$0xf]
        %v4359 = vld [vmem:[%s5 + $0x2fc] sm:$0xf]
        %v4360 = vld [vmem:[%s5 + $0x300] sm:$0xf]
        %v4361 = vld [vmem:[%s5 + $0x304] sm:$0xf]
        %v4362 = vld [vmem:[%s5 + $0x308] sm:$0xf]
        %v4363 = vld [vmem:[%s5 + $0x30c] sm:$0xf]
        %v4364 = vrot.slane %v3379, 3
        %v4365 = vrot.slane %v3380, 3
        %v4395 = vunpack.c.l.b16 %v4336
        %v4396 = vunpack.c.l.b16 %v4337
        %v4397 = vunpack.c.l.b16 %v4338
        %v4398 = vunpack.c.l.b16 %v4339
        %v4399 = vunpack.c.l.b16 %v4340
        %v4400 = vunpack.c.l.b16 %v4341
        %v4401 = vunpack.c.l.b16 %v4342
        %v4402 = vunpack.c.l.b16 %v4343
        %v4403 = vunpack.c.l.b16 %v4344
        %v4404 = vunpack.c.l.b16 %v4345
        %v4405 = vunpack.c.l.b16 %v4346
        %v4406 = vunpack.c.l.b16 %v4347
        %v4407 = vunpack.c.l.b16 %v4348
        %v4408 = vunpack.c.l.b16 %v4349
        %v4409 = vunpack.c.l.b16 %v4350
        %v4410 = vunpack.c.l.b16 %v4351
        %v4411 = vunpack.c.l.b16 %v4352
        %v4412 = vunpack.c.l.b16 %v4353
        %v4413 = vunpack.c.l.b16 %v4354
        %v4414 = vunpack.c.l.b16 %v4355
        %v4415 = vunpack.c.l.b16 %v4356
        %v4416 = vunpack.c.l.b16 %v4357
        %v4417 = vunpack.c.l.b16 %v4358
        %v4418 = vunpack.c.l.b16 %v4359
        %v4419 = vunpack.c.l.b16 %v4360
        %v4420 = vunpack.c.l.b16 %v4361
        %v4421 = vunpack.c.l.b16 %v4362
        %v4422 = vunpack.c.l.b16 %v4363
        %v4423 = vpack.c.b16 %v4396, %v4395
        %v4424 = vpack.c.b16 %v4398, %v4397
        %v4425 = vpack.c.b16 %v4400, %v4399
        %v4426 = vpack.c.b16 %v4402, %v4401
        %v4427 = vpack.c.b16 %v4404, %v4403
        %v4428 = vpack.c.b16 %v4406, %v4405
        %v4429 = vpack.c.b16 %v4408, %v4407
        %v4430 = vpack.c.b16 %v4410, %v4409
        %v4431 = vpack.c.b16 %v4412, %v4411
        %v4432 = vpack.c.b16 %v4414, %v4413
        %v4433 = vpack.c.b16 %v4416, %v4415
        %v4434 = vpack.c.b16 %v4418, %v4417
        %v4435 = vpack.c.b16 %v4420, %v4419
        %v4436 = vpack.c.b16 %v4422, %v4421
        %v4452 = vsel %vm3528, %v4365, 0
        %4454 = vmatprep.subr.bf16.mxu0 0
        %4455 = vmatpush1.bf16.msra.mxu0 %v4430
        %4456 = vmatprep.subr.bf16.mxu0 0
        %4457 = vmatpush1.bf16.msra.mxu0 %v4429
        %4458 = vmatprep.subr.bf16.mxu0 0
        %4459 = vmatpush1.bf16.msra.mxu0 %v4428
        %4460 = vmatprep.subr.bf16.mxu0 0
        %4461 = vmatpush1.bf16.msra.mxu0 %v4427
        %4462 = vmatprep.subr.bf16.mxu0 0
        %4463 = vmatpush1.bf16.msra.mxu0 %v4426
        %4464 = vmatprep.subr.bf16.mxu0 0
        %4465 = vmatpush1.bf16.msra.mxu0 %v4425
        %4466 = vmatprep.subr.bf16.mxu0 0
        %4467 = vmatpush1.bf16.msra.mxu0 %v4424
        %4468 = vmatprep.subr.bf16.mxu0 0
        %4469 = vmatpush1.bf16.msra.mxu0 %v4423
        %4470 = vmatprep.subr.bf16.mxu0 0
        %4471 = vmatpush2.bf16.msra.mxu0 0
        %4472 = vmatprep.subr.bf16.mxu0 0
        %4473 = vmatpush2.bf16.msra.mxu0 0
        %4474 = vmatprep.subr.bf16.mxu0 0
        %4475 = vmatpush2.bf16.msra.mxu0 %v4436
        %4476 = vmatprep.subr.bf16.mxu0 0
        %4477 = vmatpush2.bf16.msra.mxu0 %v4435
        %4478 = vmatprep.subr.bf16.mxu0 0
        %4479 = vmatpush2.bf16.msra.mxu0 %v4434
        %4480 = vmatprep.subr.bf16.mxu0 0
        %4481 = vmatpush2.bf16.msra.mxu0 %v4433
        %4482 = vmatprep.subr.bf16.mxu0 0
        %4483 = vmatpush2.bf16.msra.mxu0 %v4432
        %4484 = vmatprep.subr.bf16.mxu0 0
        %4485 = vmatpush2.bf16.msra.mxu0 %v4431
        %4486 = vmatprep.mubr.bf16.mxu0 %v4452
        %4487 = vmatmul.mubr.bf16.gmra.mxu0 %v4364
        %v4488 = vpop.f32.mrf.mxu0
        %v4489 = vadd.f32 0.0, %v4488
        %v4490 = vpop.f32.mrf.mxu0
        %v4491 = vpop.f32.mrf.mxu0
        %v4492 = vpop.f32.mrf.mxu0
        %4493 = vdwg.mxu0
        %v4494 = vadd.f32 %v4335, %v4489
        %v4495 = vld [vmem:[%s6] sm:$0x1]
        %v4496 = vadd.f32 %v4494, %v4495
        %v4497 = vmax.f32 %v4496, 0.0
        %v4498 = vpack.c.bf16 %v4497, %v4497
        %v4499 = vld [vmem:[%s7] sm:$0xf]
        %v4500 = vld [vmem:[%s7 + $0x4] sm:$0xf]
        %v4501 = vld [vmem:[%s7 + $0x8] sm:$0xf]
        %v4502 = vld [vmem:[%s7 + $0xc] sm:$0xf]
        %v4503 = vld [vmem:[%s7 + $0x10] sm:$0xf]
        %v4504 = vld [vmem:[%s7 + $0x14] sm:$0xf]
        %v4505 = vld [vmem:[%s7 + $0x18] sm:$0xf]
        %v4506 = vld [vmem:[%s7 + $0x1c] sm:$0xf]
        %v4507 = vld [vmem:[%s7 + $0x20] sm:$0xf]
        %v4508 = vld [vmem:[%s7 + $0x24] sm:$0xf]
        %v4509 = vld [vmem:[%s7 + $0x28] sm:$0xf]
        %v4510 = vld [vmem:[%s7 + $0x2c] sm:$0xf]
        %v4511 = vld [vmem:[%s7 + $0x30] sm:$0xf]
        %v4512 = vld [vmem:[%s7 + $0x34] sm:$0xf]
        %v4513 = vld [vmem:[%s7 + $0x38] sm:$0xf]
        %v4514 = vld [vmem:[%s7 + $0x3c] sm:$0xf]
        %v4515 = vld [vmem:[%s8] sm:$0x1]
        %v4532 = vunpack.c.l.b16 %v4499
        %v4533 = vunpack.c.l.b16 %v4500
        %v4534 = vunpack.c.l.b16 %v4501
        %v4535 = vunpack.c.l.b16 %v4502
        %v4536 = vunpack.c.l.b16 %v4503
        %v4537 = vunpack.c.l.b16 %v4504
        %v4538 = vunpack.c.l.b16 %v4505
        %v4539 = vunpack.c.l.b16 %v4506
        %v4540 = vunpack.c.l.b16 %v4507
        %v4541 = vunpack.c.l.b16 %v4508
        %v4542 = vunpack.c.l.b16 %v4509
        %v4543 = vunpack.c.l.b16 %v4510
        %v4544 = vunpack.c.l.b16 %v4511
        %v4545 = vunpack.c.l.b16 %v4512
        %v4546 = vunpack.c.l.b16 %v4513
        %v4547 = vunpack.c.l.b16 %v4514
        %v4548 = vpack.c.b16 %v4533, %v4532
        %v4549 = vpack.c.b16 %v4535, %v4534
        %v4550 = vpack.c.b16 %v4537, %v4536
        %v4551 = vpack.c.b16 %v4539, %v4538
        %v4552 = vpack.c.b16 %v4541, %v4540
        %v4553 = vpack.c.b16 %v4543, %v4542
        %v4554 = vpack.c.b16 %v4545, %v4544
        %v4555 = vpack.c.b16 %v4547, %v4546
        %4564 = vmatprep.subr.bf16.mxu0 0
        %4565 = vmatpush1.bf16.msra.mxu0 %v4555
        %4566 = vmatprep.subr.bf16.mxu0 0
        %4567 = vmatpush1.bf16.msra.mxu0 %v4554
        %4568 = vmatprep.subr.bf16.mxu0 0
        %4569 = vmatpush1.bf16.msra.mxu0 %v4553
        %4570 = vmatprep.subr.bf16.mxu0 0
        %4571 = vmatpush1.bf16.msra.mxu0 %v4552
        %4572 = vmatprep.subr.bf16.mxu0 0
        %4573 = vmatpush1.bf16.msra.mxu0 %v4551
        %4574 = vmatprep.subr.bf16.mxu0 0
        %4575 = vmatpush1.bf16.msra.mxu0 %v4550
        %4576 = vmatprep.subr.bf16.mxu0 0
        %4577 = vmatpush1.bf16.msra.mxu0 %v4549
        %4578 = vmatprep.subr.bf16.mxu0 0
        %4579 = vmatpush1.bf16.msra.mxu0 %v4548
        %4580 = vmatprep.subr.bf16.mxu0 0
        %4581 = vmatpush2.bf16.msra.mxu0 0
        %4582 = vmatprep.subr.bf16.mxu0 0
        %4583 = vmatpush2.bf16.msra.mxu0 0
        %4584 = vmatprep.subr.bf16.mxu0 0
        %4585 = vmatpush2.bf16.msra.mxu0 0
        %4586 = vmatprep.subr.bf16.mxu0 0
        %4587 = vmatpush2.bf16.msra.mxu0 0
        %4588 = vmatprep.subr.bf16.mxu0 0
        %4589 = vmatpush2.bf16.msra.mxu0 0
        %4590 = vmatprep.subr.bf16.mxu0 0
        %4591 = vmatpush2.bf16.msra.mxu0 0
        %4592 = vmatprep.subr.bf16.mxu0 0
        %4593 = vmatpush2.bf16.msra.mxu0 0
        %4594 = vmatprep.subr.bf16.mxu0 0
        %4595 = vmatpush2.bf16.msra.mxu0 0
        %4596 = vmatprep.mubr.bf16.mxu0 0
        %4597 = vmatmul.mubr.bf16.gmra.mxu0 %v4498
        %v4598 = vpop.f32.mrf.mxu0
        %v4599 = vadd.f32 %v4515, %v4598
        %v4600 = vpop.f32.mrf.mxu0
        %v4601 = vpop.f32.mrf.mxu0
        %v4602 = vpop.f32.mrf.mxu0
        %4603 = vdwg.mxu0
        %vm4604 = vcmask 73728
        %4605 = vst.msk [vmem:[%s324] sm:$0x1] %vm4604, %v4599
        %s4606 = sand.u32 %s225, 1
        %s4607 = scalar_lea.sflag [#allocation4], %s4606
        %s4608 = sand.u32 %s225, 1
        %s4609 = scalar_lea.vmem [#allocation3], %s4608
        // Predicated region
        $region57: #{cnn_forward.1} parent=55 // pred_check
          %p4610 = pneg %p235
        $region58: #{cnn_forward.1} parent=55 // pred_check_branch
          %4612 = sbr.rel (%p4610) target = $region60
        $region59: #{cnn_forward.1} parent=55 // pred_region
          %s4614 = ssub.s32 16, 16
          %4615 = vsyncadd %s4607, %s4614
          %s4616 = smul.addr %s23, 16
          %s4617 = scalar_lea.hbm %s9, %s4616
          %s4619 = sshll.u32 %s4609, 4
          %s4620 = int_to_ptr.vmem [resolvable:$true] %s4619
          %4622 = dma.vmem_to_hbm [thread:$0]  %s4620, 16, %s4617, %s4607
        $region60: #{cnn_forward.1} parent=55 // pred_fallthru
          _
      $region56: #{cnn_forward.1} parent=5 // pred_fallthru
        _
      %p4623 = scmp.le.s32.totalorder 2, %s18
      // Predicated region
      $region61: #{cnn_forward.1} parent=5 // pred_check
        %p4624 = pneg %p4623
      $region62: #{cnn_forward.1} parent=5 // pred_check_branch
        %4626 = sbr.rel (%p4624) target = $region64
      $region63: #{cnn_forward.1} parent=5 // pred_region
        %s4627 = ssub.s32 %s18, 2
        // Predicated region
        $region65: #{cnn_forward.1} parent=63 // pred_check
          %p4628 = pneg %p241
        $region66: #{cnn_forward.1} parent=63 // pred_check_branch
          %4630 = sbr.rel (%p4628) target = $region68
        $region67: #{cnn_forward.1} parent=63 // pred_region
          %s4631 = sand.u32 %s226, 1
          %s4632 = scalar_lea.sflag [#allocation4], %s4631
          %s4633 = sand.u32 %s226, 1
          %s4634 = scalar_lea.vmem [#allocation3], %s4633
          %4635 = dma.done %s4632, 16
        $region68: #{cnn_forward.1} parent=63 // pred_fallthru
          _
      $region64: #{cnn_forward.1} parent=5 // pred_fallthru
        _
    $region6: #{cnn_forward.1} parent=1 // loop_footer
      %s22 = sadd.s32 1, %s18
    $region7: #{cnn_forward.1} parent=1 // loop_footer_branch
      %17 = sbr.rel target = $region3
    $region8: #{cnn_forward.1} parent=1 // loop_exit
      _
    %4636 = vsyncpa [#allocation4], 1
    %s4637 = scalar_lea.sflag [#allocation4], 1
    %4638 = vsyncpa %s4637, 1

</llo_original>
